<compile_context>
chip_gen: v7x
topology: tpu7x:2x2x1
jax: 0.10.0
libtpu: 0.0.40
codegen_flags: <defaults>
</compile_context>

<pallas_src>
import functools
import math

import jax
import jax.numpy as jnp
from jax import lax
from jax.experimental import pallas as pl
from jax.experimental.pallas import tpu as pltpu

# ---------------- model config (small, consistent with the forward) ----------
VOCAB = 128
MAX_POS = 16
HIDDEN = 32
N_HEADS = 4
HEAD_DIM = HIDDEN // N_HEADS
INTERMEDIATE = 64
N_LAYERS = 2
N_CLASSES = 3
CLS_PAD = 128          # lane-dense padded classifier output width
LN_EPS = 1e-12

F32 = jnp.float32
VMEM_SPEC = pl.BlockSpec(memory_space=pltpu.MemorySpace.VMEM)


# --------------------------- in-kernel helpers --------------------------------
def _layernorm(x, g, b, eps=LN_EPS):
    mu = jnp.mean(x, axis=-1, keepdims=True)
    xc = x - mu
    var = jnp.mean(xc * xc, axis=-1, keepdims=True)
    return xc * lax.rsqrt(var + eps) * g + b


def _gelu(x):
    # TODO(synk): tanh-approx GELU; HF bert-base-cased uses erf-GELU (~1e-3 rel diff).
    c = jnp.float32(math.sqrt(2.0 / math.pi))
    return 0.5 * x * (1.0 + jnp.tanh(c * (x + 0.044715 * x * x * x)))


# ------------------------- fully fused model kernel ---------------------------
def _model_kernel(*refs, B, S, n_layers):
    (ids_ref, mask_ref, word_ref, pos_type_ref, eg_ref, eb_ref) = refs[:6]
    lrefs = refs[6:6 + 12 * n_layers]
    pw_ref, pb_ref, cw_ref, cb_ref = refs[6 + 12 * n_layers:6 + 12 * n_layers + 4]
    o_ref = refs[-1]

    BS = B * S
    scale = jnp.float32(1.0 / math.sqrt(HEAD_DIM))

    # ---- embeddings: one-hot gather on the MXU + (pos+type) add + LayerNorm ----
    ids = ids_ref[...]                                            # (BS, 1) int32
    onehot = (ids == lax.broadcasted_iota(jnp.int32, (BS, VOCAB), 1)).astype(F32)
    tok = jnp.dot(onehot, word_ref[...], preferred_element_type=F32)   # (BS, H)
    pos_type = pos_type_ref[...][:S, :]                           # (S, H)
    emb = tok + jnp.concatenate([pos_type] * B, axis=0)
    h = _layernorm(emb, eg_ref[...], eb_ref[...])
    # TODO(synk): training-mode embedding/hidden dropout omitted (identity at eval).

    # Additive attention mask, computed once and reused by every layer.
    neg_mask = (mask_ref[...].astype(F32) - 1.0) * jnp.float32(1e9)    # (B, S)

    for li in range(n_layers):
        (qkv_w, qkv_b, ao_w, ao_b, ln1_g, ln1_b,
         i_w, i_b, o_w, o_b, ln2_g, ln2_b) = lrefs[12 * li:12 * (li + 1)]

        x = h
        # Fused Q|K|V projection: one (BS, H) x (H, 3H) matmul.
        qkv = jnp.dot(x, qkv_w[...], preferred_element_type=F32) + qkv_b[...]
        q = qkv[:, 0 * HIDDEN:1 * HIDDEN]
        k = qkv[:, 1 * HIDDEN:2 * HIDDEN]
        v = qkv[:, 2 * HIDDEN:3 * HIDDEN]

        # Multi-head attention: head split via static in-VMEM slices (no host
        # transposes), unrolled over (batch, head) -- B*N_HEADS = 8 tiny matmuls.
        ctx_rows = []
        for b in range(B):
            qb = q[b * S:(b + 1) * S, :]
            kb = k[b * S:(b + 1) * S, :]
            vb = v[b * S:(b + 1) * S, :]
            nm = neg_mask[b:b + 1, :]                             # (1, S)
            head_ctx = []
            for hd in range(N_HEADS):
                c0, c1 = hd * HEAD_DIM, (hd + 1) * HEAD_DIM
                qh, kh, vh = qb[:, c0:c1], kb[:, c0:c1], vb[:, c0:c1]
                s = lax.dot_general(qh, kh, (((1,), (1,)), ((), ())),
                                    preferred_element_type=F32) * scale + nm
                s = s - jnp.max(s, axis=-1, keepdims=True)
                p = jnp.exp(s)
                p = p * pl.reciprocal(jnp.sum(p, axis=-1, keepdims=True), approx=True)
                head_ctx.append(jnp.dot(p, vh, preferred_element_type=F32))
            ctx_rows.append(jnp.concatenate(head_ctx, axis=1))
        ctx = jnp.concatenate(ctx_rows, axis=0)                   # (BS, H)

        attn_out = jnp.dot(ctx, ao_w[...], preferred_element_type=F32) + ao_b[...]
        h1 = _layernorm(attn_out + x, ln1_g[...], ln1_b[...])

        inter = _gelu(jnp.dot(h1, i_w[...], preferred_element_type=F32) + i_b[...])
        ffn = jnp.dot(inter, o_w[...], preferred_element_type=F32) + o_b[...]
        h = _layernorm(ffn + h1, ln2_g[...], ln2_b[...])

    # ---- pooler(tanh on [CLS]) -> dropout(identity at eval) -> classifier ----
    cls = jnp.concatenate([h[b * S:b * S + 1, :] for b in range(B)], axis=0)  # (B, H)
    pooled = jnp.tanh(jnp.dot(cls, pw_ref[...], preferred_element_type=F32) + pb_ref[...])
    logits = jnp.dot(pooled, cw_ref[...], preferred_element_type=F32) + cb_ref[...]
    o_ref[...] = logits.astype(o_ref.dtype)                       # (B, CLS_PAD) lane-dense


# ------------------------------- parameters -----------------------------------
def init_params(key):
    def dense(k, fan_in, fan_out):
        kw, kb = jax.random.split(k)
        w = 0.02 * jax.random.normal(kw, (fan_in, fan_out), F32)
        b = 0.02 * jax.random.normal(kb, (fan_out,), F32)
        return w, b.reshape(1, fan_out)          # biases stored (1, out) once

    keys = jax.random.split(key, 8 + N_LAYERS)
    word_emb = 0.02 * jax.random.normal(keys[0], (VOCAB, HIDDEN), F32)
    pos_emb = 0.02 * jax.random.normal(keys[1], (MAX_POS, HIDDEN), F32)
    type_emb = 0.02 * jax.random.normal(keys[2], (2, HIDDEN), F32)

    params = {
        "word_emb": word_emb,
        # token-type ids are all zero -> fold type_emb[0] into the position table.
        "pos_type": pos_emb + type_emb[0][None, :],
        "emb_ln_g": jnp.ones((1, HIDDEN), F32),
        "emb_ln_b": jnp.zeros((1, HIDDEN), F32),
    }
    params["pool_w"], params["pool_b"] = dense(keys[3], HIDDEN, HIDDEN)

    cls_w, cls_b = dense(keys[4], HIDDEN, N_CLASSES)
    # Zero-pad classifier to a lane-dense 128-wide output slab (done once at init).
    params["cls_w_pad"] = jnp.pad(cls_w, ((0, 0), (0, CLS_PAD - N_CLASSES)))
    params["cls_b_pad"] = jnp.pad(cls_b, ((0, 0), (0, CLS_PAD - N_CLASSES)))

    layers = []
    for i in range(N_LAYERS):
        lk = jax.random.split(keys[8 + i], 6)
        q_w, q_b = dense(lk[0], HIDDEN, HIDDEN)
        k_w, k_b = dense(lk[1], HIDDEN, HIDDEN)
        v_w, v_b = dense(lk[2], HIDDEN, HIDDEN)
        lp = {
            # Fused Q|K|V weight/bias (concatenated once at init).
            "qkv_w": jnp.concatenate([q_w, k_w, v_w], axis=1),
            "qkv_b": jnp.concatenate([q_b, k_b, v_b], axis=1),
        }
        lp["ao_w"], lp["ao_b"] = dense(lk[3], HIDDEN, HIDDEN)
        lp["i_w"], lp["i_b"] = dense(lk[4], HIDDEN, INTERMEDIATE)
        lp["o_w"], lp["o_b"] = dense(lk[5], INTERMEDIATE, HIDDEN)
        lp["ln1_g"] = jnp.ones((1, HIDDEN), F32)
        lp["ln1_b"] = jnp.zeros((1, HIDDEN), F32)
        lp["ln2_g"] = jnp.ones((1, HIDDEN), F32)
        lp["ln2_b"] = jnp.zeros((1, HIDDEN), F32)
        layers.append(lp)
    params["layers"] = layers
    return params


# ------------------------------- forward pass ----------------------------------
def sentiment_classifier_forward(params, input_ids, attention_mask):
    B, S = input_ids.shape
    ids = input_ids.reshape(B * S, 1).astype(jnp.int32)
    mask = attention_mask.astype(jnp.int32)

    flat_inputs = [ids, mask,
                   params["word_emb"], params["pos_type"],
                   params["emb_ln_g"], params["emb_ln_b"]]
    for lp in params["layers"]:
        flat_inputs += [lp["qkv_w"], lp["qkv_b"], lp["ao_w"], lp["ao_b"],
                        lp["ln1_g"], lp["ln1_b"], lp["i_w"], lp["i_b"],
                        lp["o_w"], lp["o_b"], lp["ln2_g"], lp["ln2_b"]]
    flat_inputs += [params["pool_w"], params["pool_b"],
                    params["cls_w_pad"], params["cls_b_pad"]]

    logits_pad = pl.pallas_call(
        functools.partial(_model_kernel, B=B, S=S, n_layers=len(params["layers"])),
        out_shape=jax.ShapeDtypeStruct((B, CLS_PAD), F32),
        in_specs=[VMEM_SPEC] * len(flat_inputs),
        out_specs=VMEM_SPEC,
    )(*flat_inputs)
    return logits_pad[:, :N_CLASSES]


if __name__ == "__main__":
    key = jax.random.PRNGKey(0)
    k_param, k_ids = jax.random.split(key)

    params = init_params(k_param)

    B, S = 2, 8
    input_ids = jax.random.randint(k_ids, (B, S), 0, VOCAB, dtype=jnp.int32)
    attention_mask = jnp.array(
        [[1, 1, 1, 1, 1, 1, 1, 1],
         [1, 1, 1, 1, 1, 0, 0, 0]], dtype=jnp.int32)

    logits = jax.jit(sentiment_classifier_forward)(params, input_ids, attention_mask)
    jax.block_until_ready(logits)
    assert logits.shape == (B, N_CLASSES) and logits.dtype == jnp.float32
    assert bool(jnp.all(jnp.isfinite(logits)))
    print("KERNEL_OK")
</pallas_src>

<mosaic_0001>
module attributes {stable_mosaic.version = 11 : i64} {
  func.func @_model_kernel(%arg0: memref<16x1xi32, #tpu.memory_space<vmem>>, %arg1: memref<2x8xi32, #tpu.memory_space<vmem>>, %arg2: memref<128x32xf32, #tpu.memory_space<vmem>>, %arg3: memref<16x32xf32, #tpu.memory_space<vmem>>, %arg4: memref<1x32xf32, #tpu.memory_space<vmem>>, %arg5: memref<1x32xf32, #tpu.memory_space<vmem>>, %arg6: memref<32x96xf32, #tpu.memory_space<vmem>>, %arg7: memref<1x96xf32, #tpu.memory_space<vmem>>, %arg8: memref<32x32xf32, #tpu.memory_space<vmem>>, %arg9: memref<1x32xf32, #tpu.memory_space<vmem>>, %arg10: memref<1x32xf32, #tpu.memory_space<vmem>>, %arg11: memref<1x32xf32, #tpu.memory_space<vmem>>, %arg12: memref<32x64xf32, #tpu.memory_space<vmem>>, %arg13: memref<1x64xf32, #tpu.memory_space<vmem>>, %arg14: memref<64x32xf32, #tpu.memory_space<vmem>>, %arg15: memref<1x32xf32, #tpu.memory_space<vmem>>, %arg16: memref<1x32xf32, #tpu.memory_space<vmem>>, %arg17: memref<1x32xf32, #tpu.memory_space<vmem>>, %arg18: memref<32x96xf32, #tpu.memory_space<vmem>>, %arg19: memref<1x96xf32, #tpu.memory_space<vmem>>, %arg20: memref<32x32xf32, #tpu.memory_space<vmem>>, %arg21: memref<1x32xf32, #tpu.memory_space<vmem>>, %arg22: memref<1x32xf32, #tpu.memory_space<vmem>>, %arg23: memref<1x32xf32, #tpu.memory_space<vmem>>, %arg24: memref<32x64xf32, #tpu.memory_space<vmem>>, %arg25: memref<1x64xf32, #tpu.memory_space<vmem>>, %arg26: memref<64x32xf32, #tpu.memory_space<vmem>>, %arg27: memref<1x32xf32, #tpu.memory_space<vmem>>, %arg28: memref<1x32xf32, #tpu.memory_space<vmem>>, %arg29: memref<1x32xf32, #tpu.memory_space<vmem>>, %arg30: memref<32x32xf32, #tpu.memory_space<vmem>>, %arg31: memref<1x32xf32, #tpu.memory_space<vmem>>, %arg32: memref<32x128xf32, #tpu.memory_space<vmem>>, %arg33: memref<1x128xf32, #tpu.memory_space<vmem>>, %arg34: memref<2x128xf32, #tpu.memory_space<vmem>>) attributes {dimension_semantics = [], scalar_prefetch = 0 : i64, scratch_operands = 0 : i64, tpu.core_type = #tpu.core_type<tc>} {
    %c0 = arith.constant 0 : index
    %c0_0 = arith.constant 0 : index
    %0 = vector.load %arg0[%c0, %c0_0] : memref<16x1xi32, #tpu.memory_space<vmem>>, vector<16x1xi32>
    %1 = tpu.iota {dimensions = array<i32: 1>} : vector<16x128xi32>
    %2 = vector.broadcast %0 : vector<16x1xi32> to vector<16x128xi32>
    %3 = arith.cmpi eq, %2, %1 : vector<16x128xi32>
    %4 = arith.extui %3 : vector<16x128xi1> to vector<16x128xi32>
    %5 = arith.sitofp %4 : vector<16x128xi32> to vector<16x128xf32>
    %c0_1 = arith.constant 0 : index
    %c0_2 = arith.constant 0 : index
    %6 = vector.load %arg2[%c0_1, %c0_2] : memref<128x32xf32, #tpu.memory_space<vmem>>, vector<128x32xf32>
    %cst = arith.constant dense<0.000000e+00> : vector<16x32xf32>
    %7 = tpu.matmul %5, %6, %cst {dimension_numbers = #tpu.dot_dimension_numbers<[1], [0], [0], [1], [0, 0, 1, 1], [], []>} : vector<16x128xf32>, vector<128x32xf32>, vector<16x32xf32> -> vector<16x32xf32>
    %c0_3 = arith.constant 0 : index
    %c0_4 = arith.constant 0 : index
    %8 = vector.load %arg3[%c0_3, %c0_4] : memref<16x32xf32, #tpu.memory_space<vmem>>, vector<16x32xf32>
    %9 = vector.extract_strided_slice %8 {offsets = [0, 0], sizes = [8, 32], strides = [1, 1]} : vector<16x32xf32> to vector<8x32xf32>
    %10 = tpu.concatenate %9, %9 in 0 : vector<8x32xf32>, vector<8x32xf32> -> vector<16x32xf32>
    %11 = arith.addf %7, %10 : vector<16x32xf32>
    %c0_5 = arith.constant 0 : index
    %c0_6 = arith.constant 0 : index
    %12 = vector.load %arg4[%c0_5, %c0_6] : memref<1x32xf32, #tpu.memory_space<vmem>>, vector<1x32xf32>
    %c0_7 = arith.constant 0 : index
    %c0_8 = arith.constant 0 : index
    %13 = vector.load %arg5[%c0_7, %c0_8] : memref<1x32xf32, #tpu.memory_space<vmem>>, vector<1x32xf32>
    %cst_9 = arith.constant dense<0.000000e+00> : vector<16xf32>
    %14 = vector.multi_reduction <add>, %11, %cst_9 [1] : vector<16x32xf32> to vector<16xf32>
    %15 = vector.shape_cast %14 : vector<16xf32> to vector<16x1xf32>
    %cst_10 = arith.constant 3.200000e+01 : f32
    %16 = vector.broadcast %cst_10 : f32 to vector<16x1xf32>
    %17 = arith.divf %15, %16 : vector<16x1xf32>
    %18 = vector.broadcast %17 : vector<16x1xf32> to vector<16x32xf32>
    %19 = arith.subf %11, %18 : vector<16x32xf32>
    %20 = arith.mulf %19, %19 : vector<16x32xf32>
    %cst_11 = arith.constant dense<0.000000e+00> : vector<16xf32>
    %21 = vector.multi_reduction <add>, %20, %cst_11 [1] : vector<16x32xf32> to vector<16xf32>
    %22 = vector.shape_cast %21 : vector<16xf32> to vector<16x1xf32>
    %cst_12 = arith.constant 3.200000e+01 : f32
    %23 = vector.broadcast %cst_12 : f32 to vector<16x1xf32>
    %24 = arith.divf %22, %23 : vector<16x1xf32>
    %cst_13 = arith.constant 9.99999996E-13 : f32
    %25 = vector.broadcast %cst_13 : f32 to vector<16x1xf32>
    %26 = arith.addf %24, %25 : vector<16x1xf32>
    %27 = math.rsqrt %26 : vector<16x1xf32>
    %28 = vector.broadcast %27 : vector<16x1xf32> to vector<16x32xf32>
    %29 = arith.mulf %19, %28 : vector<16x32xf32>
    %30 = vector.broadcast %12 : vector<1x32xf32> to vector<16x32xf32>
    %31 = arith.mulf %29, %30 : vector<16x32xf32>
    %32 = vector.broadcast %13 : vector<1x32xf32> to vector<16x32xf32>
    %33 = arith.addf %31, %32 : vector<16x32xf32>
    %c0_14 = arith.constant 0 : index
    %c0_15 = arith.constant 0 : index
    %34 = vector.load %arg1[%c0_14, %c0_15] : memref<2x8xi32, #tpu.memory_space<vmem>>, vector<2x8xi32>
    %35 = arith.sitofp %34 : vector<2x8xi32> to vector<2x8xf32>
    %cst_16 = arith.constant 1.000000e+00 : f32
    %36 = vector.broadcast %cst_16 : f32 to vector<2x8xf32>
    %37 = arith.subf %35, %36 : vector<2x8xf32>
    %cst_17 = arith.constant 1.000000e+09 : f32
    %38 = vector.broadcast %cst_17 : f32 to vector<2x8xf32>
    %39 = arith.mulf %37, %38 : vector<2x8xf32>
    %c0_18 = arith.constant 0 : index
    %c0_19 = arith.constant 0 : index
    %40 = vector.load %arg6[%c0_18, %c0_19] : memref<32x96xf32, #tpu.memory_space<vmem>>, vector<32x96xf32>
    %cst_20 = arith.constant dense<0.000000e+00> : vector<16x96xf32>
    %41 = tpu.matmul %33, %40, %cst_20 {dimension_numbers = #tpu.dot_dimension_numbers<[1], [0], [0], [1], [0, 0, 1, 1], [], []>} : vector<16x32xf32>, vector<32x96xf32>, vector<16x96xf32> -> vector<16x96xf32>
    %c0_21 = arith.constant 0 : index
    %c0_22 = arith.constant 0 : index
    %42 = vector.load %arg7[%c0_21, %c0_22] : memref<1x96xf32, #tpu.memory_space<vmem>>, vector<1x96xf32>
    %43 = vector.broadcast %42 : vector<1x96xf32> to vector<16x96xf32>
    %44 = arith.addf %41, %43 : vector<16x96xf32>
    %45 = vector.extract_strided_slice %44 {offsets = [0, 0], sizes = [16, 32], strides = [1, 1]} : vector<16x96xf32> to vector<16x32xf32>
    %46 = vector.extract_strided_slice %44 {offsets = [0, 32], sizes = [16, 32], strides = [1, 1]} : vector<16x96xf32> to vector<16x32xf32>
    %47 = vector.extract_strided_slice %44 {offsets = [0, 64], sizes = [16, 32], strides = [1, 1]} : vector<16x96xf32> to vector<16x32xf32>
    %48 = vector.extract_strided_slice %45 {offsets = [0, 0], sizes = [8, 32], strides = [1, 1]} : vector<16x32xf32> to vector<8x32xf32>
    %49 = vector.extract_strided_slice %46 {offsets = [0, 0], sizes = [8, 32], strides = [1, 1]} : vector<16x32xf32> to vector<8x32xf32>
    %50 = vector.extract_strided_slice %47 {offsets = [0, 0], sizes = [8, 32], strides = [1, 1]} : vector<16x32xf32> to vector<8x32xf32>
    %51 = vector.extract_strided_slice %39 {offsets = [0, 0], sizes = [1, 8], strides = [1, 1]} : vector<2x8xf32> to vector<1x8xf32>
    %52 = vector.extract_strided_slice %48 {offsets = [0, 0], sizes = [8, 8], strides = [1, 1]} : vector<8x32xf32> to vector<8x8xf32>
    %53 = vector.extract_strided_slice %49 {offsets = [0, 0], sizes = [8, 8], strides = [1, 1]} : vector<8x32xf32> to vector<8x8xf32>
    %54 = vector.extract_strided_slice %50 {offsets = [0, 0], sizes = [8, 8], strides = [1, 1]} : vector<8x32xf32> to vector<8x8xf32>
    %cst_23 = arith.constant dense<0.000000e+00> : vector<8x8xf32>
    %55 = tpu.matmul %52, %53, %cst_23 {dimension_numbers = #tpu.dot_dimension_numbers<[1], [1], [0], [0], [0, 0, 1, 0], [], []>} : vector<8x8xf32>, vector<8x8xf32>, vector<8x8xf32> -> vector<8x8xf32>
    %cst_24 = arith.constant 0.353553385 : f32
    %56 = vector.broadcast %cst_24 : f32 to vector<8x8xf32>
    %57 = arith.mulf %55, %56 : vector<8x8xf32>
    %58 = vector.broadcast %51 : vector<1x8xf32> to vector<8x8xf32>
    %59 = arith.addf %57, %58 : vector<8x8xf32>
    %cst_25 = arith.constant dense<0xFF800000> : vector<8xf32>
    %60 = vector.multi_reduction <maximumf>, %59, %cst_25 [1] : vector<8x8xf32> to vector<8xf32>
    %61 = vector.shape_cast %60 : vector<8xf32> to vector<8x1xf32>
    %62 = vector.broadcast %61 : vector<8x1xf32> to vector<8x8xf32>
    %63 = arith.subf %59, %62 : vector<8x8xf32>
    %64 = math.exp %63 : vector<8x8xf32>
    %cst_26 = arith.constant dense<0.000000e+00> : vector<8xf32>
    %65 = vector.multi_reduction <add>, %64, %cst_26 [1] : vector<8x8xf32> to vector<8xf32>
    %66 = vector.shape_cast %65 : vector<8xf32> to vector<8x1xf32>
    %67 = tpu.reciprocal %66 {approx = true} : vector<8x1xf32> -> vector<8x1xf32>
    %68 = vector.broadcast %67 : vector<8x1xf32> to vector<8x8xf32>
    %69 = arith.mulf %64, %68 : vector<8x8xf32>
    %cst_27 = arith.constant dense<0.000000e+00> : vector<8x8xf32>
    %70 = tpu.matmul %69, %54, %cst_27 {dimension_numbers = #tpu.dot_dimension_numbers<[1], [0], [0], [1], [0, 0, 1, 1], [], []>} : vector<8x8xf32>, vector<8x8xf32>, vector<8x8xf32> -> vector<8x8xf32>
    %71 = vector.extract_strided_slice %48 {offsets = [0, 8], sizes = [8, 8], strides = [1, 1]} : vector<8x32xf32> to vector<8x8xf32>
    %72 = vector.extract_strided_slice %49 {offsets = [0, 8], sizes = [8, 8], strides = [1, 1]} : vector<8x32xf32> to vector<8x8xf32>
    %73 = vector.extract_strided_slice %50 {offsets = [0, 8], sizes = [8, 8], strides = [1, 1]} : vector<8x32xf32> to vector<8x8xf32>
    %cst_28 = arith.constant dense<0.000000e+00> : vector<8x8xf32>
    %74 = tpu.matmul %71, %72, %cst_28 {dimension_numbers = #tpu.dot_dimension_numbers<[1], [1], [0], [0], [0, 0, 1, 0], [], []>} : vector<8x8xf32>, vector<8x8xf32>, vector<8x8xf32> -> vector<8x8xf32>
    %cst_29 = arith.constant 0.353553385 : f32
    %75 = vector.broadcast %cst_29 : f32 to vector<8x8xf32>
    %76 = arith.mulf %74, %75 : vector<8x8xf32>
    %77 = vector.broadcast %51 : vector<1x8xf32> to vector<8x8xf32>
    %78 = arith.addf %76, %77 : vector<8x8xf32>
    %cst_30 = arith.constant dense<0xFF800000> : vector<8xf32>
    %79 = vector.multi_reduction <maximumf>, %78, %cst_30 [1] : vector<8x8xf32> to vector<8xf32>
    %80 = vector.shape_cast %79 : vector<8xf32> to vector<8x1xf32>
    %81 = vector.broadcast %80 : vector<8x1xf32> to vector<8x8xf32>
    %82 = arith.subf %78, %81 : vector<8x8xf32>
    %83 = math.exp %82 : vector<8x8xf32>
    %cst_31 = arith.constant dense<0.000000e+00> : vector<8xf32>
    %84 = vector.multi_reduction <add>, %83, %cst_31 [1] : vector<8x8xf32> to vector<8xf32>
    %85 = vector.shape_cast %84 : vector<8xf32> to vector<8x1xf32>
    %86 = tpu.reciprocal %85 {approx = true} : vector<8x1xf32> -> vector<8x1xf32>
    %87 = vector.broadcast %86 : vector<8x1xf32> to vector<8x8xf32>
    %88 = arith.mulf %83, %87 : vector<8x8xf32>
    %cst_32 = arith.constant dense<0.000000e+00> : vector<8x8xf32>
    %89 = tpu.matmul %88, %73, %cst_32 {dimension_numbers = #tpu.dot_dimension_numbers<[1], [0], [0], [1], [0, 0, 1, 1], [], []>} : vector<8x8xf32>, vector<8x8xf32>, vector<8x8xf32> -> vector<8x8xf32>
    %90 = vector.extract_strided_slice %48 {offsets = [0, 16], sizes = [8, 8], strides = [1, 1]} : vector<8x32xf32> to vector<8x8xf32>
    %91 = vector.extract_strided_slice %49 {offsets = [0, 16], sizes = [8, 8], strides = [1, 1]} : vector<8x32xf32> to vector<8x8xf32>
    %92 = vector.extract_strided_slice %50 {offsets = [0, 16], sizes = [8, 8], strides = [1, 1]} : vector<8x32xf32> to vector<8x8xf32>
    %cst_33 = arith.constant dense<0.000000e+00> : vector<8x8xf32>
    %93 = tpu.matmul %90, %91, %cst_33 {dimension_numbers = #tpu.dot_dimension_numbers<[1], [1], [0], [0], [0, 0, 1, 0], [], []>} : vector<8x8xf32>, vector<8x8xf32>, vector<8x8xf32> -> vector<8x8xf32>
    %cst_34 = arith.constant 0.353553385 : f32
    %94 = vector.broadcast %cst_34 : f32 to vector<8x8xf32>
    %95 = arith.mulf %93, %94 : vector<8x8xf32>
    %96 = vector.broadcast %51 : vector<1x8xf32> to vector<8x8xf32>
    %97 = arith.addf %95, %96 : vector<8x8xf32>
    %cst_35 = arith.constant dense<0xFF800000> : vector<8xf32>
    %98 = vector.multi_reduction <maximumf>, %97, %cst_35 [1] : vector<8x8xf32> to vector<8xf32>
    %99 = vector.shape_cast %98 : vector<8xf32> to vector<8x1xf32>
    %100 = vector.broadcast %99 : vector<8x1xf32> to vector<8x8xf32>
    %101 = arith.subf %97, %100 : vector<8x8xf32>
    %102 = math.exp %101 : vector<8x8xf32>
    %cst_36 = arith.constant dense<0.000000e+00> : vector<8xf32>
    %103 = vector.multi_reduction <add>, %102, %cst_36 [1] : vector<8x8xf32> to vector<8xf32>
    %104 = vector.shape_cast %103 : vector<8xf32> to vector<8x1xf32>
    %105 = tpu.reciprocal %104 {approx = true} : vector<8x1xf32> -> vector<8x1xf32>
    %106 = vector.broadcast %105 : vector<8x1xf32> to vector<8x8xf32>
    %107 = arith.mulf %102, %106 : vector<8x8xf32>
    %cst_37 = arith.constant dense<0.000000e+00> : vector<8x8xf32>
    %108 = tpu.matmul %107, %92, %cst_37 {dimension_numbers = #tpu.dot_dimension_numbers<[1], [0], [0], [1], [0, 0, 1, 1], [], []>} : vector<8x8xf32>, vector<8x8xf32>, vector<8x8xf32> -> vector<8x8xf32>
    %109 = vector.extract_strided_slice %48 {offsets = [0, 24], sizes = [8, 8], strides = [1, 1]} : vector<8x32xf32> to vector<8x8xf32>
    %110 = vector.extract_strided_slice %49 {offsets = [0, 24], sizes = [8, 8], strides = [1, 1]} : vector<8x32xf32> to vector<8x8xf32>
    %111 = vector.extract_strided_slice %50 {offsets = [0, 24], sizes = [8, 8], strides = [1, 1]} : vector<8x32xf32> to vector<8x8xf32>
    %cst_38 = arith.constant dense<0.000000e+00> : vector<8x8xf32>
    %112 = tpu.matmul %109, %110, %cst_38 {dimension_numbers = #tpu.dot_dimension_numbers<[1], [1], [0], [0], [0, 0, 1, 0], [], []>} : vector<8x8xf32>, vector<8x8xf32>, vector<8x8xf32> -> vector<8x8xf32>
    %cst_39 = arith.constant 0.353553385 : f32
    %113 = vector.broadcast %cst_39 : f32 to vector<8x8xf32>
    %114 = arith.mulf %112, %113 : vector<8x8xf32>
    %115 = vector.broadcast %51 : vector<1x8xf32> to vector<8x8xf32>
    %116 = arith.addf %114, %115 : vector<8x8xf32>
    %cst_40 = arith.constant dense<0xFF800000> : vector<8xf32>
    %117 = vector.multi_reduction <maximumf>, %116, %cst_40 [1] : vector<8x8xf32> to vector<8xf32>
    %118 = vector.shape_cast %117 : vector<8xf32> to vector<8x1xf32>
    %119 = vector.broadcast %118 : vector<8x1xf32> to vector<8x8xf32>
    %120 = arith.subf %116, %119 : vector<8x8xf32>
    %121 = math.exp %120 : vector<8x8xf32>
    %cst_41 = arith.constant dense<0.000000e+00> : vector<8xf32>
    %122 = vector.multi_reduction <add>, %121, %cst_41 [1] : vector<8x8xf32> to vector<8xf32>
    %123 = vector.shape_cast %122 : vector<8xf32> to vector<8x1xf32>
    %124 = tpu.reciprocal %123 {approx = true} : vector<8x1xf32> -> vector<8x1xf32>
    %125 = vector.broadcast %124 : vector<8x1xf32> to vector<8x8xf32>
    %126 = arith.mulf %121, %125 : vector<8x8xf32>
    %cst_42 = arith.constant dense<0.000000e+00> : vector<8x8xf32>
    %127 = tpu.matmul %126, %111, %cst_42 {dimension_numbers = #tpu.dot_dimension_numbers<[1], [0], [0], [1], [0, 0, 1, 1], [], []>} : vector<8x8xf32>, vector<8x8xf32>, vector<8x8xf32> -> vector<8x8xf32>
    %128 = tpu.concatenate %70, %89, %108, %127 in 1 : vector<8x8xf32>, vector<8x8xf32>, vector<8x8xf32>, vector<8x8xf32> -> vector<8x32xf32>
    %129 = vector.extract_strided_slice %45 {offsets = [8, 0], sizes = [8, 32], strides = [1, 1]} : vector<16x32xf32> to vector<8x32xf32>
    %130 = vector.extract_strided_slice %46 {offsets = [8, 0], sizes = [8, 32], strides = [1, 1]} : vector<16x32xf32> to vector<8x32xf32>
    %131 = vector.extract_strided_slice %47 {offsets = [8, 0], sizes = [8, 32], strides = [1, 1]} : vector<16x32xf32> to vector<8x32xf32>
    %132 = vector.extract_strided_slice %39 {offsets = [1, 0], sizes = [1, 8], strides = [1, 1]} : vector<2x8xf32> to vector<1x8xf32>
    %133 = vector.extract_strided_slice %129 {offsets = [0, 0], sizes = [8, 8], strides = [1, 1]} : vector<8x32xf32> to vector<8x8xf32>
    %134 = vector.extract_strided_slice %130 {offsets = [0, 0], sizes = [8, 8], strides = [1, 1]} : vector<8x32xf32> to vector<8x8xf32>
    %135 = vector.extract_strided_slice %131 {offsets = [0, 0], sizes = [8, 8], strides = [1, 1]} : vector<8x32xf32> to vector<8x8xf32>
    %cst_43 = arith.constant dense<0.000000e+00> : vector<8x8xf32>
    %136 = tpu.matmul %133, %134, %cst_43 {dimension_numbers = #tpu.dot_dimension_numbers<[1], [1], [0], [0], [0, 0, 1, 0], [], []>} : vector<8x8xf32>, vector<8x8xf32>, vector<8x8xf32> -> vector<8x8xf32>
    %cst_44 = arith.constant 0.353553385 : f32
    %137 = vector.broadcast %cst_44 : f32 to vector<8x8xf32>
    %138 = arith.mulf %136, %137 : vector<8x8xf32>
    %139 = vector.broadcast %132 : vector<1x8xf32> to vector<8x8xf32>
    %140 = arith.addf %138, %139 : vector<8x8xf32>
    %cst_45 = arith.constant dense<0xFF800000> : vector<8xf32>
    %141 = vector.multi_reduction <maximumf>, %140, %cst_45 [1] : vector<8x8xf32> to vector<8xf32>
    %142 = vector.shape_cast %141 : vector<8xf32> to vector<8x1xf32>
    %143 = vector.broadcast %142 : vector<8x1xf32> to vector<8x8xf32>
    %144 = arith.subf %140, %143 : vector<8x8xf32>
    %145 = math.exp %144 : vector<8x8xf32>
    %cst_46 = arith.constant dense<0.000000e+00> : vector<8xf32>
    %146 = vector.multi_reduction <add>, %145, %cst_46 [1] : vector<8x8xf32> to vector<8xf32>
    %147 = vector.shape_cast %146 : vector<8xf32> to vector<8x1xf32>
    %148 = tpu.reciprocal %147 {approx = true} : vector<8x1xf32> -> vector<8x1xf32>
    %149 = vector.broadcast %148 : vector<8x1xf32> to vector<8x8xf32>
    %150 = arith.mulf %145, %149 : vector<8x8xf32>
    %cst_47 = arith.constant dense<0.000000e+00> : vector<8x8xf32>
    %151 = tpu.matmul %150, %135, %cst_47 {dimension_numbers = #tpu.dot_dimension_numbers<[1], [0], [0], [1], [0, 0, 1, 1], [], []>} : vector<8x8xf32>, vector<8x8xf32>, vector<8x8xf32> -> vector<8x8xf32>
    %152 = vector.extract_strided_slice %129 {offsets = [0, 8], sizes = [8, 8], strides = [1, 1]} : vector<8x32xf32> to vector<8x8xf32>
    %153 = vector.extract_strided_slice %130 {offsets = [0, 8], sizes = [8, 8], strides = [1, 1]} : vector<8x32xf32> to vector<8x8xf32>
    %154 = vector.extract_strided_slice %131 {offsets = [0, 8], sizes = [8, 8], strides = [1, 1]} : vector<8x32xf32> to vector<8x8xf32>
    %cst_48 = arith.constant dense<0.000000e+00> : vector<8x8xf32>
    %155 = tpu.matmul %152, %153, %cst_48 {dimension_numbers = #tpu.dot_dimension_numbers<[1], [1], [0], [0], [0, 0, 1, 0], [], []>} : vector<8x8xf32>, vector<8x8xf32>, vector<8x8xf32> -> vector<8x8xf32>
    %cst_49 = arith.constant 0.353553385 : f32
    %156 = vector.broadcast %cst_49 : f32 to vector<8x8xf32>
    %157 = arith.mulf %155, %156 : vector<8x8xf32>
    %158 = vector.broadcast %132 : vector<1x8xf32> to vector<8x8xf32>
    %159 = arith.addf %157, %158 : vector<8x8xf32>
    %cst_50 = arith.constant dense<0xFF800000> : vector<8xf32>
    %160 = vector.multi_reduction <maximumf>, %159, %cst_50 [1] : vector<8x8xf32> to vector<8xf32>
    %161 = vector.shape_cast %160 : vector<8xf32> to vector<8x1xf32>
    %162 = vector.broadcast %161 : vector<8x1xf32> to vector<8x8xf32>
    %163 = arith.subf %159, %162 : vector<8x8xf32>
    %164 = math.exp %163 : vector<8x8xf32>
    %cst_51 = arith.constant dense<0.000000e+00> : vector<8xf32>
    %165 = vector.multi_reduction <add>, %164, %cst_51 [1] : vector<8x8xf32> to vector<8xf32>
    %166 = vector.shape_cast %165 : vector<8xf32> to vector<8x1xf32>
    %167 = tpu.reciprocal %166 {approx = true} : vector<8x1xf32> -> vector<8x1xf32>
    %168 = vector.broadcast %167 : vector<8x1xf32> to vector<8x8xf32>
    %169 = arith.mulf %164, %168 : vector<8x8xf32>
    %cst_52 = arith.constant dense<0.000000e+00> : vector<8x8xf32>
    %170 = tpu.matmul %169, %154, %cst_52 {dimension_numbers = #tpu.dot_dimension_numbers<[1], [0], [0], [1], [0, 0, 1, 1], [], []>} : vector<8x8xf32>, vector<8x8xf32>, vector<8x8xf32> -> vector<8x8xf32>
    %171 = vector.extract_strided_slice %129 {offsets = [0, 16], sizes = [8, 8], strides = [1, 1]} : vector<8x32xf32> to vector<8x8xf32>
    %172 = vector.extract_strided_slice %130 {offsets = [0, 16], sizes = [8, 8], strides = [1, 1]} : vector<8x32xf32> to vector<8x8xf32>
    %173 = vector.extract_strided_slice %131 {offsets = [0, 16], sizes = [8, 8], strides = [1, 1]} : vector<8x32xf32> to vector<8x8xf32>
    %cst_53 = arith.constant dense<0.000000e+00> : vector<8x8xf32>
    %174 = tpu.matmul %171, %172, %cst_53 {dimension_numbers = #tpu.dot_dimension_numbers<[1], [1], [0], [0], [0, 0, 1, 0], [], []>} : vector<8x8xf32>, vector<8x8xf32>, vector<8x8xf32> -> vector<8x8xf32>
    %cst_54 = arith.constant 0.353553385 : f32
    %175 = vector.broadcast %cst_54 : f32 to vector<8x8xf32>
    %176 = arith.mulf %174, %175 : vector<8x8xf32>
    %177 = vector.broadcast %132 : vector<1x8xf32> to vector<8x8xf32>
    %178 = arith.addf %176, %177 : vector<8x8xf32>
    %cst_55 = arith.constant dense<0xFF800000> : vector<8xf32>
    %179 = vector.multi_reduction <maximumf>, %178, %cst_55 [1] : vector<8x8xf32> to vector<8xf32>
    %180 = vector.shape_cast %179 : vector<8xf32> to vector<8x1xf32>
    %181 = vector.broadcast %180 : vector<8x1xf32> to vector<8x8xf32>
    %182 = arith.subf %178, %181 : vector<8x8xf32>
    %183 = math.exp %182 : vector<8x8xf32>
    %cst_56 = arith.constant dense<0.000000e+00> : vector<8xf32>
    %184 = vector.multi_reduction <add>, %183, %cst_56 [1] : vector<8x8xf32> to vector<8xf32>
    %185 = vector.shape_cast %184 : vector<8xf32> to vector<8x1xf32>
    %186 = tpu.reciprocal %185 {approx = true} : vector<8x1xf32> -> vector<8x1xf32>
    %187 = vector.broadcast %186 : vector<8x1xf32> to vector<8x8xf32>
    %188 = arith.mulf %183, %187 : vector<8x8xf32>
    %cst_57 = arith.constant dense<0.000000e+00> : vector<8x8xf32>
    %189 = tpu.matmul %188, %173, %cst_57 {dimension_numbers = #tpu.dot_dimension_numbers<[1], [0], [0], [1], [0, 0, 1, 1], [], []>} : vector<8x8xf32>, vector<8x8xf32>, vector<8x8xf32> -> vector<8x8xf32>
    %190 = vector.extract_strided_slice %129 {offsets = [0, 24], sizes = [8, 8], strides = [1, 1]} : vector<8x32xf32> to vector<8x8xf32>
    %191 = vector.extract_strided_slice %130 {offsets = [0, 24], sizes = [8, 8], strides = [1, 1]} : vector<8x32xf32> to vector<8x8xf32>
    %192 = vector.extract_strided_slice %131 {offsets = [0, 24], sizes = [8, 8], strides = [1, 1]} : vector<8x32xf32> to vector<8x8xf32>
    %cst_58 = arith.constant dense<0.000000e+00> : vector<8x8xf32>
    %193 = tpu.matmul %190, %191, %cst_58 {dimension_numbers = #tpu.dot_dimension_numbers<[1], [1], [0], [0], [0, 0, 1, 0], [], []>} : vector<8x8xf32>, vector<8x8xf32>, vector<8x8xf32> -> vector<8x8xf32>
    %cst_59 = arith.constant 0.353553385 : f32
    %194 = vector.broadcast %cst_59 : f32 to vector<8x8xf32>
    %195 = arith.mulf %193, %194 : vector<8x8xf32>
    %196 = vector.broadcast %132 : vector<1x8xf32> to vector<8x8xf32>
    %197 = arith.addf %195, %196 : vector<8x8xf32>
    %cst_60 = arith.constant dense<0xFF800000> : vector<8xf32>
    %198 = vector.multi_reduction <maximumf>, %197, %cst_60 [1] : vector<8x8xf32> to vector<8xf32>
    %199 = vector.shape_cast %198 : vector<8xf32> to vector<8x1xf32>
    %200 = vector.broadcast %199 : vector<8x1xf32> to vector<8x8xf32>
    %201 = arith.subf %197, %200 : vector<8x8xf32>
    %202 = math.exp %201 : vector<8x8xf32>
    %cst_61 = arith.constant dense<0.000000e+00> : vector<8xf32>
    %203 = vector.multi_reduction <add>, %202, %cst_61 [1] : vector<8x8xf32> to vector<8xf32>
    %204 = vector.shape_cast %203 : vector<8xf32> to vector<8x1xf32>
    %205 = tpu.reciprocal %204 {approx = true} : vector<8x1xf32> -> vector<8x1xf32>
    %206 = vector.broadcast %205 : vector<8x1xf32> to vector<8x8xf32>
    %207 = arith.mulf %202, %206 : vector<8x8xf32>
    %cst_62 = arith.constant dense<0.000000e+00> : vector<8x8xf32>
    %208 = tpu.matmul %207, %192, %cst_62 {dimension_numbers = #tpu.dot_dimension_numbers<[1], [0], [0], [1], [0, 0, 1, 1], [], []>} : vector<8x8xf32>, vector<8x8xf32>, vector<8x8xf32> -> vector<8x8xf32>
    %209 = tpu.concatenate %151, %170, %189, %208 in 1 : vector<8x8xf32>, vector<8x8xf32>, vector<8x8xf32>, vector<8x8xf32> -> vector<8x32xf32>
    %210 = tpu.concatenate %128, %209 in 0 : vector<8x32xf32>, vector<8x32xf32> -> vector<16x32xf32>
    %c0_63 = arith.constant 0 : index
    %c0_64 = arith.constant 0 : index
    %211 = vector.load %arg8[%c0_63, %c0_64] : memref<32x32xf32, #tpu.memory_space<vmem>>, vector<32x32xf32>
    %cst_65 = arith.constant dense<0.000000e+00> : vector<16x32xf32>
    %212 = tpu.matmul %210, %211, %cst_65 {dimension_numbers = #tpu.dot_dimension_numbers<[1], [0], [0], [1], [0, 0, 1, 1], [], []>} : vector<16x32xf32>, vector<32x32xf32>, vector<16x32xf32> -> vector<16x32xf32>
    %c0_66 = arith.constant 0 : index
    %c0_67 = arith.constant 0 : index
    %213 = vector.load %arg9[%c0_66, %c0_67] : memref<1x32xf32, #tpu.memory_space<vmem>>, vector<1x32xf32>
    %214 = vector.broadcast %213 : vector<1x32xf32> to vector<16x32xf32>
    %215 = arith.addf %212, %214 : vector<16x32xf32>
    %216 = arith.addf %215, %33 : vector<16x32xf32>
    %c0_68 = arith.constant 0 : index
    %c0_69 = arith.constant 0 : index
    %217 = vector.load %arg10[%c0_68, %c0_69] : memref<1x32xf32, #tpu.memory_space<vmem>>, vector<1x32xf32>
    %c0_70 = arith.constant 0 : index
    %c0_71 = arith.constant 0 : index
    %218 = vector.load %arg11[%c0_70, %c0_71] : memref<1x32xf32, #tpu.memory_space<vmem>>, vector<1x32xf32>
    %cst_72 = arith.constant dense<0.000000e+00> : vector<16xf32>
    %219 = vector.multi_reduction <add>, %216, %cst_72 [1] : vector<16x32xf32> to vector<16xf32>
    %220 = vector.shape_cast %219 : vector<16xf32> to vector<16x1xf32>
    %cst_73 = arith.constant 3.200000e+01 : f32
    %221 = vector.broadcast %cst_73 : f32 to vector<16x1xf32>
    %222 = arith.divf %220, %221 : vector<16x1xf32>
    %223 = vector.broadcast %222 : vector<16x1xf32> to vector<16x32xf32>
    %224 = arith.subf %216, %223 : vector<16x32xf32>
    %225 = arith.mulf %224, %224 : vector<16x32xf32>
    %cst_74 = arith.constant dense<0.000000e+00> : vector<16xf32>
    %226 = vector.multi_reduction <add>, %225, %cst_74 [1] : vector<16x32xf32> to vector<16xf32>
    %227 = vector.shape_cast %226 : vector<16xf32> to vector<16x1xf32>
    %cst_75 = arith.constant 3.200000e+01 : f32
    %228 = vector.broadcast %cst_75 : f32 to vector<16x1xf32>
    %229 = arith.divf %227, %228 : vector<16x1xf32>
    %cst_76 = arith.constant 9.99999996E-13 : f32
    %230 = vector.broadcast %cst_76 : f32 to vector<16x1xf32>
    %231 = arith.addf %229, %230 : vector<16x1xf32>
    %232 = math.rsqrt %231 : vector<16x1xf32>
    %233 = vector.broadcast %232 : vector<16x1xf32> to vector<16x32xf32>
    %234 = arith.mulf %224, %233 : vector<16x32xf32>
    %235 = vector.broadcast %217 : vector<1x32xf32> to vector<16x32xf32>
    %236 = arith.mulf %234, %235 : vector<16x32xf32>
    %237 = vector.broadcast %218 : vector<1x32xf32> to vector<16x32xf32>
    %238 = arith.addf %236, %237 : vector<16x32xf32>
    %c0_77 = arith.constant 0 : index
    %c0_78 = arith.constant 0 : index
    %239 = vector.load %arg12[%c0_77, %c0_78] : memref<32x64xf32, #tpu.memory_space<vmem>>, vector<32x64xf32>
    %cst_79 = arith.constant dense<0.000000e+00> : vector<16x64xf32>
    %240 = tpu.matmul %238, %239, %cst_79 {dimension_numbers = #tpu.dot_dimension_numbers<[1], [0], [0], [1], [0, 0, 1, 1], [], []>} : vector<16x32xf32>, vector<32x64xf32>, vector<16x64xf32> -> vector<16x64xf32>
    %c0_80 = arith.constant 0 : index
    %c0_81 = arith.constant 0 : index
    %241 = vector.load %arg13[%c0_80, %c0_81] : memref<1x64xf32, #tpu.memory_space<vmem>>, vector<1x64xf32>
    %242 = vector.broadcast %241 : vector<1x64xf32> to vector<16x64xf32>
    %243 = arith.addf %240, %242 : vector<16x64xf32>
    %cst_82 = arith.constant 5.000000e-01 : f32
    %244 = vector.broadcast %cst_82 : f32 to vector<16x64xf32>
    %245 = arith.mulf %244, %243 : vector<16x64xf32>
    %cst_83 = arith.constant 4.471500e-02 : f32
    %246 = vector.broadcast %cst_83 : f32 to vector<16x64xf32>
    %247 = arith.mulf %246, %243 : vector<16x64xf32>
    %248 = arith.mulf %247, %243 : vector<16x64xf32>
    %249 = arith.mulf %248, %243 : vector<16x64xf32>
    %250 = arith.addf %243, %249 : vector<16x64xf32>
    %cst_84 = arith.constant 0.797884583 : f32
    %251 = vector.broadcast %cst_84 : f32 to vector<16x64xf32>
    %252 = arith.mulf %251, %250 : vector<16x64xf32>
    %253 = math.tanh %252 : vector<16x64xf32>
    %cst_85 = arith.constant 1.000000e+00 : f32
    %254 = vector.broadcast %cst_85 : f32 to vector<16x64xf32>
    %255 = arith.addf %254, %253 : vector<16x64xf32>
    %256 = arith.mulf %245, %255 : vector<16x64xf32>
    %c0_86 = arith.constant 0 : index
    %c0_87 = arith.constant 0 : index
    %257 = vector.load %arg14[%c0_86, %c0_87] : memref<64x32xf32, #tpu.memory_space<vmem>>, vector<64x32xf32>
    %cst_88 = arith.constant dense<0.000000e+00> : vector<16x32xf32>
    %258 = tpu.matmul %256, %257, %cst_88 {dimension_numbers = #tpu.dot_dimension_numbers<[1], [0], [0], [1], [0, 0, 1, 1], [], []>} : vector<16x64xf32>, vector<64x32xf32>, vector<16x32xf32> -> vector<16x32xf32>
    %c0_89 = arith.constant 0 : index
    %c0_90 = arith.constant 0 : index
    %259 = vector.load %arg15[%c0_89, %c0_90] : memref<1x32xf32, #tpu.memory_space<vmem>>, vector<1x32xf32>
    %260 = vector.broadcast %259 : vector<1x32xf32> to vector<16x32xf32>
    %261 = arith.addf %258, %260 : vector<16x32xf32>
    %262 = arith.addf %261, %238 : vector<16x32xf32>
    %c0_91 = arith.constant 0 : index
    %c0_92 = arith.constant 0 : index
    %263 = vector.load %arg16[%c0_91, %c0_92] : memref<1x32xf32, #tpu.memory_space<vmem>>, vector<1x32xf32>
    %c0_93 = arith.constant 0 : index
    %c0_94 = arith.constant 0 : index
    %264 = vector.load %arg17[%c0_93, %c0_94] : memref<1x32xf32, #tpu.memory_space<vmem>>, vector<1x32xf32>
    %cst_95 = arith.constant dense<0.000000e+00> : vector<16xf32>
    %265 = vector.multi_reduction <add>, %262, %cst_95 [1] : vector<16x32xf32> to vector<16xf32>
    %266 = vector.shape_cast %265 : vector<16xf32> to vector<16x1xf32>
    %cst_96 = arith.constant 3.200000e+01 : f32
    %267 = vector.broadcast %cst_96 : f32 to vector<16x1xf32>
    %268 = arith.divf %266, %267 : vector<16x1xf32>
    %269 = vector.broadcast %268 : vector<16x1xf32> to vector<16x32xf32>
    %270 = arith.subf %262, %269 : vector<16x32xf32>
    %271 = arith.mulf %270, %270 : vector<16x32xf32>
    %cst_97 = arith.constant dense<0.000000e+00> : vector<16xf32>
    %272 = vector.multi_reduction <add>, %271, %cst_97 [1] : vector<16x32xf32> to vector<16xf32>
    %273 = vector.shape_cast %272 : vector<16xf32> to vector<16x1xf32>
    %cst_98 = arith.constant 3.200000e+01 : f32
    %274 = vector.broadcast %cst_98 : f32 to vector<16x1xf32>
    %275 = arith.divf %273, %274 : vector<16x1xf32>
    %cst_99 = arith.constant 9.99999996E-13 : f32
    %276 = vector.broadcast %cst_99 : f32 to vector<16x1xf32>
    %277 = arith.addf %275, %276 : vector<16x1xf32>
    %278 = math.rsqrt %277 : vector<16x1xf32>
    %279 = vector.broadcast %278 : vector<16x1xf32> to vector<16x32xf32>
    %280 = arith.mulf %270, %279 : vector<16x32xf32>
    %281 = vector.broadcast %263 : vector<1x32xf32> to vector<16x32xf32>
    %282 = arith.mulf %280, %281 : vector<16x32xf32>
    %283 = vector.broadcast %264 : vector<1x32xf32> to vector<16x32xf32>
    %284 = arith.addf %282, %283 : vector<16x32xf32>
    %c0_100 = arith.constant 0 : index
    %c0_101 = arith.constant 0 : index
    %285 = vector.load %arg18[%c0_100, %c0_101] : memref<32x96xf32, #tpu.memory_space<vmem>>, vector<32x96xf32>
    %cst_102 = arith.constant dense<0.000000e+00> : vector<16x96xf32>
    %286 = tpu.matmul %284, %285, %cst_102 {dimension_numbers = #tpu.dot_dimension_numbers<[1], [0], [0], [1], [0, 0, 1, 1], [], []>} : vector<16x32xf32>, vector<32x96xf32>, vector<16x96xf32> -> vector<16x96xf32>
    %c0_103 = arith.constant 0 : index
    %c0_104 = arith.constant 0 : index
    %287 = vector.load %arg19[%c0_103, %c0_104] : memref<1x96xf32, #tpu.memory_space<vmem>>, vector<1x96xf32>
    %288 = vector.broadcast %287 : vector<1x96xf32> to vector<16x96xf32>
    %289 = arith.addf %286, %288 : vector<16x96xf32>
    %290 = vector.extract_strided_slice %289 {offsets = [0, 0], sizes = [16, 32], strides = [1, 1]} : vector<16x96xf32> to vector<16x32xf32>
    %291 = vector.extract_strided_slice %289 {offsets = [0, 32], sizes = [16, 32], strides = [1, 1]} : vector<16x96xf32> to vector<16x32xf32>
    %292 = vector.extract_strided_slice %289 {offsets = [0, 64], sizes = [16, 32], strides = [1, 1]} : vector<16x96xf32> to vector<16x32xf32>
    %293 = vector.extract_strided_slice %290 {offsets = [0, 0], sizes = [8, 32], strides = [1, 1]} : vector<16x32xf32> to vector<8x32xf32>
    %294 = vector.extract_strided_slice %291 {offsets = [0, 0], sizes = [8, 32], strides = [1, 1]} : vector<16x32xf32> to vector<8x32xf32>
    %295 = vector.extract_strided_slice %292 {offsets = [0, 0], sizes = [8, 32], strides = [1, 1]} : vector<16x32xf32> to vector<8x32xf32>
    %296 = vector.extract_strided_slice %39 {offsets = [0, 0], sizes = [1, 8], strides = [1, 1]} : vector<2x8xf32> to vector<1x8xf32>
    %297 = vector.extract_strided_slice %293 {offsets = [0, 0], sizes = [8, 8], strides = [1, 1]} : vector<8x32xf32> to vector<8x8xf32>
    %298 = vector.extract_strided_slice %294 {offsets = [0, 0], sizes = [8, 8], strides = [1, 1]} : vector<8x32xf32> to vector<8x8xf32>
    %299 = vector.extract_strided_slice %295 {offsets = [0, 0], sizes = [8, 8], strides = [1, 1]} : vector<8x32xf32> to vector<8x8xf32>
    %cst_105 = arith.constant dense<0.000000e+00> : vector<8x8xf32>
    %300 = tpu.matmul %297, %298, %cst_105 {dimension_numbers = #tpu.dot_dimension_numbers<[1], [1], [0], [0], [0, 0, 1, 0], [], []>} : vector<8x8xf32>, vector<8x8xf32>, vector<8x8xf32> -> vector<8x8xf32>
    %cst_106 = arith.constant 0.353553385 : f32
    %301 = vector.broadcast %cst_106 : f32 to vector<8x8xf32>
    %302 = arith.mulf %300, %301 : vector<8x8xf32>
    %303 = vector.broadcast %296 : vector<1x8xf32> to vector<8x8xf32>
    %304 = arith.addf %302, %303 : vector<8x8xf32>
    %cst_107 = arith.constant dense<0xFF800000> : vector<8xf32>
    %305 = vector.multi_reduction <maximumf>, %304, %cst_107 [1] : vector<8x8xf32> to vector<8xf32>
    %306 = vector.shape_cast %305 : vector<8xf32> to vector<8x1xf32>
    %307 = vector.broadcast %306 : vector<8x1xf32> to vector<8x8xf32>
    %308 = arith.subf %304, %307 : vector<8x8xf32>
    %309 = math.exp %308 : vector<8x8xf32>
    %cst_108 = arith.constant dense<0.000000e+00> : vector<8xf32>
    %310 = vector.multi_reduction <add>, %309, %cst_108 [1] : vector<8x8xf32> to vector<8xf32>
    %311 = vector.shape_cast %310 : vector<8xf32> to vector<8x1xf32>
    %312 = tpu.reciprocal %311 {approx = true} : vector<8x1xf32> -> vector<8x1xf32>
    %313 = vector.broadcast %312 : vector<8x1xf32> to vector<8x8xf32>
    %314 = arith.mulf %309, %313 : vector<8x8xf32>
    %cst_109 = arith.constant dense<0.000000e+00> : vector<8x8xf32>
    %315 = tpu.matmul %314, %299, %cst_109 {dimension_numbers = #tpu.dot_dimension_numbers<[1], [0], [0], [1], [0, 0, 1, 1], [], []>} : vector<8x8xf32>, vector<8x8xf32>, vector<8x8xf32> -> vector<8x8xf32>
    %316 = vector.extract_strided_slice %293 {offsets = [0, 8], sizes = [8, 8], strides = [1, 1]} : vector<8x32xf32> to vector<8x8xf32>
    %317 = vector.extract_strided_slice %294 {offsets = [0, 8], sizes = [8, 8], strides = [1, 1]} : vector<8x32xf32> to vector<8x8xf32>
    %318 = vector.extract_strided_slice %295 {offsets = [0, 8], sizes = [8, 8], strides = [1, 1]} : vector<8x32xf32> to vector<8x8xf32>
    %cst_110 = arith.constant dense<0.000000e+00> : vector<8x8xf32>
    %319 = tpu.matmul %316, %317, %cst_110 {dimension_numbers = #tpu.dot_dimension_numbers<[1], [1], [0], [0], [0, 0, 1, 0], [], []>} : vector<8x8xf32>, vector<8x8xf32>, vector<8x8xf32> -> vector<8x8xf32>
    %cst_111 = arith.constant 0.353553385 : f32
    %320 = vector.broadcast %cst_111 : f32 to vector<8x8xf32>
    %321 = arith.mulf %319, %320 : vector<8x8xf32>
    %322 = vector.broadcast %296 : vector<1x8xf32> to vector<8x8xf32>
    %323 = arith.addf %321, %322 : vector<8x8xf32>
    %cst_112 = arith.constant dense<0xFF800000> : vector<8xf32>
    %324 = vector.multi_reduction <maximumf>, %323, %cst_112 [1] : vector<8x8xf32> to vector<8xf32>
    %325 = vector.shape_cast %324 : vector<8xf32> to vector<8x1xf32>
    %326 = vector.broadcast %325 : vector<8x1xf32> to vector<8x8xf32>
    %327 = arith.subf %323, %326 : vector<8x8xf32>
    %328 = math.exp %327 : vector<8x8xf32>
    %cst_113 = arith.constant dense<0.000000e+00> : vector<8xf32>
    %329 = vector.multi_reduction <add>, %328, %cst_113 [1] : vector<8x8xf32> to vector<8xf32>
    %330 = vector.shape_cast %329 : vector<8xf32> to vector<8x1xf32>
    %331 = tpu.reciprocal %330 {approx = true} : vector<8x1xf32> -> vector<8x1xf32>
    %332 = vector.broadcast %331 : vector<8x1xf32> to vector<8x8xf32>
    %333 = arith.mulf %328, %332 : vector<8x8xf32>
    %cst_114 = arith.constant dense<0.000000e+00> : vector<8x8xf32>
    %334 = tpu.matmul %333, %318, %cst_114 {dimension_numbers = #tpu.dot_dimension_numbers<[1], [0], [0], [1], [0, 0, 1, 1], [], []>} : vector<8x8xf32>, vector<8x8xf32>, vector<8x8xf32> -> vector<8x8xf32>
    %335 = vector.extract_strided_slice %293 {offsets = [0, 16], sizes = [8, 8], strides = [1, 1]} : vector<8x32xf32> to vector<8x8xf32>
    %336 = vector.extract_strided_slice %294 {offsets = [0, 16], sizes = [8, 8], strides = [1, 1]} : vector<8x32xf32> to vector<8x8xf32>
    %337 = vector.extract_strided_slice %295 {offsets = [0, 16], sizes = [8, 8], strides = [1, 1]} : vector<8x32xf32> to vector<8x8xf32>
    %cst_115 = arith.constant dense<0.000000e+00> : vector<8x8xf32>
    %338 = tpu.matmul %335, %336, %cst_115 {dimension_numbers = #tpu.dot_dimension_numbers<[1], [1], [0], [0], [0, 0, 1, 0], [], []>} : vector<8x8xf32>, vector<8x8xf32>, vector<8x8xf32> -> vector<8x8xf32>
    %cst_116 = arith.constant 0.353553385 : f32
    %339 = vector.broadcast %cst_116 : f32 to vector<8x8xf32>
    %340 = arith.mulf %338, %339 : vector<8x8xf32>
    %341 = vector.broadcast %296 : vector<1x8xf32> to vector<8x8xf32>
    %342 = arith.addf %340, %341 : vector<8x8xf32>
    %cst_117 = arith.constant dense<0xFF800000> : vector<8xf32>
    %343 = vector.multi_reduction <maximumf>, %342, %cst_117 [1] : vector<8x8xf32> to vector<8xf32>
    %344 = vector.shape_cast %343 : vector<8xf32> to vector<8x1xf32>
    %345 = vector.broadcast %344 : vector<8x1xf32> to vector<8x8xf32>
    %346 = arith.subf %342, %345 : vector<8x8xf32>
    %347 = math.exp %346 : vector<8x8xf32>
    %cst_118 = arith.constant dense<0.000000e+00> : vector<8xf32>
    %348 = vector.multi_reduction <add>, %347, %cst_118 [1] : vector<8x8xf32> to vector<8xf32>
    %349 = vector.shape_cast %348 : vector<8xf32> to vector<8x1xf32>
    %350 = tpu.reciprocal %349 {approx = true} : vector<8x1xf32> -> vector<8x1xf32>
    %351 = vector.broadcast %350 : vector<8x1xf32> to vector<8x8xf32>
    %352 = arith.mulf %347, %351 : vector<8x8xf32>
    %cst_119 = arith.constant dense<0.000000e+00> : vector<8x8xf32>
    %353 = tpu.matmul %352, %337, %cst_119 {dimension_numbers = #tpu.dot_dimension_numbers<[1], [0], [0], [1], [0, 0, 1, 1], [], []>} : vector<8x8xf32>, vector<8x8xf32>, vector<8x8xf32> -> vector<8x8xf32>
    %354 = vector.extract_strided_slice %293 {offsets = [0, 24], sizes = [8, 8], strides = [1, 1]} : vector<8x32xf32> to vector<8x8xf32>
    %355 = vector.extract_strided_slice %294 {offsets = [0, 24], sizes = [8, 8], strides = [1, 1]} : vector<8x32xf32> to vector<8x8xf32>
    %356 = vector.extract_strided_slice %295 {offsets = [0, 24], sizes = [8, 8], strides = [1, 1]} : vector<8x32xf32> to vector<8x8xf32>
    %cst_120 = arith.constant dense<0.000000e+00> : vector<8x8xf32>
    %357 = tpu.matmul %354, %355, %cst_120 {dimension_numbers = #tpu.dot_dimension_numbers<[1], [1], [0], [0], [0, 0, 1, 0], [], []>} : vector<8x8xf32>, vector<8x8xf32>, vector<8x8xf32> -> vector<8x8xf32>
    %cst_121 = arith.constant 0.353553385 : f32
    %358 = vector.broadcast %cst_121 : f32 to vector<8x8xf32>
    %359 = arith.mulf %357, %358 : vector<8x8xf32>
    %360 = vector.broadcast %296 : vector<1x8xf32> to vector<8x8xf32>
    %361 = arith.addf %359, %360 : vector<8x8xf32>
    %cst_122 = arith.constant dense<0xFF800000> : vector<8xf32>
    %362 = vector.multi_reduction <maximumf>, %361, %cst_122 [1] : vector<8x8xf32> to vector<8xf32>
    %363 = vector.shape_cast %362 : vector<8xf32> to vector<8x1xf32>
    %364 = vector.broadcast %363 : vector<8x1xf32> to vector<8x8xf32>
    %365 = arith.subf %361, %364 : vector<8x8xf32>
    %366 = math.exp %365 : vector<8x8xf32>
    %cst_123 = arith.constant dense<0.000000e+00> : vector<8xf32>
    %367 = vector.multi_reduction <add>, %366, %cst_123 [1] : vector<8x8xf32> to vector<8xf32>
    %368 = vector.shape_cast %367 : vector<8xf32> to vector<8x1xf32>
    %369 = tpu.reciprocal %368 {approx = true} : vector<8x1xf32> -> vector<8x1xf32>
    %370 = vector.broadcast %369 : vector<8x1xf32> to vector<8x8xf32>
    %371 = arith.mulf %366, %370 : vector<8x8xf32>
    %cst_124 = arith.constant dense<0.000000e+00> : vector<8x8xf32>
    %372 = tpu.matmul %371, %356, %cst_124 {dimension_numbers = #tpu.dot_dimension_numbers<[1], [0], [0], [1], [0, 0, 1, 1], [], []>} : vector<8x8xf32>, vector<8x8xf32>, vector<8x8xf32> -> vector<8x8xf32>
    %373 = tpu.concatenate %315, %334, %353, %372 in 1 : vector<8x8xf32>, vector<8x8xf32>, vector<8x8xf32>, vector<8x8xf32> -> vector<8x32xf32>
    %374 = vector.extract_strided_slice %290 {offsets = [8, 0], sizes = [8, 32], strides = [1, 1]} : vector<16x32xf32> to vector<8x32xf32>
    %375 = vector.extract_strided_slice %291 {offsets = [8, 0], sizes = [8, 32], strides = [1, 1]} : vector<16x32xf32> to vector<8x32xf32>
    %376 = vector.extract_strided_slice %292 {offsets = [8, 0], sizes = [8, 32], strides = [1, 1]} : vector<16x32xf32> to vector<8x32xf32>
    %377 = vector.extract_strided_slice %39 {offsets = [1, 0], sizes = [1, 8], strides = [1, 1]} : vector<2x8xf32> to vector<1x8xf32>
    %378 = vector.extract_strided_slice %374 {offsets = [0, 0], sizes = [8, 8], strides = [1, 1]} : vector<8x32xf32> to vector<8x8xf32>
    %379 = vector.extract_strided_slice %375 {offsets = [0, 0], sizes = [8, 8], strides = [1, 1]} : vector<8x32xf32> to vector<8x8xf32>
    %380 = vector.extract_strided_slice %376 {offsets = [0, 0], sizes = [8, 8], strides = [1, 1]} : vector<8x32xf32> to vector<8x8xf32>
    %cst_125 = arith.constant dense<0.000000e+00> : vector<8x8xf32>
    %381 = tpu.matmul %378, %379, %cst_125 {dimension_numbers = #tpu.dot_dimension_numbers<[1], [1], [0], [0], [0, 0, 1, 0], [], []>} : vector<8x8xf32>, vector<8x8xf32>, vector<8x8xf32> -> vector<8x8xf32>
    %cst_126 = arith.constant 0.353553385 : f32
    %382 = vector.broadcast %cst_126 : f32 to vector<8x8xf32>
    %383 = arith.mulf %381, %382 : vector<8x8xf32>
    %384 = vector.broadcast %377 : vector<1x8xf32> to vector<8x8xf32>
    %385 = arith.addf %383, %384 : vector<8x8xf32>
    %cst_127 = arith.constant dense<0xFF800000> : vector<8xf32>
    %386 = vector.multi_reduction <maximumf>, %385, %cst_127 [1] : vector<8x8xf32> to vector<8xf32>
    %387 = vector.shape_cast %386 : vector<8xf32> to vector<8x1xf32>
    %388 = vector.broadcast %387 : vector<8x1xf32> to vector<8x8xf32>
    %389 = arith.subf %385, %388 : vector<8x8xf32>
    %390 = math.exp %389 : vector<8x8xf32>
    %cst_128 = arith.constant dense<0.000000e+00> : vector<8xf32>
    %391 = vector.multi_reduction <add>, %390, %cst_128 [1] : vector<8x8xf32> to vector<8xf32>
    %392 = vector.shape_cast %391 : vector<8xf32> to vector<8x1xf32>
    %393 = tpu.reciprocal %392 {approx = true} : vector<8x1xf32> -> vector<8x1xf32>
    %394 = vector.broadcast %393 : vector<8x1xf32> to vector<8x8xf32>
    %395 = arith.mulf %390, %394 : vector<8x8xf32>
    %cst_129 = arith.constant dense<0.000000e+00> : vector<8x8xf32>
    %396 = tpu.matmul %395, %380, %cst_129 {dimension_numbers = #tpu.dot_dimension_numbers<[1], [0], [0], [1], [0, 0, 1, 1], [], []>} : vector<8x8xf32>, vector<8x8xf32>, vector<8x8xf32> -> vector<8x8xf32>
    %397 = vector.extract_strided_slice %374 {offsets = [0, 8], sizes = [8, 8], strides = [1, 1]} : vector<8x32xf32> to vector<8x8xf32>
    %398 = vector.extract_strided_slice %375 {offsets = [0, 8], sizes = [8, 8], strides = [1, 1]} : vector<8x32xf32> to vector<8x8xf32>
    %399 = vector.extract_strided_slice %376 {offsets = [0, 8], sizes = [8, 8], strides = [1, 1]} : vector<8x32xf32> to vector<8x8xf32>
    %cst_130 = arith.constant dense<0.000000e+00> : vector<8x8xf32>
    %400 = tpu.matmul %397, %398, %cst_130 {dimension_numbers = #tpu.dot_dimension_numbers<[1], [1], [0], [0], [0, 0, 1, 0], [], []>} : vector<8x8xf32>, vector<8x8xf32>, vector<8x8xf32> -> vector<8x8xf32>
    %cst_131 = arith.constant 0.353553385 : f32
    %401 = vector.broadcast %cst_131 : f32 to vector<8x8xf32>
    %402 = arith.mulf %400, %401 : vector<8x8xf32>
    %403 = vector.broadcast %377 : vector<1x8xf32> to vector<8x8xf32>
    %404 = arith.addf %402, %403 : vector<8x8xf32>
    %cst_132 = arith.constant dense<0xFF800000> : vector<8xf32>
    %405 = vector.multi_reduction <maximumf>, %404, %cst_132 [1] : vector<8x8xf32> to vector<8xf32>
    %406 = vector.shape_cast %405 : vector<8xf32> to vector<8x1xf32>
    %407 = vector.broadcast %406 : vector<8x1xf32> to vector<8x8xf32>
    %408 = arith.subf %404, %407 : vector<8x8xf32>
    %409 = math.exp %408 : vector<8x8xf32>
    %cst_133 = arith.constant dense<0.000000e+00> : vector<8xf32>
    %410 = vector.multi_reduction <add>, %409, %cst_133 [1] : vector<8x8xf32> to vector<8xf32>
    %411 = vector.shape_cast %410 : vector<8xf32> to vector<8x1xf32>
    %412 = tpu.reciprocal %411 {approx = true} : vector<8x1xf32> -> vector<8x1xf32>
    %413 = vector.broadcast %412 : vector<8x1xf32> to vector<8x8xf32>
    %414 = arith.mulf %409, %413 : vector<8x8xf32>
    %cst_134 = arith.constant dense<0.000000e+00> : vector<8x8xf32>
    %415 = tpu.matmul %414, %399, %cst_134 {dimension_numbers = #tpu.dot_dimension_numbers<[1], [0], [0], [1], [0, 0, 1, 1], [], []>} : vector<8x8xf32>, vector<8x8xf32>, vector<8x8xf32> -> vector<8x8xf32>
    %416 = vector.extract_strided_slice %374 {offsets = [0, 16], sizes = [8, 8], strides = [1, 1]} : vector<8x32xf32> to vector<8x8xf32>
    %417 = vector.extract_strided_slice %375 {offsets = [0, 16], sizes = [8, 8], strides = [1, 1]} : vector<8x32xf32> to vector<8x8xf32>
    %418 = vector.extract_strided_slice %376 {offsets = [0, 16], sizes = [8, 8], strides = [1, 1]} : vector<8x32xf32> to vector<8x8xf32>
    %cst_135 = arith.constant dense<0.000000e+00> : vector<8x8xf32>
    %419 = tpu.matmul %416, %417, %cst_135 {dimension_numbers = #tpu.dot_dimension_numbers<[1], [1], [0], [0], [0, 0, 1, 0], [], []>} : vector<8x8xf32>, vector<8x8xf32>, vector<8x8xf32> -> vector<8x8xf32>
    %cst_136 = arith.constant 0.353553385 : f32
    %420 = vector.broadcast %cst_136 : f32 to vector<8x8xf32>
    %421 = arith.mulf %419, %420 : vector<8x8xf32>
    %422 = vector.broadcast %377 : vector<1x8xf32> to vector<8x8xf32>
    %423 = arith.addf %421, %422 : vector<8x8xf32>
    %cst_137 = arith.constant dense<0xFF800000> : vector<8xf32>
    %424 = vector.multi_reduction <maximumf>, %423, %cst_137 [1] : vector<8x8xf32> to vector<8xf32>
    %425 = vector.shape_cast %424 : vector<8xf32> to vector<8x1xf32>
    %426 = vector.broadcast %425 : vector<8x1xf32> to vector<8x8xf32>
    %427 = arith.subf %423, %426 : vector<8x8xf32>
    %428 = math.exp %427 : vector<8x8xf32>
    %cst_138 = arith.constant dense<0.000000e+00> : vector<8xf32>
    %429 = vector.multi_reduction <add>, %428, %cst_138 [1] : vector<8x8xf32> to vector<8xf32>
    %430 = vector.shape_cast %429 : vector<8xf32> to vector<8x1xf32>
    %431 = tpu.reciprocal %430 {approx = true} : vector<8x1xf32> -> vector<8x1xf32>
    %432 = vector.broadcast %431 : vector<8x1xf32> to vector<8x8xf32>
    %433 = arith.mulf %428, %432 : vector<8x8xf32>
    %cst_139 = arith.constant dense<0.000000e+00> : vector<8x8xf32>
    %434 = tpu.matmul %433, %418, %cst_139 {dimension_numbers = #tpu.dot_dimension_numbers<[1], [0], [0], [1], [0, 0, 1, 1], [], []>} : vector<8x8xf32>, vector<8x8xf32>, vector<8x8xf32> -> vector<8x8xf32>
    %435 = vector.extract_strided_slice %374 {offsets = [0, 24], sizes = [8, 8], strides = [1, 1]} : vector<8x32xf32> to vector<8x8xf32>
    %436 = vector.extract_strided_slice %375 {offsets = [0, 24], sizes = [8, 8], strides = [1, 1]} : vector<8x32xf32> to vector<8x8xf32>
    %437 = vector.extract_strided_slice %376 {offsets = [0, 24], sizes = [8, 8], strides = [1, 1]} : vector<8x32xf32> to vector<8x8xf32>
    %cst_140 = arith.constant dense<0.000000e+00> : vector<8x8xf32>
    %438 = tpu.matmul %435, %436, %cst_140 {dimension_numbers = #tpu.dot_dimension_numbers<[1], [1], [0], [0], [0, 0, 1, 0], [], []>} : vector<8x8xf32>, vector<8x8xf32>, vector<8x8xf32> -> vector<8x8xf32>
    %cst_141 = arith.constant 0.353553385 : f32
    %439 = vector.broadcast %cst_141 : f32 to vector<8x8xf32>
    %440 = arith.mulf %438, %439 : vector<8x8xf32>
    %441 = vector.broadcast %377 : vector<1x8xf32> to vector<8x8xf32>
    %442 = arith.addf %440, %441 : vector<8x8xf32>
    %cst_142 = arith.constant dense<0xFF800000> : vector<8xf32>
    %443 = vector.multi_reduction <maximumf>, %442, %cst_142 [1] : vector<8x8xf32> to vector<8xf32>
    %444 = vector.shape_cast %443 : vector<8xf32> to vector<8x1xf32>
    %445 = vector.broadcast %444 : vector<8x1xf32> to vector<8x8xf32>
    %446 = arith.subf %442, %445 : vector<8x8xf32>
    %447 = math.exp %446 : vector<8x8xf32>
    %cst_143 = arith.constant dense<0.000000e+00> : vector<8xf32>
    %448 = vector.multi_reduction <add>, %447, %cst_143 [1] : vector<8x8xf32> to vector<8xf32>
    %449 = vector.shape_cast %448 : vector<8xf32> to vector<8x1xf32>
    %450 = tpu.reciprocal %449 {approx = true} : vector<8x1xf32> -> vector<8x1xf32>
    %451 = vector.broadcast %450 : vector<8x1xf32> to vector<8x8xf32>
    %452 = arith.mulf %447, %451 : vector<8x8xf32>
    %cst_144 = arith.constant dense<0.000000e+00> : vector<8x8xf32>
    %453 = tpu.matmul %452, %437, %cst_144 {dimension_numbers = #tpu.dot_dimension_numbers<[1], [0], [0], [1], [0, 0, 1, 1], [], []>} : vector<8x8xf32>, vector<8x8xf32>, vector<8x8xf32> -> vector<8x8xf32>
    %454 = tpu.concatenate %396, %415, %434, %453 in 1 : vector<8x8xf32>, vector<8x8xf32>, vector<8x8xf32>, vector<8x8xf32> -> vector<8x32xf32>
    %455 = tpu.concatenate %373, %454 in 0 : vector<8x32xf32>, vector<8x32xf32> -> vector<16x32xf32>
    %c0_145 = arith.constant 0 : index
    %c0_146 = arith.constant 0 : index
    %456 = vector.load %arg20[%c0_145, %c0_146] : memref<32x32xf32, #tpu.memory_space<vmem>>, vector<32x32xf32>
    %cst_147 = arith.constant dense<0.000000e+00> : vector<16x32xf32>
    %457 = tpu.matmul %455, %456, %cst_147 {dimension_numbers = #tpu.dot_dimension_numbers<[1], [0], [0], [1], [0, 0, 1, 1], [], []>} : vector<16x32xf32>, vector<32x32xf32>, vector<16x32xf32> -> vector<16x32xf32>
    %c0_148 = arith.constant 0 : index
    %c0_149 = arith.constant 0 : index
    %458 = vector.load %arg21[%c0_148, %c0_149] : memref<1x32xf32, #tpu.memory_space<vmem>>, vector<1x32xf32>
    %459 = vector.broadcast %458 : vector<1x32xf32> to vector<16x32xf32>
    %460 = arith.addf %457, %459 : vector<16x32xf32>
    %461 = arith.addf %460, %284 : vector<16x32xf32>
    %c0_150 = arith.constant 0 : index
    %c0_151 = arith.constant 0 : index
    %462 = vector.load %arg22[%c0_150, %c0_151] : memref<1x32xf32, #tpu.memory_space<vmem>>, vector<1x32xf32>
    %c0_152 = arith.constant 0 : index
    %c0_153 = arith.constant 0 : index
    %463 = vector.load %arg23[%c0_152, %c0_153] : memref<1x32xf32, #tpu.memory_space<vmem>>, vector<1x32xf32>
    %cst_154 = arith.constant dense<0.000000e+00> : vector<16xf32>
    %464 = vector.multi_reduction <add>, %461, %cst_154 [1] : vector<16x32xf32> to vector<16xf32>
    %465 = vector.shape_cast %464 : vector<16xf32> to vector<16x1xf32>
    %cst_155 = arith.constant 3.200000e+01 : f32
    %466 = vector.broadcast %cst_155 : f32 to vector<16x1xf32>
    %467 = arith.divf %465, %466 : vector<16x1xf32>
    %468 = vector.broadcast %467 : vector<16x1xf32> to vector<16x32xf32>
    %469 = arith.subf %461, %468 : vector<16x32xf32>
    %470 = arith.mulf %469, %469 : vector<16x32xf32>
    %cst_156 = arith.constant dense<0.000000e+00> : vector<16xf32>
    %471 = vector.multi_reduction <add>, %470, %cst_156 [1] : vector<16x32xf32> to vector<16xf32>
    %472 = vector.shape_cast %471 : vector<16xf32> to vector<16x1xf32>
    %cst_157 = arith.constant 3.200000e+01 : f32
    %473 = vector.broadcast %cst_157 : f32 to vector<16x1xf32>
    %474 = arith.divf %472, %473 : vector<16x1xf32>
    %cst_158 = arith.constant 9.99999996E-13 : f32
    %475 = vector.broadcast %cst_158 : f32 to vector<16x1xf32>
    %476 = arith.addf %474, %475 : vector<16x1xf32>
    %477 = math.rsqrt %476 : vector<16x1xf32>
    %478 = vector.broadcast %477 : vector<16x1xf32> to vector<16x32xf32>
    %479 = arith.mulf %469, %478 : vector<16x32xf32>
    %480 = vector.broadcast %462 : vector<1x32xf32> to vector<16x32xf32>
    %481 = arith.mulf %479, %480 : vector<16x32xf32>
    %482 = vector.broadcast %463 : vector<1x32xf32> to vector<16x32xf32>
    %483 = arith.addf %481, %482 : vector<16x32xf32>
    %c0_159 = arith.constant 0 : index
    %c0_160 = arith.constant 0 : index
    %484 = vector.load %arg24[%c0_159, %c0_160] : memref<32x64xf32, #tpu.memory_space<vmem>>, vector<32x64xf32>
    %cst_161 = arith.constant dense<0.000000e+00> : vector<16x64xf32>
    %485 = tpu.matmul %483, %484, %cst_161 {dimension_numbers = #tpu.dot_dimension_numbers<[1], [0], [0], [1], [0, 0, 1, 1], [], []>} : vector<16x32xf32>, vector<32x64xf32>, vector<16x64xf32> -> vector<16x64xf32>
    %c0_162 = arith.constant 0 : index
    %c0_163 = arith.constant 0 : index
    %486 = vector.load %arg25[%c0_162, %c0_163] : memref<1x64xf32, #tpu.memory_space<vmem>>, vector<1x64xf32>
    %487 = vector.broadcast %486 : vector<1x64xf32> to vector<16x64xf32>
    %488 = arith.addf %485, %487 : vector<16x64xf32>
    %cst_164 = arith.constant 5.000000e-01 : f32
    %489 = vector.broadcast %cst_164 : f32 to vector<16x64xf32>
    %490 = arith.mulf %489, %488 : vector<16x64xf32>
    %cst_165 = arith.constant 4.471500e-02 : f32
    %491 = vector.broadcast %cst_165 : f32 to vector<16x64xf32>
    %492 = arith.mulf %491, %488 : vector<16x64xf32>
    %493 = arith.mulf %492, %488 : vector<16x64xf32>
    %494 = arith.mulf %493, %488 : vector<16x64xf32>
    %495 = arith.addf %488, %494 : vector<16x64xf32>
    %cst_166 = arith.constant 0.797884583 : f32
    %496 = vector.broadcast %cst_166 : f32 to vector<16x64xf32>
    %497 = arith.mulf %496, %495 : vector<16x64xf32>
    %498 = math.tanh %497 : vector<16x64xf32>
    %cst_167 = arith.constant 1.000000e+00 : f32
    %499 = vector.broadcast %cst_167 : f32 to vector<16x64xf32>
    %500 = arith.addf %499, %498 : vector<16x64xf32>
    %501 = arith.mulf %490, %500 : vector<16x64xf32>
    %c0_168 = arith.constant 0 : index
    %c0_169 = arith.constant 0 : index
    %502 = vector.load %arg26[%c0_168, %c0_169] : memref<64x32xf32, #tpu.memory_space<vmem>>, vector<64x32xf32>
    %cst_170 = arith.constant dense<0.000000e+00> : vector<16x32xf32>
    %503 = tpu.matmul %501, %502, %cst_170 {dimension_numbers = #tpu.dot_dimension_numbers<[1], [0], [0], [1], [0, 0, 1, 1], [], []>} : vector<16x64xf32>, vector<64x32xf32>, vector<16x32xf32> -> vector<16x32xf32>
    %c0_171 = arith.constant 0 : index
    %c0_172 = arith.constant 0 : index
    %504 = vector.load %arg27[%c0_171, %c0_172] : memref<1x32xf32, #tpu.memory_space<vmem>>, vector<1x32xf32>
    %505 = vector.broadcast %504 : vector<1x32xf32> to vector<16x32xf32>
    %506 = arith.addf %503, %505 : vector<16x32xf32>
    %507 = arith.addf %506, %483 : vector<16x32xf32>
    %c0_173 = arith.constant 0 : index
    %c0_174 = arith.constant 0 : index
    %508 = vector.load %arg28[%c0_173, %c0_174] : memref<1x32xf32, #tpu.memory_space<vmem>>, vector<1x32xf32>
    %c0_175 = arith.constant 0 : index
    %c0_176 = arith.constant 0 : index
    %509 = vector.load %arg29[%c0_175, %c0_176] : memref<1x32xf32, #tpu.memory_space<vmem>>, vector<1x32xf32>
    %cst_177 = arith.constant dense<0.000000e+00> : vector<16xf32>
    %510 = vector.multi_reduction <add>, %507, %cst_177 [1] : vector<16x32xf32> to vector<16xf32>
    %511 = vector.shape_cast %510 : vector<16xf32> to vector<16x1xf32>
    %cst_178 = arith.constant 3.200000e+01 : f32
    %512 = vector.broadcast %cst_178 : f32 to vector<16x1xf32>
    %513 = arith.divf %511, %512 : vector<16x1xf32>
    %514 = vector.broadcast %513 : vector<16x1xf32> to vector<16x32xf32>
    %515 = arith.subf %507, %514 : vector<16x32xf32>
    %516 = arith.mulf %515, %515 : vector<16x32xf32>
    %cst_179 = arith.constant dense<0.000000e+00> : vector<16xf32>
    %517 = vector.multi_reduction <add>, %516, %cst_179 [1] : vector<16x32xf32> to vector<16xf32>
    %518 = vector.shape_cast %517 : vector<16xf32> to vector<16x1xf32>
    %cst_180 = arith.constant 3.200000e+01 : f32
    %519 = vector.broadcast %cst_180 : f32 to vector<16x1xf32>
    %520 = arith.divf %518, %519 : vector<16x1xf32>
    %cst_181 = arith.constant 9.99999996E-13 : f32
    %521 = vector.broadcast %cst_181 : f32 to vector<16x1xf32>
    %522 = arith.addf %520, %521 : vector<16x1xf32>
    %523 = math.rsqrt %522 : vector<16x1xf32>
    %524 = vector.broadcast %523 : vector<16x1xf32> to vector<16x32xf32>
    %525 = arith.mulf %515, %524 : vector<16x32xf32>
    %526 = vector.broadcast %508 : vector<1x32xf32> to vector<16x32xf32>
    %527 = arith.mulf %525, %526 : vector<16x32xf32>
    %528 = vector.broadcast %509 : vector<1x32xf32> to vector<16x32xf32>
    %529 = arith.addf %527, %528 : vector<16x32xf32>
    %530 = vector.extract_strided_slice %529 {offsets = [0, 0], sizes = [1, 32], strides = [1, 1]} : vector<16x32xf32> to vector<1x32xf32>
    %531 = vector.extract_strided_slice %529 {offsets = [8, 0], sizes = [1, 32], strides = [1, 1]} : vector<16x32xf32> to vector<1x32xf32>
    %532 = tpu.concatenate %530, %531 in 0 : vector<1x32xf32>, vector<1x32xf32> -> vector<2x32xf32>
    %c0_182 = arith.constant 0 : index
    %c0_183 = arith.constant 0 : index
    %533 = vector.load %arg30[%c0_182, %c0_183] : memref<32x32xf32, #tpu.memory_space<vmem>>, vector<32x32xf32>
    %cst_184 = arith.constant dense<0.000000e+00> : vector<2x32xf32>
    %534 = tpu.matmul %532, %533, %cst_184 {dimension_numbers = #tpu.dot_dimension_numbers<[1], [0], [0], [1], [0, 0, 1, 1], [], []>} : vector<2x32xf32>, vector<32x32xf32>, vector<2x32xf32> -> vector<2x32xf32>
    %c0_185 = arith.constant 0 : index
    %c0_186 = arith.constant 0 : index
    %535 = vector.load %arg31[%c0_185, %c0_186] : memref<1x32xf32, #tpu.memory_space<vmem>>, vector<1x32xf32>
    %536 = vector.broadcast %535 : vector<1x32xf32> to vector<2x32xf32>
    %537 = arith.addf %534, %536 : vector<2x32xf32>
    %538 = math.tanh %537 : vector<2x32xf32>
    %c0_187 = arith.constant 0 : index
    %c0_188 = arith.constant 0 : index
    %539 = vector.load %arg32[%c0_187, %c0_188] : memref<32x128xf32, #tpu.memory_space<vmem>>, vector<32x128xf32>
    %cst_189 = arith.constant dense<0.000000e+00> : vector<2x128xf32>
    %540 = tpu.matmul %538, %539, %cst_189 {dimension_numbers = #tpu.dot_dimension_numbers<[1], [0], [0], [1], [0, 0, 1, 1], [], []>} : vector<2x32xf32>, vector<32x128xf32>, vector<2x128xf32> -> vector<2x128xf32>
    %c0_190 = arith.constant 0 : index
    %c0_191 = arith.constant 0 : index
    %541 = vector.load %arg33[%c0_190, %c0_191] : memref<1x128xf32, #tpu.memory_space<vmem>>, vector<1x128xf32>
    %542 = vector.broadcast %541 : vector<1x128xf32> to vector<2x128xf32>
    %543 = arith.addf %540, %542 : vector<2x128xf32>
    %c0_192 = arith.constant 0 : index
    %c0_193 = arith.constant 0 : index
    %544 = vector.load %arg34[%c0_192, %c0_193] : memref<2x128xf32, #tpu.memory_space<vmem>>, vector<2x128xf32>
    tpu.vector_store %arg34[%c0_192, %c0_193], %543 {strides = array<i32>} : memref<2x128xf32, #tpu.memory_space<vmem>>, vector<2x128xf32>,
    return
  }
}

</mosaic_0001>

<llo_original>
// kernel: sentiment_classifier_forward.1
$region0: #{sentiment_classifier_forward.1}
  #allocation0 [shape = 'u32[]', space=smem, size = 0x4, offset = 0x4, fixed_abs, tag = 'smem constant byte address 0x4 - core index']
  #allocation1 [shape = 'u32[144,128]{1,0:T(1,128)}', space=vmem, size = 0x12000, scoped, tag = 'internal scratch']
  %s0 = inlined_call_operand.smem [shape: u32[35], index: -1, kind: input, shape index: {}]
  %s1 = sld [smem:[%s0]]
  %s2 = scalar_lea.smem %s0, 1
  %s3 = sld [smem:[%s2]]
  %s4 = scalar_lea.smem %s0, 2
  %s5 = sld [smem:[%s4]]
  %s6 = scalar_lea.smem %s0, 3
  %s7 = sld [smem:[%s6]]
  %s8 = scalar_lea.smem %s0, 4
  %s9 = sld [smem:[%s8]]
  %s10 = scalar_lea.smem %s0, 5
  %s11 = sld [smem:[%s10]]
  %s12 = scalar_lea.smem %s0, 6
  %s13 = sld [smem:[%s12]]
  %s14 = scalar_lea.smem %s0, 7
  %s15 = sld [smem:[%s14]]
  %s16 = scalar_lea.smem %s0, 8
  %s17 = sld [smem:[%s16]]
  %s18 = scalar_lea.smem %s0, 9
  %s19 = sld [smem:[%s18]]
  %s20 = scalar_lea.smem %s0, 10
  %s21 = sld [smem:[%s20]]
  %s22 = scalar_lea.smem %s0, 11
  %s23 = sld [smem:[%s22]]
  %s24 = scalar_lea.smem %s0, 12
  %s25 = sld [smem:[%s24]]
  %s26 = scalar_lea.smem %s0, 13
  %s27 = sld [smem:[%s26]]
  %s28 = scalar_lea.smem %s0, 14
  %s29 = sld [smem:[%s28]]
  %s30 = scalar_lea.smem %s0, 15
  %s31 = sld [smem:[%s30]]
  %s32 = scalar_lea.smem %s0, 16
  %s33 = sld [smem:[%s32]]
  %s34 = scalar_lea.smem %s0, 17
  %s35 = sld [smem:[%s34]]
  %s36 = scalar_lea.smem %s0, 18
  %s37 = sld [smem:[%s36]]
  %s38 = scalar_lea.smem %s0, 19
  %s39 = sld [smem:[%s38]]
  %s40 = scalar_lea.smem %s0, 20
  %s41 = sld [smem:[%s40]]
  %s42 = scalar_lea.smem %s0, 21
  %s43 = sld [smem:[%s42]]
  %s44 = scalar_lea.smem %s0, 22
  %s45 = sld [smem:[%s44]]
  %s46 = scalar_lea.smem %s0, 23
  %s47 = sld [smem:[%s46]]
  %s48 = scalar_lea.smem %s0, 24
  %s49 = sld [smem:[%s48]]
  %s50 = scalar_lea.smem %s0, 25
  %s51 = sld [smem:[%s50]]
  %s52 = scalar_lea.smem %s0, 26
  %s53 = sld [smem:[%s52]]
  %s54 = scalar_lea.smem %s0, 27
  %s55 = sld [smem:[%s54]]
  %s56 = scalar_lea.smem %s0, 28
  %s57 = sld [smem:[%s56]]
  %s58 = scalar_lea.smem %s0, 29
  %s59 = sld [smem:[%s58]]
  %s60 = scalar_lea.smem %s0, 30
  %s61 = sld [smem:[%s60]]
  %s62 = scalar_lea.smem %s0, 31
  %s63 = sld [smem:[%s62]]
  %s64 = scalar_lea.smem %s0, 32
  %s65 = sld [smem:[%s64]]
  %s66 = scalar_lea.smem %s0, 33
  %s67 = sld [smem:[%s66]]
  %s68 = scalar_lea.smem %s0, 34
  %s69 = sld [smem:[%s68]]
  %s70 = sld [smem:[#allocation0]]
  $region146: #{sentiment_classifier_forward.1} parent=0
    _
  %s72 = ssub.s32 1, %s70
  %s73 = scalar_select 0, %s72, %s70
  $region1: #{sentiment_classifier_forward.1} parent=0
    #allocation2 [shape = 'u8[1024]{0}', space=vmem, size = 0x400, scoped, tag = 'output window, operand 0, single buffered']
    #allocation3 [shape = 's32[1]{0}', space=sflag, size = 0x4, scoped, tag = 'scoped memory for sentiment_classifier_forward.1']
    %74 = vsyncpa [#allocation3], 0
    // Predicated region
    $region2: #{sentiment_classifier_forward.1} parent=1 // pred_check
      _
    $region3: #{sentiment_classifier_forward.1} parent=1 // pred_check_branch
      %76 = sbr.rel (0) target = $region5
    $region4: #{sentiment_classifier_forward.1} parent=1 // pred_region
      _
    $region5: #{sentiment_classifier_forward.1} parent=1 // pred_fallthru
      _
    // Predicated region
    $region6: #{sentiment_classifier_forward.1} parent=1 // pred_check
      _
    $region7: #{sentiment_classifier_forward.1} parent=1 // pred_check_branch
      %78 = sbr.rel (0) target = $region9
    $region8: #{sentiment_classifier_forward.1} parent=1 // pred_region
      _
    $region9: #{sentiment_classifier_forward.1} parent=1 // pred_fallthru
      _
    // Predicated region
    $region10: #{sentiment_classifier_forward.1} parent=1 // pred_check
      _
    $region11: #{sentiment_classifier_forward.1} parent=1 // pred_check_branch
      %80 = sbr.rel (0) target = $region13
    $region12: #{sentiment_classifier_forward.1} parent=1 // pred_region
      _
    $region13: #{sentiment_classifier_forward.1} parent=1 // pred_fallthru
      _
    // Predicated region
    $region14: #{sentiment_classifier_forward.1} parent=1 // pred_check
      _
    $region15: #{sentiment_classifier_forward.1} parent=1 // pred_check_branch
      %82 = sbr.rel (0) target = $region17
    $region16: #{sentiment_classifier_forward.1} parent=1 // pred_region
      _
    $region17: #{sentiment_classifier_forward.1} parent=1 // pred_fallthru
      _
    // Predicated region
    $region18: #{sentiment_classifier_forward.1} parent=1 // pred_check
      _
    $region19: #{sentiment_classifier_forward.1} parent=1 // pred_check_branch
      %84 = sbr.rel (0) target = $region21
    $region20: #{sentiment_classifier_forward.1} parent=1 // pred_region
      _
    $region21: #{sentiment_classifier_forward.1} parent=1 // pred_fallthru
      _
    // Predicated region
    $region22: #{sentiment_classifier_forward.1} parent=1 // pred_check
      _
    $region23: #{sentiment_classifier_forward.1} parent=1 // pred_check_branch
      %86 = sbr.rel (0) target = $region25
    $region24: #{sentiment_classifier_forward.1} parent=1 // pred_region
      _
    $region25: #{sentiment_classifier_forward.1} parent=1 // pred_fallthru
      _
    // Predicated region
    $region26: #{sentiment_classifier_forward.1} parent=1 // pred_check
      _
    $region27: #{sentiment_classifier_forward.1} parent=1 // pred_check_branch
      %88 = sbr.rel (0) target = $region29
    $region28: #{sentiment_classifier_forward.1} parent=1 // pred_region
      _
    $region29: #{sentiment_classifier_forward.1} parent=1 // pred_fallthru
      _
    // Predicated region
    $region30: #{sentiment_classifier_forward.1} parent=1 // pred_check
      _
    $region31: #{sentiment_classifier_forward.1} parent=1 // pred_check_branch
      %90 = sbr.rel (0) target = $region33
    $region32: #{sentiment_classifier_forward.1} parent=1 // pred_region
      _
    $region33: #{sentiment_classifier_forward.1} parent=1 // pred_fallthru
      _
    // Predicated region
    $region34: #{sentiment_classifier_forward.1} parent=1 // pred_check
      _
    $region35: #{sentiment_classifier_forward.1} parent=1 // pred_check_branch
      %92 = sbr.rel (0) target = $region37
    $region36: #{sentiment_classifier_forward.1} parent=1 // pred_region
      _
    $region37: #{sentiment_classifier_forward.1} parent=1 // pred_fallthru
      _
    // Predicated region
    $region38: #{sentiment_classifier_forward.1} parent=1 // pred_check
      _
    $region39: #{sentiment_classifier_forward.1} parent=1 // pred_check_branch
      %94 = sbr.rel (0) target = $region41
    $region40: #{sentiment_classifier_forward.1} parent=1 // pred_region
      _
    $region41: #{sentiment_classifier_forward.1} parent=1 // pred_fallthru
      _
    // Predicated region
    $region42: #{sentiment_classifier_forward.1} parent=1 // pred_check
      _
    $region43: #{sentiment_classifier_forward.1} parent=1 // pred_check_branch
      %96 = sbr.rel (0) target = $region45
    $region44: #{sentiment_classifier_forward.1} parent=1 // pred_region
      _
    $region45: #{sentiment_classifier_forward.1} parent=1 // pred_fallthru
      _
    // Predicated region
    $region46: #{sentiment_classifier_forward.1} parent=1 // pred_check
      _
    $region47: #{sentiment_classifier_forward.1} parent=1 // pred_check_branch
      %98 = sbr.rel (0) target = $region49
    $region48: #{sentiment_classifier_forward.1} parent=1 // pred_region
      _
    $region49: #{sentiment_classifier_forward.1} parent=1 // pred_fallthru
      _
    // Predicated region
    $region50: #{sentiment_classifier_forward.1} parent=1 // pred_check
      _
    $region51: #{sentiment_classifier_forward.1} parent=1 // pred_check_branch
      %100 = sbr.rel (0) target = $region53
    $region52: #{sentiment_classifier_forward.1} parent=1 // pred_region
      _
    $region53: #{sentiment_classifier_forward.1} parent=1 // pred_fallthru
      _
    // Predicated region
    $region54: #{sentiment_classifier_forward.1} parent=1 // pred_check
      _
    $region55: #{sentiment_classifier_forward.1} parent=1 // pred_check_branch
      %102 = sbr.rel (0) target = $region57
    $region56: #{sentiment_classifier_forward.1} parent=1 // pred_region
      _
    $region57: #{sentiment_classifier_forward.1} parent=1 // pred_fallthru
      _
    // Predicated region
    $region58: #{sentiment_classifier_forward.1} parent=1 // pred_check
      _
    $region59: #{sentiment_classifier_forward.1} parent=1 // pred_check_branch
      %104 = sbr.rel (0) target = $region61
    $region60: #{sentiment_classifier_forward.1} parent=1 // pred_region
      _
    $region61: #{sentiment_classifier_forward.1} parent=1 // pred_fallthru
      _
    // Predicated region
    $region62: #{sentiment_classifier_forward.1} parent=1 // pred_check
      _
    $region63: #{sentiment_classifier_forward.1} parent=1 // pred_check_branch
      %106 = sbr.rel (0) target = $region65
    $region64: #{sentiment_classifier_forward.1} parent=1 // pred_region
      _
    $region65: #{sentiment_classifier_forward.1} parent=1 // pred_fallthru
      _
    // Predicated region
    $region66: #{sentiment_classifier_forward.1} parent=1 // pred_check
      _
    $region67: #{sentiment_classifier_forward.1} parent=1 // pred_check_branch
      %108 = sbr.rel (0) target = $region69
    $region68: #{sentiment_classifier_forward.1} parent=1 // pred_region
      _
    $region69: #{sentiment_classifier_forward.1} parent=1 // pred_fallthru
      _
    // Predicated region
    $region70: #{sentiment_classifier_forward.1} parent=1 // pred_check
      _
    $region71: #{sentiment_classifier_forward.1} parent=1 // pred_check_branch
      %110 = sbr.rel (0) target = $region73
    $region72: #{sentiment_classifier_forward.1} parent=1 // pred_region
      _
    $region73: #{sentiment_classifier_forward.1} parent=1 // pred_fallthru
      _
    // Predicated region
    $region74: #{sentiment_classifier_forward.1} parent=1 // pred_check
      _
    $region75: #{sentiment_classifier_forward.1} parent=1 // pred_check_branch
      %112 = sbr.rel (0) target = $region77
    $region76: #{sentiment_classifier_forward.1} parent=1 // pred_region
      _
    $region77: #{sentiment_classifier_forward.1} parent=1 // pred_fallthru
      _
    // Predicated region
    $region78: #{sentiment_classifier_forward.1} parent=1 // pred_check
      _
    $region79: #{sentiment_classifier_forward.1} parent=1 // pred_check_branch
      %114 = sbr.rel (0) target = $region81
    $region80: #{sentiment_classifier_forward.1} parent=1 // pred_region
      _
    $region81: #{sentiment_classifier_forward.1} parent=1 // pred_fallthru
      _
    // Predicated region
    $region82: #{sentiment_classifier_forward.1} parent=1 // pred_check
      _
    $region83: #{sentiment_classifier_forward.1} parent=1 // pred_check_branch
      %116 = sbr.rel (0) target = $region85
    $region84: #{sentiment_classifier_forward.1} parent=1 // pred_region
      _
    $region85: #{sentiment_classifier_forward.1} parent=1 // pred_fallthru
      _
    // Predicated region
    $region86: #{sentiment_classifier_forward.1} parent=1 // pred_check
      _
    $region87: #{sentiment_classifier_forward.1} parent=1 // pred_check_branch
      %118 = sbr.rel (0) target = $region89
    $region88: #{sentiment_classifier_forward.1} parent=1 // pred_region
      _
    $region89: #{sentiment_classifier_forward.1} parent=1 // pred_fallthru
      _
    // Predicated region
    $region90: #{sentiment_classifier_forward.1} parent=1 // pred_check
      _
    $region91: #{sentiment_classifier_forward.1} parent=1 // pred_check_branch
      %120 = sbr.rel (0) target = $region93
    $region92: #{sentiment_classifier_forward.1} parent=1 // pred_region
      _
    $region93: #{sentiment_classifier_forward.1} parent=1 // pred_fallthru
      _
    // Predicated region
    $region94: #{sentiment_classifier_forward.1} parent=1 // pred_check
      _
    $region95: #{sentiment_classifier_forward.1} parent=1 // pred_check_branch
      %122 = sbr.rel (0) target = $region97
    $region96: #{sentiment_classifier_forward.1} parent=1 // pred_region
      _
    $region97: #{sentiment_classifier_forward.1} parent=1 // pred_fallthru
      _
    // Predicated region
    $region98: #{sentiment_classifier_forward.1} parent=1 // pred_check
      _
    $region99: #{sentiment_classifier_forward.1} parent=1 // pred_check_branch
      %124 = sbr.rel (0) target = $region101
    $region100: #{sentiment_classifier_forward.1} parent=1 // pred_region
      _
    $region101: #{sentiment_classifier_forward.1} parent=1 // pred_fallthru
      _
    // Predicated region
    $region102: #{sentiment_classifier_forward.1} parent=1 // pred_check
      _
    $region103: #{sentiment_classifier_forward.1} parent=1 // pred_check_branch
      %126 = sbr.rel (0) target = $region105
    $region104: #{sentiment_classifier_forward.1} parent=1 // pred_region
      _
    $region105: #{sentiment_classifier_forward.1} parent=1 // pred_fallthru
      _
    // Predicated region
    $region106: #{sentiment_classifier_forward.1} parent=1 // pred_check
      _
    $region107: #{sentiment_classifier_forward.1} parent=1 // pred_check_branch
      %128 = sbr.rel (0) target = $region109
    $region108: #{sentiment_classifier_forward.1} parent=1 // pred_region
      _
    $region109: #{sentiment_classifier_forward.1} parent=1 // pred_fallthru
      _
    // Predicated region
    $region110: #{sentiment_classifier_forward.1} parent=1 // pred_check
      _
    $region111: #{sentiment_classifier_forward.1} parent=1 // pred_check_branch
      %130 = sbr.rel (0) target = $region113
    $region112: #{sentiment_classifier_forward.1} parent=1 // pred_region
      _
    $region113: #{sentiment_classifier_forward.1} parent=1 // pred_fallthru
      _
    // Predicated region
    $region114: #{sentiment_classifier_forward.1} parent=1 // pred_check
      _
    $region115: #{sentiment_classifier_forward.1} parent=1 // pred_check_branch
      %132 = sbr.rel (0) target = $region117
    $region116: #{sentiment_classifier_forward.1} parent=1 // pred_region
      _
    $region117: #{sentiment_classifier_forward.1} parent=1 // pred_fallthru
      _
    // Predicated region
    $region118: #{sentiment_classifier_forward.1} parent=1 // pred_check
      _
    $region119: #{sentiment_classifier_forward.1} parent=1 // pred_check_branch
      %134 = sbr.rel (0) target = $region121
    $region120: #{sentiment_classifier_forward.1} parent=1 // pred_region
      _
    $region121: #{sentiment_classifier_forward.1} parent=1 // pred_fallthru
      _
    // Predicated region
    $region122: #{sentiment_classifier_forward.1} parent=1 // pred_check
      _
    $region123: #{sentiment_classifier_forward.1} parent=1 // pred_check_branch
      %136 = sbr.rel (0) target = $region125
    $region124: #{sentiment_classifier_forward.1} parent=1 // pred_region
      _
    $region125: #{sentiment_classifier_forward.1} parent=1 // pred_fallthru
      _
    // Predicated region
    $region126: #{sentiment_classifier_forward.1} parent=1 // pred_check
      _
    $region127: #{sentiment_classifier_forward.1} parent=1 // pred_check_branch
      %138 = sbr.rel (0) target = $region129
    $region128: #{sentiment_classifier_forward.1} parent=1 // pred_region
      _
    $region129: #{sentiment_classifier_forward.1} parent=1 // pred_fallthru
      _
    // Predicated region
    $region130: #{sentiment_classifier_forward.1} parent=1 // pred_check
      _
    $region131: #{sentiment_classifier_forward.1} parent=1 // pred_check_branch
      %140 = sbr.rel (0) target = $region133
    $region132: #{sentiment_classifier_forward.1} parent=1 // pred_region
      _
    $region133: #{sentiment_classifier_forward.1} parent=1 // pred_fallthru
      _
    // Predicated region
    $region134: #{sentiment_classifier_forward.1} parent=1 // pred_check
      _
    $region135: #{sentiment_classifier_forward.1} parent=1 // pred_check_branch
      %142 = sbr.rel (0) target = $region137
    $region136: #{sentiment_classifier_forward.1} parent=1 // pred_region
      _
    $region137: #{sentiment_classifier_forward.1} parent=1 // pred_fallthru
      _
    %v143 = vld [vmem:[%s1] sm:$0xff]
    %v144 = vld [vmem:[%s1 + $0x8] sm:$0xff]
    %v145 = vlaneseq
    %v146 = vand.u32 %v145, 127
    %147 = vset.pattern.permute.xlu0 0
    %148 = vperm.xlu0 %147, %v143
    %v149 = vpop.permute.xlu0 %148
    %150 = vset.pattern.permute.xlu0 0
    %151 = vperm.xlu0 %150, %v144
    %v152 = vpop.permute.xlu0 %151
    %vm153 = vcmp.eq.s32.totalorder %v149, %v146
    %vm154 = vcmp.eq.s32.totalorder %v152, %v146
    %v155 = vsel %vm153, 1, 0
    %v156 = vsel %vm154, 1, 0
    %v157 = vcvt.s32.f32 %v155
    %v158 = vcvt.s32.f32 %v156
    %v159 = vld [vmem:[%s5] sm:$0xff]
    %v160 = vld [vmem:[%s5 + $0x8] sm:$0xff]
    %v161 = vld [vmem:[%s5 + $0x10] sm:$0xff]
    %v162 = vld [vmem:[%s5 + $0x18] sm:$0xff]
    %v163 = vld [vmem:[%s5 + $0x20] sm:$0xff]
    %v164 = vld [vmem:[%s5 + $0x28] sm:$0xff]
    %v165 = vld [vmem:[%s5 + $0x30] sm:$0xff]
    %v166 = vld [vmem:[%s5 + $0x38] sm:$0xff]
    %v167 = vld [vmem:[%s5 + $0x40] sm:$0xff]
    %v168 = vld [vmem:[%s5 + $0x48] sm:$0xff]
    %v169 = vld [vmem:[%s5 + $0x50] sm:$0xff]
    %v170 = vld [vmem:[%s5 + $0x58] sm:$0xff]
    %v171 = vld [vmem:[%s5 + $0x60] sm:$0xff]
    %v172 = vld [vmem:[%s5 + $0x68] sm:$0xff]
    %v173 = vld [vmem:[%s5 + $0x70] sm:$0xff]
    %v174 = vld [vmem:[%s5 + $0x78] sm:$0xff]
    %v175 = vld [vmem:[%s7] sm:$0xff]
    %176 = vmatprep.subr.mxu0 0.0
    %177 = vmatpush1.msra.mxu0 %v159
    %178 = vmatprep.subr.mxu0 0.0
    %179 = vmatpush1.msra.mxu0 %v160
    %180 = vmatprep.subr.mxu0 0.0
    %181 = vmatpush1.msra.mxu0 %v161
    %182 = vmatprep.subr.mxu0 0.0
    %183 = vmatpush1.msra.mxu0 %v162
    %184 = vmatprep.subr.mxu0 0.0
    %185 = vmatpush1.msra.mxu0 %v163
    %186 = vmatprep.subr.mxu0 0.0
    %187 = vmatpush1.msra.mxu0 %v164
    %188 = vmatprep.subr.mxu0 0.0
    %189 = vmatpush1.msra.mxu0 %v165
    %190 = vmatprep.subr.mxu0 0.0
    %191 = vmatpush1.msra.mxu0 %v166
    %192 = vmatprep.subr.mxu0 0.0
    %193 = vmatpush1.msra.mxu0 %v167
    %194 = vmatprep.subr.mxu0 0.0
    %195 = vmatpush1.msra.mxu0 %v168
    %196 = vmatprep.subr.mxu0 0.0
    %197 = vmatpush1.msra.mxu0 %v169
    %198 = vmatprep.subr.mxu0 0.0
    %199 = vmatpush1.msra.mxu0 %v170
    %200 = vmatprep.subr.mxu0 0.0
    %201 = vmatpush1.msra.mxu0 %v171
    %202 = vmatprep.subr.mxu0 0.0
    %203 = vmatpush1.msra.mxu0 %v172
    %204 = vmatprep.subr.mxu0 0.0
    %205 = vmatpush1.msra.mxu0 %v173
    %206 = vmatprep.subr.mxu0 0.0
    %207 = vmatpush1.msra.mxu0 %v174
    %208 = vmatprep.subr.mxu0 0.0
    %209 = vmatpush1.msra.mxu0 0.0
    %210 = vmatprep.subr.mxu0 0.0
    %211 = vmatpush1.msra.mxu0 0.0
    %212 = vmatprep.subr.mxu0 0.0
    %213 = vmatpush1.msra.mxu0 0.0
    %214 = vmatprep.subr.mxu0 0.0
    %215 = vmatpush1.msra.mxu0 0.0
    %216 = vmatprep.subr.mxu0 0.0
    %217 = vmatpush1.msra.mxu0 0.0
    %218 = vmatprep.subr.mxu0 0.0
    %219 = vmatpush1.msra.mxu0 0.0
    %220 = vmatprep.subr.mxu0 0.0
    %221 = vmatpush1.msra.mxu0 0.0
    %222 = vmatprep.subr.mxu0 0.0
    %223 = vmatpush1.msra.mxu0 0.0
    %224 = vmatprep.subr.mxu0 0.0
    %225 = vmatpush1.msra.mxu0 0.0
    %226 = vmatprep.subr.mxu0 0.0
    %227 = vmatpush1.msra.mxu0 0.0
    %228 = vmatprep.subr.mxu0 0.0
    %229 = vmatpush1.msra.mxu0 0.0
    %230 = vmatprep.subr.mxu0 0.0
    %231 = vmatpush1.msra.mxu0 0.0
    %232 = vmatprep.subr.mxu0 0.0
    %233 = vmatpush1.msra.mxu0 0.0
    %234 = vmatprep.subr.mxu0 0.0
    %235 = vmatpush1.msra.mxu0 0.0
    %236 = vmatprep.subr.mxu0 0.0
    %237 = vmatpush1.msra.mxu0 0.0
    %238 = vmatprep.subr.mxu0 0.0
    %239 = vmatpush1.msra.mxu0 0.0
    %240 = vmatprep.mubr.f32.mxu0 0.0
    %241 = vmatmul.mubr.f32.gmra.mrb[0].mxu0 %v157
    %v242 = vpop.f32.mrb[0].mxu0
    %v243 = vadd.f32 %v175, %v242
    %v244 = vpop.f32.mrb[0].mxu0
    %245 = vmatprep.mubr.f32.mxu0 0.0
    %246 = vmatmul.mubr.f32.gmra.mrb[0].mxu0 %v158
    %v247 = vpop.f32.mrb[0].mxu0
    %v248 = vadd.f32 %v175, %v247
    %v249 = vpop.f32.mrb[0].mxu0
    %250 = vdwg.mxu0
    %v251 = vld [vmem:[%s9] sm:$0x1]
    %v252 = vld [vmem:[%s11] sm:$0x1]
    %vm253 = vcmask 261120
    %v254 = vsel %vm253, %v243, 0.0
    %255 = vadd.xlane.f32.xlu0 %v254
    %v256 = vpop.xlane.xlu0 %255
    %v257 = vsel %vm253, %v248, 0.0
    %258 = vadd.xlane.f32.xlu0 %v257
    %v259 = vpop.xlane.xlu0 %258
    %v260 = vrcp.pop 32.0
    %v261 = vmul.f32 %v256, %v260
    %v262 = vmul.f32 %v259, %v260
    %v263 = vsub.f32 %v243, %v261
    %v264 = vsub.f32 %v248, %v262
    %v265 = vmul.f32 %v263, %v263
    %v266 = vmul.f32 %v264, %v264
    %v267 = vsel %vm253, %v265, 0.0
    %268 = vadd.xlane.f32.xlu0 %v267
    %v269 = vpop.xlane.xlu0 %268
    %v270 = vsel %vm253, %v266, 0.0
    %271 = vadd.xlane.f32.xlu0 %v270
    %v272 = vpop.xlane.xlu0 %271
    %v273 = vmul.f32 %v269, %v260
    %v274 = vmul.f32 %v272, %v260
    %v275 = vadd.f32 %v273, 1e-12
    %v276 = vadd.f32 %v274, 1e-12
    %v277 = vrsqrt.pop %v275
    %v278 = vrsqrt.pop %v276
    %v279 = vmul.f32 %v263, %v277
    %v280 = vmul.f32 %v264, %v278
    %v282 = vlaneseq
    %v283 = vshrl.u32 %v282, 7
    %v284 = vsub.s32 0, %v283
    %v285 = vrot.slane %v251, %v284
    %v287 = vmul.f32 %v279, %v285
    %v288 = vmul.f32 %v280, %v285
    %v290 = vlaneseq
    %v291 = vshrl.u32 %v290, 7
    %v292 = vsub.s32 0, %v291
    %v293 = vrot.slane %v252, %v292
    %v295 = vadd.f32 %v287, %v293
    %v296 = vadd.f32 %v288, %v293
    %v297 = vld [vmem:[%s3] sm:$0x3]
    %v298 = vcvt.s32.f32 %v297
    %v299 = vsub.f32 %v298, 1.0
    %v300 = vmul.f32 %v299, 1e+09
    %v301 = vld [vmem:[%s13] sm:$0xff]
    %v302 = vld [vmem:[%s13 + $0x8] sm:$0xff]
    %v303 = vld [vmem:[%s13 + $0x10] sm:$0xff]
    %v304 = vld [vmem:[%s13 + $0x18] sm:$0xff]
    %v305 = vld [vmem:[%s15] sm:$0x1]
    %v307 = vlaneseq
    %v308 = vshrl.u32 %v307, 7
    %v309 = vsub.s32 0, %v308
    %v310 = vrot.slane %v305, %v309
    %v313 = vsel %vm253, %v295, 0
    %v316 = vsel %vm253, %v296, 0
    %318 = vmatprep.subr.mxu0 0.0
    %319 = vmatpush1.msra.mxu0 %v301
    %320 = vmatprep.subr.mxu0 0.0
    %321 = vmatpush1.msra.mxu0 %v302
    %322 = vmatprep.subr.mxu0 0.0
    %323 = vmatpush1.msra.mxu0 %v303
    %324 = vmatprep.subr.mxu0 0.0
    %325 = vmatpush1.msra.mxu0 %v304
    %326 = vmatprep.subr.mxu0 0.0
    %327 = vmatpush1.msra.mxu0 0.0
    %328 = vmatprep.subr.mxu0 0.0
    %329 = vmatpush1.msra.mxu0 0.0
    %330 = vmatprep.subr.mxu0 0.0
    %331 = vmatpush1.msra.mxu0 0.0
    %332 = vmatprep.subr.mxu0 0.0
    %333 = vmatpush1.msra.mxu0 0.0
    %334 = vmatprep.subr.mxu0 0.0
    %335 = vmatpush1.msra.mxu0 0.0
    %336 = vmatprep.subr.mxu0 0.0
    %337 = vmatpush1.msra.mxu0 0.0
    %338 = vmatprep.subr.mxu0 0.0
    %339 = vmatpush1.msra.mxu0 0.0
    %340 = vmatprep.subr.mxu0 0.0
    %341 = vmatpush1.msra.mxu0 0.0
    %342 = vmatprep.subr.mxu0 0.0
    %343 = vmatpush1.msra.mxu0 0.0
    %344 = vmatprep.subr.mxu0 0.0
    %345 = vmatpush1.msra.mxu0 0.0
    %346 = vmatprep.subr.mxu0 0.0
    %347 = vmatpush1.msra.mxu0 0.0
    %348 = vmatprep.subr.mxu0 0.0
    %349 = vmatpush1.msra.mxu0 0.0
    %350 = vmatprep.subr.mxu0 0.0
    %351 = vmatpush1.msra.mxu0 0.0
    %352 = vmatprep.subr.mxu0 0.0
    %353 = vmatpush1.msra.mxu0 0.0
    %354 = vmatprep.subr.mxu0 0.0
    %355 = vmatpush1.msra.mxu0 0.0
    %356 = vmatprep.subr.mxu0 0.0
    %357 = vmatpush1.msra.mxu0 0.0
    %358 = vmatprep.subr.mxu0 0.0
    %359 = vmatpush1.msra.mxu0 0.0
    %360 = vmatprep.subr.mxu0 0.0
    %361 = vmatpush1.msra.mxu0 0.0
    %362 = vmatprep.subr.mxu0 0.0
    %363 = vmatpush1.msra.mxu0 0.0
    %364 = vmatprep.subr.mxu0 0.0
    %365 = vmatpush1.msra.mxu0 0.0
    %366 = vmatprep.subr.mxu0 0.0
    %367 = vmatpush1.msra.mxu0 0.0
    %368 = vmatprep.subr.mxu0 0.0
    %369 = vmatpush1.msra.mxu0 0.0
    %370 = vmatprep.subr.mxu0 0.0
    %371 = vmatpush1.msra.mxu0 0.0
    %372 = vmatprep.subr.mxu0 0.0
    %373 = vmatpush1.msra.mxu0 0.0
    %374 = vmatprep.subr.mxu0 0.0
    %375 = vmatpush1.msra.mxu0 0.0
    %376 = vmatprep.subr.mxu0 0.0
    %377 = vmatpush1.msra.mxu0 0.0
    %378 = vmatprep.subr.mxu0 0.0
    %379 = vmatpush1.msra.mxu0 0.0
    %380 = vmatprep.subr.mxu0 0.0
    %381 = vmatpush1.msra.mxu0 0.0
    %382 = vmatprep.mubr.f32.mxu0 0.0
    %383 = vmatmul.mubr.f32.gmra.mrb[0].mxu0 %v313
    %v384 = vpop.f32.mrb[0].mxu0
    %v385 = vadd.f32 %v310, %v384
    %v386 = vpop.f32.mrb[0].mxu0
    %387 = vmatprep.mubr.f32.mxu0 0.0
    %388 = vmatmul.mubr.f32.gmra.mrb[0].mxu0 %v316
    %v389 = vpop.f32.mrb[0].mxu0
    %v390 = vadd.f32 %v310, %v389
    %v391 = vpop.f32.mrb[0].mxu0
    %392 = vdwg.mxu0
    %394 = vrot.lane.b32.xlu0 %v385, 96
    %v395 = vpop.permute.xlu0 %394
    %vm396 = vcmask 64512
    %v397 = vsel %vm396, %v385, 0
    %v399 = vsel %vm396, %v395, 0
    %401 = vmatprep.subr.mxu0 0.0
    %402 = vmatpush1.xpose.msra.mxu0 %v399
    %403 = vmatprep.subr.mxu0 0.0
    %404 = vmatpush1.xpose.msra.mxu0 0.0
    %405 = vmatprep.subr.mxu0 0.0
    %406 = vmatpush1.xpose.msra.mxu0 0.0
    %407 = vmatprep.subr.mxu0 0.0
    %408 = vmatpush1.xpose.msra.mxu0 0.0
    %409 = vmatprep.subr.mxu0 0.0
    %410 = vmatpush1.xpose.msra.mxu0 0.0
    %411 = vmatprep.subr.mxu0 0.0
    %412 = vmatpush1.xpose.msra.mxu0 0.0
    %413 = vmatprep.subr.mxu0 0.0
    %414 = vmatpush1.xpose.msra.mxu0 0.0
    %415 = vmatprep.subr.mxu0 0.0
    %416 = vmatpush1.xpose.msra.mxu0 0.0
    %417 = vmatprep.subr.mxu0 0.0
    %418 = vmatpush1.xpose.msra.mxu0 0.0
    %419 = vmatprep.subr.mxu0 0.0
    %420 = vmatpush1.xpose.msra.mxu0 0.0
    %421 = vmatprep.subr.mxu0 0.0
    %422 = vmatpush1.xpose.msra.mxu0 0.0
    %423 = vmatprep.subr.mxu0 0.0
    %424 = vmatpush1.xpose.msra.mxu0 0.0
    %425 = vmatprep.subr.mxu0 0.0
    %426 = vmatpush1.xpose.msra.mxu0 0.0
    %427 = vmatprep.subr.mxu0 0.0
    %428 = vmatpush1.xpose.msra.mxu0 0.0
    %429 = vmatprep.subr.mxu0 0.0
    %430 = vmatpush1.xpose.msra.mxu0 0.0
    %431 = vmatprep.subr.mxu0 0.0
    %432 = vmatpush1.xpose.msra.mxu0 0.0
    %433 = vmatprep.subr.mxu0 0.0
    %434 = vmatpush1.xpose.msra.mxu0 0.0
    %435 = vmatprep.subr.mxu0 0.0
    %436 = vmatpush1.xpose.msra.mxu0 0.0
    %437 = vmatprep.subr.mxu0 0.0
    %438 = vmatpush1.xpose.msra.mxu0 0.0
    %439 = vmatprep.subr.mxu0 0.0
    %440 = vmatpush1.xpose.msra.mxu0 0.0
    %441 = vmatprep.subr.mxu0 0.0
    %442 = vmatpush1.xpose.msra.mxu0 0.0
    %443 = vmatprep.subr.mxu0 0.0
    %444 = vmatpush1.xpose.msra.mxu0 0.0
    %445 = vmatprep.subr.mxu0 0.0
    %446 = vmatpush1.xpose.msra.mxu0 0.0
    %447 = vmatprep.subr.mxu0 0.0
    %448 = vmatpush1.xpose.msra.mxu0 0.0
    %449 = vmatprep.subr.mxu0 0.0
    %450 = vmatpush1.xpose.msra.mxu0 0.0
    %451 = vmatprep.subr.mxu0 0.0
    %452 = vmatpush1.xpose.msra.mxu0 0.0
    %453 = vmatprep.subr.mxu0 0.0
    %454 = vmatpush1.xpose.msra.mxu0 0.0
    %455 = vmatprep.subr.mxu0 0.0
    %456 = vmatpush1.xpose.msra.mxu0 0.0
    %457 = vmatprep.subr.mxu0 0.0
    %458 = vmatpush1.xpose.msra.mxu0 0.0
    %459 = vmatprep.subr.mxu0 0.0
    %460 = vmatpush1.xpose.msra.mxu0 0.0
    %461 = vmatprep.subr.mxu0 0.0
    %462 = vmatpush1.xpose.msra.mxu0 0.0
    %463 = vmatprep.subr.mxu0 0.0
    %464 = vmatpush1.xpose.msra.mxu0 0.0
    %465 = vmatprep.mubr.f32.mxu0 0.0
    %466 = vmatmul.mubr.f32.gmra.mrb[0].mxu0 %v397
    %v467 = vpop.f32.mrb[0].mxu0
    %v468 = vadd.f32 0.0, %v467
    %v469 = vpop.f32.mrb[0].mxu0
    %470 = vdwg.mxu0
    %v471 = vmul.f32 %v468, 0.35355338
    %v472 = vlaneseq
    %v473 = vshrl.u32 %v472, 7
    %v474 = vsub.s32 0, %v473
    %v475 = vrot.slane %v300, %v474
    %v476 = vadd.f32 %v471, %v475
    %v477 = vsel %vm396, %v476, -inf
    %478 = vmax.xlane.f32.xlu0 %v477
    %v479 = vpop.xlane.xlu0 %478
    %v480 = vsub.f32 %v476, %v479
    %v481 = vmul.f32 %v480, 1.442695
    %v482 = vpow.pop %v481
    %v483 = vsel %vm396, %v482, 0.0
    %484 = vadd.xlane.f32.xlu0 %v483
    %v485 = vpop.xlane.xlu0 %484
    %v486 = vrcp.pop %v485
    %v487 = vmul.f32 %v482, %v486
    %488 = vrot.lane.b32.xlu0 %v385, 64
    %v489 = vpop.permute.xlu0 %488
    %v492 = vsel %vm396, %v487, 0
    %494 = vmatprep.subr.mxu0 0.0
    %495 = vmatpush1.msra.mxu0 %v489
    %496 = vmatprep.subr.mxu0 0.0
    %497 = vmatpush1.msra.mxu0 0.0
    %498 = vmatprep.subr.mxu0 0.0
    %499 = vmatpush1.msra.mxu0 0.0
    %500 = vmatprep.subr.mxu0 0.0
    %501 = vmatpush1.msra.mxu0 0.0
    %502 = vmatprep.subr.mxu0 0.0
    %503 = vmatpush1.msra.mxu0 0.0
    %504 = vmatprep.subr.mxu0 0.0
    %505 = vmatpush1.msra.mxu0 0.0
    %506 = vmatprep.subr.mxu0 0.0
    %507 = vmatpush1.msra.mxu0 0.0
    %508 = vmatprep.subr.mxu0 0.0
    %509 = vmatpush1.msra.mxu0 0.0
    %510 = vmatprep.subr.mxu0 0.0
    %511 = vmatpush1.msra.mxu0 0.0
    %512 = vmatprep.subr.mxu0 0.0
    %513 = vmatpush1.msra.mxu0 0.0
    %514 = vmatprep.subr.mxu0 0.0
    %515 = vmatpush1.msra.mxu0 0.0
    %516 = vmatprep.subr.mxu0 0.0
    %517 = vmatpush1.msra.mxu0 0.0
    %518 = vmatprep.subr.mxu0 0.0
    %519 = vmatpush1.msra.mxu0 0.0
    %520 = vmatprep.subr.mxu0 0.0
    %521 = vmatpush1.msra.mxu0 0.0
    %522 = vmatprep.subr.mxu0 0.0
    %523 = vmatpush1.msra.mxu0 0.0
    %524 = vmatprep.subr.mxu0 0.0
    %525 = vmatpush1.msra.mxu0 0.0
    %526 = vmatprep.subr.mxu0 0.0
    %527 = vmatpush1.msra.mxu0 0.0
    %528 = vmatprep.subr.mxu0 0.0
    %529 = vmatpush1.msra.mxu0 0.0
    %530 = vmatprep.subr.mxu0 0.0
    %531 = vmatpush1.msra.mxu0 0.0
    %532 = vmatprep.subr.mxu0 0.0
    %533 = vmatpush1.msra.mxu0 0.0
    %534 = vmatprep.subr.mxu0 0.0
    %535 = vmatpush1.msra.mxu0 0.0
    %536 = vmatprep.subr.mxu0 0.0
    %537 = vmatpush1.msra.mxu0 0.0
    %538 = vmatprep.subr.mxu0 0.0
    %539 = vmatpush1.msra.mxu0 0.0
    %540 = vmatprep.subr.mxu0 0.0
    %541 = vmatpush1.msra.mxu0 0.0
    %542 = vmatprep.subr.mxu0 0.0
    %543 = vmatpush1.msra.mxu0 0.0
    %544 = vmatprep.subr.mxu0 0.0
    %545 = vmatpush1.msra.mxu0 0.0
    %546 = vmatprep.subr.mxu0 0.0
    %547 = vmatpush1.msra.mxu0 0.0
    %548 = vmatprep.subr.mxu0 0.0
    %549 = vmatpush1.msra.mxu0 0.0
    %550 = vmatprep.subr.mxu0 0.0
    %551 = vmatpush1.msra.mxu0 0.0
    %552 = vmatprep.subr.mxu0 0.0
    %553 = vmatpush1.msra.mxu0 0.0
    %554 = vmatprep.subr.mxu0 0.0
    %555 = vmatpush1.msra.mxu0 0.0
    %556 = vmatprep.subr.mxu0 0.0
    %557 = vmatpush1.msra.mxu0 0.0
    %558 = vmatprep.mubr.f32.mxu0 0.0
    %559 = vmatmul.mubr.f32.gmra.mrb[0].mxu0 %v492
    %v560 = vpop.f32.mrb[0].mxu0
    %v561 = vadd.f32 0.0, %v560
    %v562 = vpop.f32.mrb[0].mxu0
    %563 = vdwg.mxu0
    %564 = vrot.lane.b32.xlu0 %v385, 120
    %v565 = vpop.permute.xlu0 %564
    %566 = vrot.lane.b32.xlu0 %v385, 88
    %v567 = vpop.permute.xlu0 %566
    %v568 = vsel %vm396, %v565, 0
    %v570 = vsel %vm396, %v567, 0
    %572 = vmatprep.subr.mxu0 0.0
    %573 = vmatpush1.xpose.msra.mxu0 %v570
    %574 = vmatprep.subr.mxu0 0.0
    %575 = vmatpush1.xpose.msra.mxu0 0.0
    %576 = vmatprep.subr.mxu0 0.0
    %577 = vmatpush1.xpose.msra.mxu0 0.0
    %578 = vmatprep.subr.mxu0 0.0
    %579 = vmatpush1.xpose.msra.mxu0 0.0
    %580 = vmatprep.subr.mxu0 0.0
    %581 = vmatpush1.xpose.msra.mxu0 0.0
    %582 = vmatprep.subr.mxu0 0.0
    %583 = vmatpush1.xpose.msra.mxu0 0.0
    %584 = vmatprep.subr.mxu0 0.0
    %585 = vmatpush1.xpose.msra.mxu0 0.0
    %586 = vmatprep.subr.mxu0 0.0
    %587 = vmatpush1.xpose.msra.mxu0 0.0
    %588 = vmatprep.subr.mxu0 0.0
    %589 = vmatpush1.xpose.msra.mxu0 0.0
    %590 = vmatprep.subr.mxu0 0.0
    %591 = vmatpush1.xpose.msra.mxu0 0.0
    %592 = vmatprep.subr.mxu0 0.0
    %593 = vmatpush1.xpose.msra.mxu0 0.0
    %594 = vmatprep.subr.mxu0 0.0
    %595 = vmatpush1.xpose.msra.mxu0 0.0
    %596 = vmatprep.subr.mxu0 0.0
    %597 = vmatpush1.xpose.msra.mxu0 0.0
    %598 = vmatprep.subr.mxu0 0.0
    %599 = vmatpush1.xpose.msra.mxu0 0.0
    %600 = vmatprep.subr.mxu0 0.0
    %601 = vmatpush1.xpose.msra.mxu0 0.0
    %602 = vmatprep.subr.mxu0 0.0
    %603 = vmatpush1.xpose.msra.mxu0 0.0
    %604 = vmatprep.subr.mxu0 0.0
    %605 = vmatpush1.xpose.msra.mxu0 0.0
    %606 = vmatprep.subr.mxu0 0.0
    %607 = vmatpush1.xpose.msra.mxu0 0.0
    %608 = vmatprep.subr.mxu0 0.0
    %609 = vmatpush1.xpose.msra.mxu0 0.0
    %610 = vmatprep.subr.mxu0 0.0
    %611 = vmatpush1.xpose.msra.mxu0 0.0
    %612 = vmatprep.subr.mxu0 0.0
    %613 = vmatpush1.xpose.msra.mxu0 0.0
    %614 = vmatprep.subr.mxu0 0.0
    %615 = vmatpush1.xpose.msra.mxu0 0.0
    %616 = vmatprep.subr.mxu0 0.0
    %617 = vmatpush1.xpose.msra.mxu0 0.0
    %618 = vmatprep.subr.mxu0 0.0
    %619 = vmatpush1.xpose.msra.mxu0 0.0
    %620 = vmatprep.subr.mxu0 0.0
    %621 = vmatpush1.xpose.msra.mxu0 0.0
    %622 = vmatprep.subr.mxu0 0.0
    %623 = vmatpush1.xpose.msra.mxu0 0.0
    %624 = vmatprep.subr.mxu0 0.0
    %625 = vmatpush1.xpose.msra.mxu0 0.0
    %626 = vmatprep.subr.mxu0 0.0
    %627 = vmatpush1.xpose.msra.mxu0 0.0
    %628 = vmatprep.subr.mxu0 0.0
    %629 = vmatpush1.xpose.msra.mxu0 0.0
    %630 = vmatprep.subr.mxu0 0.0
    %631 = vmatpush1.xpose.msra.mxu0 0.0
    %632 = vmatprep.subr.mxu0 0.0
    %633 = vmatpush1.xpose.msra.mxu0 0.0
    %634 = vmatprep.subr.mxu0 0.0
    %635 = vmatpush1.xpose.msra.mxu0 0.0
    %636 = vmatprep.mubr.f32.mxu0 0.0
    %637 = vmatmul.mubr.f32.gmra.mrb[0].mxu0 %v568
    %v638 = vpop.f32.mrb[0].mxu0
    %v639 = vadd.f32 0.0, %v638
    %v640 = vpop.f32.mrb[0].mxu0
    %641 = vdwg.mxu0
    %v642 = vmul.f32 %v639, 0.35355338
    %v643 = vadd.f32 %v642, %v475
    %v644 = vsel %vm396, %v643, -inf
    %645 = vmax.xlane.f32.xlu0 %v644
    %v646 = vpop.xlane.xlu0 %645
    %v647 = vsub.f32 %v643, %v646
    %v648 = vmul.f32 %v647, 1.442695
    %v649 = vpow.pop %v648
    %v650 = vsel %vm396, %v649, 0.0
    %651 = vadd.xlane.f32.xlu0 %v650
    %v652 = vpop.xlane.xlu0 %651
    %v653 = vrcp.pop %v652
    %v654 = vmul.f32 %v649, %v653
    %655 = vrot.lane.b32.xlu0 %v385, 56
    %v656 = vpop.permute.xlu0 %655
    %v659 = vsel %vm396, %v654, 0
    %661 = vmatprep.subr.mxu0 0.0
    %662 = vmatpush1.msra.mxu0 %v656
    %663 = vmatprep.subr.mxu0 0.0
    %664 = vmatpush1.msra.mxu0 0.0
    %665 = vmatprep.subr.mxu0 0.0
    %666 = vmatpush1.msra.mxu0 0.0
    %667 = vmatprep.subr.mxu0 0.0
    %668 = vmatpush1.msra.mxu0 0.0
    %669 = vmatprep.subr.mxu0 0.0
    %670 = vmatpush1.msra.mxu0 0.0
    %671 = vmatprep.subr.mxu0 0.0
    %672 = vmatpush1.msra.mxu0 0.0
    %673 = vmatprep.subr.mxu0 0.0
    %674 = vmatpush1.msra.mxu0 0.0
    %675 = vmatprep.subr.mxu0 0.0
    %676 = vmatpush1.msra.mxu0 0.0
    %677 = vmatprep.subr.mxu0 0.0
    %678 = vmatpush1.msra.mxu0 0.0
    %679 = vmatprep.subr.mxu0 0.0
    %680 = vmatpush1.msra.mxu0 0.0
    %681 = vmatprep.subr.mxu0 0.0
    %682 = vmatpush1.msra.mxu0 0.0
    %683 = vmatprep.subr.mxu0 0.0
    %684 = vmatpush1.msra.mxu0 0.0
    %685 = vmatprep.subr.mxu0 0.0
    %686 = vmatpush1.msra.mxu0 0.0
    %687 = vmatprep.subr.mxu0 0.0
    %688 = vmatpush1.msra.mxu0 0.0
    %689 = vmatprep.subr.mxu0 0.0
    %690 = vmatpush1.msra.mxu0 0.0
    %691 = vmatprep.subr.mxu0 0.0
    %692 = vmatpush1.msra.mxu0 0.0
    %693 = vmatprep.subr.mxu0 0.0
    %694 = vmatpush1.msra.mxu0 0.0
    %695 = vmatprep.subr.mxu0 0.0
    %696 = vmatpush1.msra.mxu0 0.0
    %697 = vmatprep.subr.mxu0 0.0
    %698 = vmatpush1.msra.mxu0 0.0
    %699 = vmatprep.subr.mxu0 0.0
    %700 = vmatpush1.msra.mxu0 0.0
    %701 = vmatprep.subr.mxu0 0.0
    %702 = vmatpush1.msra.mxu0 0.0
    %703 = vmatprep.subr.mxu0 0.0
    %704 = vmatpush1.msra.mxu0 0.0
    %705 = vmatprep.subr.mxu0 0.0
    %706 = vmatpush1.msra.mxu0 0.0
    %707 = vmatprep.subr.mxu0 0.0
    %708 = vmatpush1.msra.mxu0 0.0
    %709 = vmatprep.subr.mxu0 0.0
    %710 = vmatpush1.msra.mxu0 0.0
    %711 = vmatprep.subr.mxu0 0.0
    %712 = vmatpush1.msra.mxu0 0.0
    %713 = vmatprep.subr.mxu0 0.0
    %714 = vmatpush1.msra.mxu0 0.0
    %715 = vmatprep.subr.mxu0 0.0
    %716 = vmatpush1.msra.mxu0 0.0
    %717 = vmatprep.subr.mxu0 0.0
    %718 = vmatpush1.msra.mxu0 0.0
    %719 = vmatprep.subr.mxu0 0.0
    %720 = vmatpush1.msra.mxu0 0.0
    %721 = vmatprep.subr.mxu0 0.0
    %722 = vmatpush1.msra.mxu0 0.0
    %723 = vmatprep.subr.mxu0 0.0
    %724 = vmatpush1.msra.mxu0 0.0
    %725 = vmatprep.mubr.f32.mxu0 0.0
    %726 = vmatmul.mubr.f32.gmra.mrb[0].mxu0 %v659
    %v727 = vpop.f32.mrb[0].mxu0
    %v728 = vadd.f32 0.0, %v727
    %v729 = vpop.f32.mrb[0].mxu0
    %730 = vdwg.mxu0
    %731 = vrot.lane.b32.xlu0 %v385, 112
    %v732 = vpop.permute.xlu0 %731
    %733 = vrot.lane.b32.xlu0 %v385, 80
    %v734 = vpop.permute.xlu0 %733
    %v735 = vsel %vm396, %v732, 0
    %v737 = vsel %vm396, %v734, 0
    %739 = vmatprep.subr.mxu0 0.0
    %740 = vmatpush1.xpose.msra.mxu0 %v737
    %741 = vmatprep.subr.mxu0 0.0
    %742 = vmatpush1.xpose.msra.mxu0 0.0
    %743 = vmatprep.subr.mxu0 0.0
    %744 = vmatpush1.xpose.msra.mxu0 0.0
    %745 = vmatprep.subr.mxu0 0.0
    %746 = vmatpush1.xpose.msra.mxu0 0.0
    %747 = vmatprep.subr.mxu0 0.0
    %748 = vmatpush1.xpose.msra.mxu0 0.0
    %749 = vmatprep.subr.mxu0 0.0
    %750 = vmatpush1.xpose.msra.mxu0 0.0
    %751 = vmatprep.subr.mxu0 0.0
    %752 = vmatpush1.xpose.msra.mxu0 0.0
    %753 = vmatprep.subr.mxu0 0.0
    %754 = vmatpush1.xpose.msra.mxu0 0.0
    %755 = vmatprep.subr.mxu0 0.0
    %756 = vmatpush1.xpose.msra.mxu0 0.0
    %757 = vmatprep.subr.mxu0 0.0
    %758 = vmatpush1.xpose.msra.mxu0 0.0
    %759 = vmatprep.subr.mxu0 0.0
    %760 = vmatpush1.xpose.msra.mxu0 0.0
    %761 = vmatprep.subr.mxu0 0.0
    %762 = vmatpush1.xpose.msra.mxu0 0.0
    %763 = vmatprep.subr.mxu0 0.0
    %764 = vmatpush1.xpose.msra.mxu0 0.0
    %765 = vmatprep.subr.mxu0 0.0
    %766 = vmatpush1.xpose.msra.mxu0 0.0
    %767 = vmatprep.subr.mxu0 0.0
    %768 = vmatpush1.xpose.msra.mxu0 0.0
    %769 = vmatprep.subr.mxu0 0.0
    %770 = vmatpush1.xpose.msra.mxu0 0.0
    %771 = vmatprep.subr.mxu0 0.0
    %772 = vmatpush1.xpose.msra.mxu0 0.0
    %773 = vmatprep.subr.mxu0 0.0
    %774 = vmatpush1.xpose.msra.mxu0 0.0
    %775 = vmatprep.subr.mxu0 0.0
    %776 = vmatpush1.xpose.msra.mxu0 0.0
    %777 = vmatprep.subr.mxu0 0.0
    %778 = vmatpush1.xpose.msra.mxu0 0.0
    %779 = vmatprep.subr.mxu0 0.0
    %780 = vmatpush1.xpose.msra.mxu0 0.0
    %781 = vmatprep.subr.mxu0 0.0
    %782 = vmatpush1.xpose.msra.mxu0 0.0
    %783 = vmatprep.subr.mxu0 0.0
    %784 = vmatpush1.xpose.msra.mxu0 0.0
    %785 = vmatprep.subr.mxu0 0.0
    %786 = vmatpush1.xpose.msra.mxu0 0.0
    %787 = vmatprep.subr.mxu0 0.0
    %788 = vmatpush1.xpose.msra.mxu0 0.0
    %789 = vmatprep.subr.mxu0 0.0
    %790 = vmatpush1.xpose.msra.mxu0 0.0
    %791 = vmatprep.subr.mxu0 0.0
    %792 = vmatpush1.xpose.msra.mxu0 0.0
    %793 = vmatprep.subr.mxu0 0.0
    %794 = vmatpush1.xpose.msra.mxu0 0.0
    %795 = vmatprep.subr.mxu0 0.0
    %796 = vmatpush1.xpose.msra.mxu0 0.0
    %797 = vmatprep.subr.mxu0 0.0
    %798 = vmatpush1.xpose.msra.mxu0 0.0
    %799 = vmatprep.subr.mxu0 0.0
    %800 = vmatpush1.xpose.msra.mxu0 0.0
    %801 = vmatprep.subr.mxu0 0.0
    %802 = vmatpush1.xpose.msra.mxu0 0.0
    %803 = vmatprep.mubr.f32.mxu0 0.0
    %804 = vmatmul.mubr.f32.gmra.mrb[0].mxu0 %v735
    %v805 = vpop.f32.mrb[0].mxu0
    %v806 = vadd.f32 0.0, %v805
    %v807 = vpop.f32.mrb[0].mxu0
    %808 = vdwg.mxu0
    %v809 = vmul.f32 %v806, 0.35355338
    %v810 = vadd.f32 %v809, %v475
    %v811 = vsel %vm396, %v810, -inf
    %812 = vmax.xlane.f32.xlu0 %v811
    %v813 = vpop.xlane.xlu0 %812
    %v814 = vsub.f32 %v810, %v813
    %v815 = vmul.f32 %v814, 1.442695
    %v816 = vpow.pop %v815
    %v817 = vsel %vm396, %v816, 0.0
    %818 = vadd.xlane.f32.xlu0 %v817
    %v819 = vpop.xlane.xlu0 %818
    %v820 = vrcp.pop %v819
    %v821 = vmul.f32 %v816, %v820
    %822 = vrot.lane.b32.xlu0 %v385, 48
    %v823 = vpop.permute.xlu0 %822
    %v826 = vsel %vm396, %v821, 0
    %828 = vmatprep.subr.mxu0 0.0
    %829 = vmatpush1.msra.mxu0 %v823
    %830 = vmatprep.subr.mxu0 0.0
    %831 = vmatpush1.msra.mxu0 0.0
    %832 = vmatprep.subr.mxu0 0.0
    %833 = vmatpush1.msra.mxu0 0.0
    %834 = vmatprep.subr.mxu0 0.0
    %835 = vmatpush1.msra.mxu0 0.0
    %836 = vmatprep.subr.mxu0 0.0
    %837 = vmatpush1.msra.mxu0 0.0
    %838 = vmatprep.subr.mxu0 0.0
    %839 = vmatpush1.msra.mxu0 0.0
    %840 = vmatprep.subr.mxu0 0.0
    %841 = vmatpush1.msra.mxu0 0.0
    %842 = vmatprep.subr.mxu0 0.0
    %843 = vmatpush1.msra.mxu0 0.0
    %844 = vmatprep.subr.mxu0 0.0
    %845 = vmatpush1.msra.mxu0 0.0
    %846 = vmatprep.subr.mxu0 0.0
    %847 = vmatpush1.msra.mxu0 0.0
    %848 = vmatprep.subr.mxu0 0.0
    %849 = vmatpush1.msra.mxu0 0.0
    %850 = vmatprep.subr.mxu0 0.0
    %851 = vmatpush1.msra.mxu0 0.0
    %852 = vmatprep.subr.mxu0 0.0
    %853 = vmatpush1.msra.mxu0 0.0
    %854 = vmatprep.subr.mxu0 0.0
    %855 = vmatpush1.msra.mxu0 0.0
    %856 = vmatprep.subr.mxu0 0.0
    %857 = vmatpush1.msra.mxu0 0.0
    %858 = vmatprep.subr.mxu0 0.0
    %859 = vmatpush1.msra.mxu0 0.0
    %860 = vmatprep.subr.mxu0 0.0
    %861 = vmatpush1.msra.mxu0 0.0
    %862 = vmatprep.subr.mxu0 0.0
    %863 = vmatpush1.msra.mxu0 0.0
    %864 = vmatprep.subr.mxu0 0.0
    %865 = vmatpush1.msra.mxu0 0.0
    %866 = vmatprep.subr.mxu0 0.0
    %867 = vmatpush1.msra.mxu0 0.0
    %868 = vmatprep.subr.mxu0 0.0
    %869 = vmatpush1.msra.mxu0 0.0
    %870 = vmatprep.subr.mxu0 0.0
    %871 = vmatpush1.msra.mxu0 0.0
    %872 = vmatprep.subr.mxu0 0.0
    %873 = vmatpush1.msra.mxu0 0.0
    %874 = vmatprep.subr.mxu0 0.0
    %875 = vmatpush1.msra.mxu0 0.0
    %876 = vmatprep.subr.mxu0 0.0
    %877 = vmatpush1.msra.mxu0 0.0
    %878 = vmatprep.subr.mxu0 0.0
    %879 = vmatpush1.msra.mxu0 0.0
    %880 = vmatprep.subr.mxu0 0.0
    %881 = vmatpush1.msra.mxu0 0.0
    %882 = vmatprep.subr.mxu0 0.0
    %883 = vmatpush1.msra.mxu0 0.0
    %884 = vmatprep.subr.mxu0 0.0
    %885 = vmatpush1.msra.mxu0 0.0
    %886 = vmatprep.subr.mxu0 0.0
    %887 = vmatpush1.msra.mxu0 0.0
    %888 = vmatprep.subr.mxu0 0.0
    %889 = vmatpush1.msra.mxu0 0.0
    %890 = vmatprep.subr.mxu0 0.0
    %891 = vmatpush1.msra.mxu0 0.0
    %892 = vmatprep.mubr.f32.mxu0 0.0
    %893 = vmatmul.mubr.f32.gmra.mrb[0].mxu0 %v826
    %v894 = vpop.f32.mrb[0].mxu0
    %v895 = vadd.f32 0.0, %v894
    %v896 = vpop.f32.mrb[0].mxu0
    %897 = vdwg.mxu0
    %898 = vrot.lane.b32.xlu0 %v385, 104
    %v899 = vpop.permute.xlu0 %898
    %900 = vrot.lane.b32.xlu0 %v385, 72
    %v901 = vpop.permute.xlu0 %900
    %v902 = vsel %vm396, %v899, 0
    %v904 = vsel %vm396, %v901, 0
    %906 = vmatprep.subr.mxu0 0.0
    %907 = vmatpush1.xpose.msra.mxu0 %v904
    %908 = vmatprep.subr.mxu0 0.0
    %909 = vmatpush1.xpose.msra.mxu0 0.0
    %910 = vmatprep.subr.mxu0 0.0
    %911 = vmatpush1.xpose.msra.mxu0 0.0
    %912 = vmatprep.subr.mxu0 0.0
    %913 = vmatpush1.xpose.msra.mxu0 0.0
    %914 = vmatprep.subr.mxu0 0.0
    %915 = vmatpush1.xpose.msra.mxu0 0.0
    %916 = vmatprep.subr.mxu0 0.0
    %917 = vmatpush1.xpose.msra.mxu0 0.0
    %918 = vmatprep.subr.mxu0 0.0
    %919 = vmatpush1.xpose.msra.mxu0 0.0
    %920 = vmatprep.subr.mxu0 0.0
    %921 = vmatpush1.xpose.msra.mxu0 0.0
    %922 = vmatprep.subr.mxu0 0.0
    %923 = vmatpush1.xpose.msra.mxu0 0.0
    %924 = vmatprep.subr.mxu0 0.0
    %925 = vmatpush1.xpose.msra.mxu0 0.0
    %926 = vmatprep.subr.mxu0 0.0
    %927 = vmatpush1.xpose.msra.mxu0 0.0
    %928 = vmatprep.subr.mxu0 0.0
    %929 = vmatpush1.xpose.msra.mxu0 0.0
    %930 = vmatprep.subr.mxu0 0.0
    %931 = vmatpush1.xpose.msra.mxu0 0.0
    %932 = vmatprep.subr.mxu0 0.0
    %933 = vmatpush1.xpose.msra.mxu0 0.0
    %934 = vmatprep.subr.mxu0 0.0
    %935 = vmatpush1.xpose.msra.mxu0 0.0
    %936 = vmatprep.subr.mxu0 0.0
    %937 = vmatpush1.xpose.msra.mxu0 0.0
    %938 = vmatprep.subr.mxu0 0.0
    %939 = vmatpush1.xpose.msra.mxu0 0.0
    %940 = vmatprep.subr.mxu0 0.0
    %941 = vmatpush1.xpose.msra.mxu0 0.0
    %942 = vmatprep.subr.mxu0 0.0
    %943 = vmatpush1.xpose.msra.mxu0 0.0
    %944 = vmatprep.subr.mxu0 0.0
    %945 = vmatpush1.xpose.msra.mxu0 0.0
    %946 = vmatprep.subr.mxu0 0.0
    %947 = vmatpush1.xpose.msra.mxu0 0.0
    %948 = vmatprep.subr.mxu0 0.0
    %949 = vmatpush1.xpose.msra.mxu0 0.0
    %950 = vmatprep.subr.mxu0 0.0
    %951 = vmatpush1.xpose.msra.mxu0 0.0
    %952 = vmatprep.subr.mxu0 0.0
    %953 = vmatpush1.xpose.msra.mxu0 0.0
    %954 = vmatprep.subr.mxu0 0.0
    %955 = vmatpush1.xpose.msra.mxu0 0.0
    %956 = vmatprep.subr.mxu0 0.0
    %957 = vmatpush1.xpose.msra.mxu0 0.0
    %958 = vmatprep.subr.mxu0 0.0
    %959 = vmatpush1.xpose.msra.mxu0 0.0
    %960 = vmatprep.subr.mxu0 0.0
    %961 = vmatpush1.xpose.msra.mxu0 0.0
    %962 = vmatprep.subr.mxu0 0.0
    %963 = vmatpush1.xpose.msra.mxu0 0.0
    %964 = vmatprep.subr.mxu0 0.0
    %965 = vmatpush1.xpose.msra.mxu0 0.0
    %966 = vmatprep.subr.mxu0 0.0
    %967 = vmatpush1.xpose.msra.mxu0 0.0
    %968 = vmatprep.subr.mxu0 0.0
    %969 = vmatpush1.xpose.msra.mxu0 0.0
    %970 = vmatprep.mubr.f32.mxu0 0.0
    %971 = vmatmul.mubr.f32.gmra.mrb[0].mxu0 %v902
    %v972 = vpop.f32.mrb[0].mxu0
    %v973 = vadd.f32 0.0, %v972
    %v974 = vpop.f32.mrb[0].mxu0
    %975 = vdwg.mxu0
    %v976 = vmul.f32 %v973, 0.35355338
    %v977 = vadd.f32 %v976, %v475
    %v978 = vsel %vm396, %v977, -inf
    %979 = vmax.xlane.f32.xlu0 %v978
    %v980 = vpop.xlane.xlu0 %979
    %v981 = vsub.f32 %v977, %v980
    %v982 = vmul.f32 %v981, 1.442695
    %v983 = vpow.pop %v982
    %v984 = vsel %vm396, %v983, 0.0
    %985 = vadd.xlane.f32.xlu0 %v984
    %v986 = vpop.xlane.xlu0 %985
    %v987 = vrcp.pop %v986
    %v988 = vmul.f32 %v983, %v987
    %989 = vrot.lane.b32.xlu0 %v385, 40
    %v990 = vpop.permute.xlu0 %989
    %v993 = vsel %vm396, %v988, 0
    %995 = vmatprep.subr.mxu0 0.0
    %996 = vmatpush1.msra.mxu0 %v990
    %997 = vmatprep.subr.mxu0 0.0
    %998 = vmatpush1.msra.mxu0 0.0
    %999 = vmatprep.subr.mxu0 0.0
    %1000 = vmatpush1.msra.mxu0 0.0
    %1001 = vmatprep.subr.mxu0 0.0
    %1002 = vmatpush1.msra.mxu0 0.0
    %1003 = vmatprep.subr.mxu0 0.0
    %1004 = vmatpush1.msra.mxu0 0.0
    %1005 = vmatprep.subr.mxu0 0.0
    %1006 = vmatpush1.msra.mxu0 0.0
    %1007 = vmatprep.subr.mxu0 0.0
    %1008 = vmatpush1.msra.mxu0 0.0
    %1009 = vmatprep.subr.mxu0 0.0
    %1010 = vmatpush1.msra.mxu0 0.0
    %1011 = vmatprep.subr.mxu0 0.0
    %1012 = vmatpush1.msra.mxu0 0.0
    %1013 = vmatprep.subr.mxu0 0.0
    %1014 = vmatpush1.msra.mxu0 0.0
    %1015 = vmatprep.subr.mxu0 0.0
    %1016 = vmatpush1.msra.mxu0 0.0
    %1017 = vmatprep.subr.mxu0 0.0
    %1018 = vmatpush1.msra.mxu0 0.0
    %1019 = vmatprep.subr.mxu0 0.0
    %1020 = vmatpush1.msra.mxu0 0.0
    %1021 = vmatprep.subr.mxu0 0.0
    %1022 = vmatpush1.msra.mxu0 0.0
    %1023 = vmatprep.subr.mxu0 0.0
    %1024 = vmatpush1.msra.mxu0 0.0
    %1025 = vmatprep.subr.mxu0 0.0
    %1026 = vmatpush1.msra.mxu0 0.0
    %1027 = vmatprep.subr.mxu0 0.0
    %1028 = vmatpush1.msra.mxu0 0.0
    %1029 = vmatprep.subr.mxu0 0.0
    %1030 = vmatpush1.msra.mxu0 0.0
    %1031 = vmatprep.subr.mxu0 0.0
    %1032 = vmatpush1.msra.mxu0 0.0
    %1033 = vmatprep.subr.mxu0 0.0
    %1034 = vmatpush1.msra.mxu0 0.0
    %1035 = vmatprep.subr.mxu0 0.0
    %1036 = vmatpush1.msra.mxu0 0.0
    %1037 = vmatprep.subr.mxu0 0.0
    %1038 = vmatpush1.msra.mxu0 0.0
    %1039 = vmatprep.subr.mxu0 0.0
    %1040 = vmatpush1.msra.mxu0 0.0
    %1041 = vmatprep.subr.mxu0 0.0
    %1042 = vmatpush1.msra.mxu0 0.0
    %1043 = vmatprep.subr.mxu0 0.0
    %1044 = vmatpush1.msra.mxu0 0.0
    %1045 = vmatprep.subr.mxu0 0.0
    %1046 = vmatpush1.msra.mxu0 0.0
    %1047 = vmatprep.subr.mxu0 0.0
    %1048 = vmatpush1.msra.mxu0 0.0
    %1049 = vmatprep.subr.mxu0 0.0
    %1050 = vmatpush1.msra.mxu0 0.0
    %1051 = vmatprep.subr.mxu0 0.0
    %1052 = vmatpush1.msra.mxu0 0.0
    %1053 = vmatprep.subr.mxu0 0.0
    %1054 = vmatpush1.msra.mxu0 0.0
    %1055 = vmatprep.subr.mxu0 0.0
    %1056 = vmatpush1.msra.mxu0 0.0
    %1057 = vmatprep.subr.mxu0 0.0
    %1058 = vmatpush1.msra.mxu0 0.0
    %1059 = vmatprep.mubr.f32.mxu0 0.0
    %1060 = vmatmul.mubr.f32.gmra.mrb[0].mxu0 %v993
    %v1061 = vpop.f32.mrb[0].mxu0
    %v1062 = vadd.f32 0.0, %v1061
    %v1063 = vpop.f32.mrb[0].mxu0
    %1064 = vdwg.mxu0
    %1066 = vrot.lane.b32.xlu0 %v728, 8
    %v1067 = vpop.permute.xlu0 %1066
    %1070 = vrot.lane.b32.xlu0 %v895, 16
    %v1071 = vpop.permute.xlu0 %1070
    %1074 = vrot.lane.b32.xlu0 %v1062, 24
    %v1075 = vpop.permute.xlu0 %1074
    %v1077 = vsel %vm396, %v561, %v1067
    %vm1078 = vcmask 130048
    %v1079 = vsel %vm1078, %v1077, %v1071
    %vm1080 = vcmask 195584
    %v1081 = vsel %vm1080, %v1079, %v1075
    %1083 = vrot.lane.b32.xlu0 %v390, 96
    %v1084 = vpop.permute.xlu0 %1083
    %v1085 = vsel %vm396, %v390, 0
    %v1087 = vsel %vm396, %v1084, 0
    %1089 = vmatprep.subr.mxu0 0.0
    %1090 = vmatpush1.xpose.msra.mxu0 %v1087
    %1091 = vmatprep.subr.mxu0 0.0
    %1092 = vmatpush1.xpose.msra.mxu0 0.0
    %1093 = vmatprep.subr.mxu0 0.0
    %1094 = vmatpush1.xpose.msra.mxu0 0.0
    %1095 = vmatprep.subr.mxu0 0.0
    %1096 = vmatpush1.xpose.msra.mxu0 0.0
    %1097 = vmatprep.subr.mxu0 0.0
    %1098 = vmatpush1.xpose.msra.mxu0 0.0
    %1099 = vmatprep.subr.mxu0 0.0
    %1100 = vmatpush1.xpose.msra.mxu0 0.0
    %1101 = vmatprep.subr.mxu0 0.0
    %1102 = vmatpush1.xpose.msra.mxu0 0.0
    %1103 = vmatprep.subr.mxu0 0.0
    %1104 = vmatpush1.xpose.msra.mxu0 0.0
    %1105 = vmatprep.subr.mxu0 0.0
    %1106 = vmatpush1.xpose.msra.mxu0 0.0
    %1107 = vmatprep.subr.mxu0 0.0
    %1108 = vmatpush1.xpose.msra.mxu0 0.0
    %1109 = vmatprep.subr.mxu0 0.0
    %1110 = vmatpush1.xpose.msra.mxu0 0.0
    %1111 = vmatprep.subr.mxu0 0.0
    %1112 = vmatpush1.xpose.msra.mxu0 0.0
    %1113 = vmatprep.subr.mxu0 0.0
    %1114 = vmatpush1.xpose.msra.mxu0 0.0
    %1115 = vmatprep.subr.mxu0 0.0
    %1116 = vmatpush1.xpose.msra.mxu0 0.0
    %1117 = vmatprep.subr.mxu0 0.0
    %1118 = vmatpush1.xpose.msra.mxu0 0.0
    %1119 = vmatprep.subr.mxu0 0.0
    %1120 = vmatpush1.xpose.msra.mxu0 0.0
    %1121 = vmatprep.subr.mxu0 0.0
    %1122 = vmatpush1.xpose.msra.mxu0 0.0
    %1123 = vmatprep.subr.mxu0 0.0
    %1124 = vmatpush1.xpose.msra.mxu0 0.0
    %1125 = vmatprep.subr.mxu0 0.0
    %1126 = vmatpush1.xpose.msra.mxu0 0.0
    %1127 = vmatprep.subr.mxu0 0.0
    %1128 = vmatpush1.xpose.msra.mxu0 0.0
    %1129 = vmatprep.subr.mxu0 0.0
    %1130 = vmatpush1.xpose.msra.mxu0 0.0
    %1131 = vmatprep.subr.mxu0 0.0
    %1132 = vmatpush1.xpose.msra.mxu0 0.0
    %1133 = vmatprep.subr.mxu0 0.0
    %1134 = vmatpush1.xpose.msra.mxu0 0.0
    %1135 = vmatprep.subr.mxu0 0.0
    %1136 = vmatpush1.xpose.msra.mxu0 0.0
    %1137 = vmatprep.subr.mxu0 0.0
    %1138 = vmatpush1.xpose.msra.mxu0 0.0
    %1139 = vmatprep.subr.mxu0 0.0
    %1140 = vmatpush1.xpose.msra.mxu0 0.0
    %1141 = vmatprep.subr.mxu0 0.0
    %1142 = vmatpush1.xpose.msra.mxu0 0.0
    %1143 = vmatprep.subr.mxu0 0.0
    %1144 = vmatpush1.xpose.msra.mxu0 0.0
    %1145 = vmatprep.subr.mxu0 0.0
    %1146 = vmatpush1.xpose.msra.mxu0 0.0
    %1147 = vmatprep.subr.mxu0 0.0
    %1148 = vmatpush1.xpose.msra.mxu0 0.0
    %1149 = vmatprep.subr.mxu0 0.0
    %1150 = vmatpush1.xpose.msra.mxu0 0.0
    %1151 = vmatprep.subr.mxu0 0.0
    %1152 = vmatpush1.xpose.msra.mxu0 0.0
    %1153 = vmatprep.mubr.f32.mxu0 0.0
    %1154 = vmatmul.mubr.f32.gmra.mrb[0].mxu0 %v1085
    %v1155 = vpop.f32.mrb[0].mxu0
    %v1156 = vadd.f32 0.0, %v1155
    %v1157 = vpop.f32.mrb[0].mxu0
    %1158 = vdwg.mxu0
    %v1159 = vmul.f32 %v1156, 0.35355338
    %v1160 = vlaneseq
    %v1161 = vshrl.u32 %v1160, 7
    %v1162 = vsub.s32 1, %v1161
    %v1163 = vrot.slane %v300, %v1162
    %v1164 = vadd.f32 %v1159, %v1163
    %v1165 = vsel %vm396, %v1164, -inf
    %1166 = vmax.xlane.f32.xlu0 %v1165
    %v1167 = vpop.xlane.xlu0 %1166
    %v1168 = vsub.f32 %v1164, %v1167
    %v1169 = vmul.f32 %v1168, 1.442695
    %v1170 = vpow.pop %v1169
    %v1171 = vsel %vm396, %v1170, 0.0
    %1172 = vadd.xlane.f32.xlu0 %v1171
    %v1173 = vpop.xlane.xlu0 %1172
    %v1174 = vrcp.pop %v1173
    %v1175 = vmul.f32 %v1170, %v1174
    %1176 = vrot.lane.b32.xlu0 %v390, 64
    %v1177 = vpop.permute.xlu0 %1176
    %v1180 = vsel %vm396, %v1175, 0
    %1182 = vmatprep.subr.mxu0 0.0
    %1183 = vmatpush1.msra.mxu0 %v1177
    %1184 = vmatprep.subr.mxu0 0.0
    %1185 = vmatpush1.msra.mxu0 0.0
    %1186 = vmatprep.subr.mxu0 0.0
    %1187 = vmatpush1.msra.mxu0 0.0
    %1188 = vmatprep.subr.mxu0 0.0
    %1189 = vmatpush1.msra.mxu0 0.0
    %1190 = vmatprep.subr.mxu0 0.0
    %1191 = vmatpush1.msra.mxu0 0.0
    %1192 = vmatprep.subr.mxu0 0.0
    %1193 = vmatpush1.msra.mxu0 0.0
    %1194 = vmatprep.subr.mxu0 0.0
    %1195 = vmatpush1.msra.mxu0 0.0
    %1196 = vmatprep.subr.mxu0 0.0
    %1197 = vmatpush1.msra.mxu0 0.0
    %1198 = vmatprep.subr.mxu0 0.0
    %1199 = vmatpush1.msra.mxu0 0.0
    %1200 = vmatprep.subr.mxu0 0.0
    %1201 = vmatpush1.msra.mxu0 0.0
    %1202 = vmatprep.subr.mxu0 0.0
    %1203 = vmatpush1.msra.mxu0 0.0
    %1204 = vmatprep.subr.mxu0 0.0
    %1205 = vmatpush1.msra.mxu0 0.0
    %1206 = vmatprep.subr.mxu0 0.0
    %1207 = vmatpush1.msra.mxu0 0.0
    %1208 = vmatprep.subr.mxu0 0.0
    %1209 = vmatpush1.msra.mxu0 0.0
    %1210 = vmatprep.subr.mxu0 0.0
    %1211 = vmatpush1.msra.mxu0 0.0
    %1212 = vmatprep.subr.mxu0 0.0
    %1213 = vmatpush1.msra.mxu0 0.0
    %1214 = vmatprep.subr.mxu0 0.0
    %1215 = vmatpush1.msra.mxu0 0.0
    %1216 = vmatprep.subr.mxu0 0.0
    %1217 = vmatpush1.msra.mxu0 0.0
    %1218 = vmatprep.subr.mxu0 0.0
    %1219 = vmatpush1.msra.mxu0 0.0
    %1220 = vmatprep.subr.mxu0 0.0
    %1221 = vmatpush1.msra.mxu0 0.0
    %1222 = vmatprep.subr.mxu0 0.0
    %1223 = vmatpush1.msra.mxu0 0.0
    %1224 = vmatprep.subr.mxu0 0.0
    %1225 = vmatpush1.msra.mxu0 0.0
    %1226 = vmatprep.subr.mxu0 0.0
    %1227 = vmatpush1.msra.mxu0 0.0
    %1228 = vmatprep.subr.mxu0 0.0
    %1229 = vmatpush1.msra.mxu0 0.0
    %1230 = vmatprep.subr.mxu0 0.0
    %1231 = vmatpush1.msra.mxu0 0.0
    %1232 = vmatprep.subr.mxu0 0.0
    %1233 = vmatpush1.msra.mxu0 0.0
    %1234 = vmatprep.subr.mxu0 0.0
    %1235 = vmatpush1.msra.mxu0 0.0
    %1236 = vmatprep.subr.mxu0 0.0
    %1237 = vmatpush1.msra.mxu0 0.0
    %1238 = vmatprep.subr.mxu0 0.0
    %1239 = vmatpush1.msra.mxu0 0.0
    %1240 = vmatprep.subr.mxu0 0.0
    %1241 = vmatpush1.msra.mxu0 0.0
    %1242 = vmatprep.subr.mxu0 0.0
    %1243 = vmatpush1.msra.mxu0 0.0
    %1244 = vmatprep.subr.mxu0 0.0
    %1245 = vmatpush1.msra.mxu0 0.0
    %1246 = vmatprep.mubr.f32.mxu0 0.0
    %1247 = vmatmul.mubr.f32.gmra.mrb[0].mxu0 %v1180
    %v1248 = vpop.f32.mrb[0].mxu0
    %v1249 = vadd.f32 0.0, %v1248
    %v1250 = vpop.f32.mrb[0].mxu0
    %1251 = vdwg.mxu0
    %1252 = vrot.lane.b32.xlu0 %v390, 120
    %v1253 = vpop.permute.xlu0 %1252
    %1254 = vrot.lane.b32.xlu0 %v390, 88
    %v1255 = vpop.permute.xlu0 %1254
    %v1256 = vsel %vm396, %v1253, 0
    %v1258 = vsel %vm396, %v1255, 0
    %1260 = vmatprep.subr.mxu0 0.0
    %1261 = vmatpush1.xpose.msra.mxu0 %v1258
    %1262 = vmatprep.subr.mxu0 0.0
    %1263 = vmatpush1.xpose.msra.mxu0 0.0
    %1264 = vmatprep.subr.mxu0 0.0
    %1265 = vmatpush1.xpose.msra.mxu0 0.0
    %1266 = vmatprep.subr.mxu0 0.0
    %1267 = vmatpush1.xpose.msra.mxu0 0.0
    %1268 = vmatprep.subr.mxu0 0.0
    %1269 = vmatpush1.xpose.msra.mxu0 0.0
    %1270 = vmatprep.subr.mxu0 0.0
    %1271 = vmatpush1.xpose.msra.mxu0 0.0
    %1272 = vmatprep.subr.mxu0 0.0
    %1273 = vmatpush1.xpose.msra.mxu0 0.0
    %1274 = vmatprep.subr.mxu0 0.0
    %1275 = vmatpush1.xpose.msra.mxu0 0.0
    %1276 = vmatprep.subr.mxu0 0.0
    %1277 = vmatpush1.xpose.msra.mxu0 0.0
    %1278 = vmatprep.subr.mxu0 0.0
    %1279 = vmatpush1.xpose.msra.mxu0 0.0
    %1280 = vmatprep.subr.mxu0 0.0
    %1281 = vmatpush1.xpose.msra.mxu0 0.0
    %1282 = vmatprep.subr.mxu0 0.0
    %1283 = vmatpush1.xpose.msra.mxu0 0.0
    %1284 = vmatprep.subr.mxu0 0.0
    %1285 = vmatpush1.xpose.msra.mxu0 0.0
    %1286 = vmatprep.subr.mxu0 0.0
    %1287 = vmatpush1.xpose.msra.mxu0 0.0
    %1288 = vmatprep.subr.mxu0 0.0
    %1289 = vmatpush1.xpose.msra.mxu0 0.0
    %1290 = vmatprep.subr.mxu0 0.0
    %1291 = vmatpush1.xpose.msra.mxu0 0.0
    %1292 = vmatprep.subr.mxu0 0.0
    %1293 = vmatpush1.xpose.msra.mxu0 0.0
    %1294 = vmatprep.subr.mxu0 0.0
    %1295 = vmatpush1.xpose.msra.mxu0 0.0
    %1296 = vmatprep.subr.mxu0 0.0
    %1297 = vmatpush1.xpose.msra.mxu0 0.0
    %1298 = vmatprep.subr.mxu0 0.0
    %1299 = vmatpush1.xpose.msra.mxu0 0.0
    %1300 = vmatprep.subr.mxu0 0.0
    %1301 = vmatpush1.xpose.msra.mxu0 0.0
    %1302 = vmatprep.subr.mxu0 0.0
    %1303 = vmatpush1.xpose.msra.mxu0 0.0
    %1304 = vmatprep.subr.mxu0 0.0
    %1305 = vmatpush1.xpose.msra.mxu0 0.0
    %1306 = vmatprep.subr.mxu0 0.0
    %1307 = vmatpush1.xpose.msra.mxu0 0.0
    %1308 = vmatprep.subr.mxu0 0.0
    %1309 = vmatpush1.xpose.msra.mxu0 0.0
    %1310 = vmatprep.subr.mxu0 0.0
    %1311 = vmatpush1.xpose.msra.mxu0 0.0
    %1312 = vmatprep.subr.mxu0 0.0
    %1313 = vmatpush1.xpose.msra.mxu0 0.0
    %1314 = vmatprep.subr.mxu0 0.0
    %1315 = vmatpush1.xpose.msra.mxu0 0.0
    %1316 = vmatprep.subr.mxu0 0.0
    %1317 = vmatpush1.xpose.msra.mxu0 0.0
    %1318 = vmatprep.subr.mxu0 0.0
    %1319 = vmatpush1.xpose.msra.mxu0 0.0
    %1320 = vmatprep.subr.mxu0 0.0
    %1321 = vmatpush1.xpose.msra.mxu0 0.0
    %1322 = vmatprep.subr.mxu0 0.0
    %1323 = vmatpush1.xpose.msra.mxu0 0.0
    %1324 = vmatprep.mubr.f32.mxu0 0.0
    %1325 = vmatmul.mubr.f32.gmra.mrb[0].mxu0 %v1256
    %v1326 = vpop.f32.mrb[0].mxu0
    %v1327 = vadd.f32 0.0, %v1326
    %v1328 = vpop.f32.mrb[0].mxu0
    %1329 = vdwg.mxu0
    %v1330 = vmul.f32 %v1327, 0.35355338
    %v1331 = vadd.f32 %v1330, %v1163
    %v1332 = vsel %vm396, %v1331, -inf
    %1333 = vmax.xlane.f32.xlu0 %v1332
    %v1334 = vpop.xlane.xlu0 %1333
    %v1335 = vsub.f32 %v1331, %v1334
    %v1336 = vmul.f32 %v1335, 1.442695
    %v1337 = vpow.pop %v1336
    %v1338 = vsel %vm396, %v1337, 0.0
    %1339 = vadd.xlane.f32.xlu0 %v1338
    %v1340 = vpop.xlane.xlu0 %1339
    %v1341 = vrcp.pop %v1340
    %v1342 = vmul.f32 %v1337, %v1341
    %1343 = vrot.lane.b32.xlu0 %v390, 56
    %v1344 = vpop.permute.xlu0 %1343
    %v1347 = vsel %vm396, %v1342, 0
    %1349 = vmatprep.subr.mxu0 0.0
    %1350 = vmatpush1.msra.mxu0 %v1344
    %1351 = vmatprep.subr.mxu0 0.0
    %1352 = vmatpush1.msra.mxu0 0.0
    %1353 = vmatprep.subr.mxu0 0.0
    %1354 = vmatpush1.msra.mxu0 0.0
    %1355 = vmatprep.subr.mxu0 0.0
    %1356 = vmatpush1.msra.mxu0 0.0
    %1357 = vmatprep.subr.mxu0 0.0
    %1358 = vmatpush1.msra.mxu0 0.0
    %1359 = vmatprep.subr.mxu0 0.0
    %1360 = vmatpush1.msra.mxu0 0.0
    %1361 = vmatprep.subr.mxu0 0.0
    %1362 = vmatpush1.msra.mxu0 0.0
    %1363 = vmatprep.subr.mxu0 0.0
    %1364 = vmatpush1.msra.mxu0 0.0
    %1365 = vmatprep.subr.mxu0 0.0
    %1366 = vmatpush1.msra.mxu0 0.0
    %1367 = vmatprep.subr.mxu0 0.0
    %1368 = vmatpush1.msra.mxu0 0.0
    %1369 = vmatprep.subr.mxu0 0.0
    %1370 = vmatpush1.msra.mxu0 0.0
    %1371 = vmatprep.subr.mxu0 0.0
    %1372 = vmatpush1.msra.mxu0 0.0
    %1373 = vmatprep.subr.mxu0 0.0
    %1374 = vmatpush1.msra.mxu0 0.0
    %1375 = vmatprep.subr.mxu0 0.0
    %1376 = vmatpush1.msra.mxu0 0.0
    %1377 = vmatprep.subr.mxu0 0.0
    %1378 = vmatpush1.msra.mxu0 0.0
    %1379 = vmatprep.subr.mxu0 0.0
    %1380 = vmatpush1.msra.mxu0 0.0
    %1381 = vmatprep.subr.mxu0 0.0
    %1382 = vmatpush1.msra.mxu0 0.0
    %1383 = vmatprep.subr.mxu0 0.0
    %1384 = vmatpush1.msra.mxu0 0.0
    %1385 = vmatprep.subr.mxu0 0.0
    %1386 = vmatpush1.msra.mxu0 0.0
    %1387 = vmatprep.subr.mxu0 0.0
    %1388 = vmatpush1.msra.mxu0 0.0
    %1389 = vmatprep.subr.mxu0 0.0
    %1390 = vmatpush1.msra.mxu0 0.0
    %1391 = vmatprep.subr.mxu0 0.0
    %1392 = vmatpush1.msra.mxu0 0.0
    %1393 = vmatprep.subr.mxu0 0.0
    %1394 = vmatpush1.msra.mxu0 0.0
    %1395 = vmatprep.subr.mxu0 0.0
    %1396 = vmatpush1.msra.mxu0 0.0
    %1397 = vmatprep.subr.mxu0 0.0
    %1398 = vmatpush1.msra.mxu0 0.0
    %1399 = vmatprep.subr.mxu0 0.0
    %1400 = vmatpush1.msra.mxu0 0.0
    %1401 = vmatprep.subr.mxu0 0.0
    %1402 = vmatpush1.msra.mxu0 0.0
    %1403 = vmatprep.subr.mxu0 0.0
    %1404 = vmatpush1.msra.mxu0 0.0
    %1405 = vmatprep.subr.mxu0 0.0
    %1406 = vmatpush1.msra.mxu0 0.0
    %1407 = vmatprep.subr.mxu0 0.0
    %1408 = vmatpush1.msra.mxu0 0.0
    %1409 = vmatprep.subr.mxu0 0.0
    %1410 = vmatpush1.msra.mxu0 0.0
    %1411 = vmatprep.subr.mxu0 0.0
    %1412 = vmatpush1.msra.mxu0 0.0
    %1413 = vmatprep.mubr.f32.mxu0 0.0
    %1414 = vmatmul.mubr.f32.gmra.mrb[0].mxu0 %v1347
    %v1415 = vpop.f32.mrb[0].mxu0
    %v1416 = vadd.f32 0.0, %v1415
    %v1417 = vpop.f32.mrb[0].mxu0
    %1418 = vdwg.mxu0
    %1419 = vrot.lane.b32.xlu0 %v390, 112
    %v1420 = vpop.permute.xlu0 %1419
    %1421 = vrot.lane.b32.xlu0 %v390, 80
    %v1422 = vpop.permute.xlu0 %1421
    %v1423 = vsel %vm396, %v1420, 0
    %v1425 = vsel %vm396, %v1422, 0
    %1427 = vmatprep.subr.mxu0 0.0
    %1428 = vmatpush1.xpose.msra.mxu0 %v1425
    %1429 = vmatprep.subr.mxu0 0.0
    %1430 = vmatpush1.xpose.msra.mxu0 0.0
    %1431 = vmatprep.subr.mxu0 0.0
    %1432 = vmatpush1.xpose.msra.mxu0 0.0
    %1433 = vmatprep.subr.mxu0 0.0
    %1434 = vmatpush1.xpose.msra.mxu0 0.0
    %1435 = vmatprep.subr.mxu0 0.0
    %1436 = vmatpush1.xpose.msra.mxu0 0.0
    %1437 = vmatprep.subr.mxu0 0.0
    %1438 = vmatpush1.xpose.msra.mxu0 0.0
    %1439 = vmatprep.subr.mxu0 0.0
    %1440 = vmatpush1.xpose.msra.mxu0 0.0
    %1441 = vmatprep.subr.mxu0 0.0
    %1442 = vmatpush1.xpose.msra.mxu0 0.0
    %1443 = vmatprep.subr.mxu0 0.0
    %1444 = vmatpush1.xpose.msra.mxu0 0.0
    %1445 = vmatprep.subr.mxu0 0.0
    %1446 = vmatpush1.xpose.msra.mxu0 0.0
    %1447 = vmatprep.subr.mxu0 0.0
    %1448 = vmatpush1.xpose.msra.mxu0 0.0
    %1449 = vmatprep.subr.mxu0 0.0
    %1450 = vmatpush1.xpose.msra.mxu0 0.0
    %1451 = vmatprep.subr.mxu0 0.0
    %1452 = vmatpush1.xpose.msra.mxu0 0.0
    %1453 = vmatprep.subr.mxu0 0.0
    %1454 = vmatpush1.xpose.msra.mxu0 0.0
    %1455 = vmatprep.subr.mxu0 0.0
    %1456 = vmatpush1.xpose.msra.mxu0 0.0
    %1457 = vmatprep.subr.mxu0 0.0
    %1458 = vmatpush1.xpose.msra.mxu0 0.0
    %1459 = vmatprep.subr.mxu0 0.0
    %1460 = vmatpush1.xpose.msra.mxu0 0.0
    %1461 = vmatprep.subr.mxu0 0.0
    %1462 = vmatpush1.xpose.msra.mxu0 0.0
    %1463 = vmatprep.subr.mxu0 0.0
    %1464 = vmatpush1.xpose.msra.mxu0 0.0
    %1465 = vmatprep.subr.mxu0 0.0
    %1466 = vmatpush1.xpose.msra.mxu0 0.0
    %1467 = vmatprep.subr.mxu0 0.0
    %1468 = vmatpush1.xpose.msra.mxu0 0.0
    %1469 = vmatprep.subr.mxu0 0.0
    %1470 = vmatpush1.xpose.msra.mxu0 0.0
    %1471 = vmatprep.subr.mxu0 0.0
    %1472 = vmatpush1.xpose.msra.mxu0 0.0
    %1473 = vmatprep.subr.mxu0 0.0
    %1474 = vmatpush1.xpose.msra.mxu0 0.0
    %1475 = vmatprep.subr.mxu0 0.0
    %1476 = vmatpush1.xpose.msra.mxu0 0.0
    %1477 = vmatprep.subr.mxu0 0.0
    %1478 = vmatpush1.xpose.msra.mxu0 0.0
    %1479 = vmatprep.subr.mxu0 0.0
    %1480 = vmatpush1.xpose.msra.mxu0 0.0
    %1481 = vmatprep.subr.mxu0 0.0
    %1482 = vmatpush1.xpose.msra.mxu0 0.0
    %1483 = vmatprep.subr.mxu0 0.0
    %1484 = vmatpush1.xpose.msra.mxu0 0.0
    %1485 = vmatprep.subr.mxu0 0.0
    %1486 = vmatpush1.xpose.msra.mxu0 0.0
    %1487 = vmatprep.subr.mxu0 0.0
    %1488 = vmatpush1.xpose.msra.mxu0 0.0
    %1489 = vmatprep.subr.mxu0 0.0
    %1490 = vmatpush1.xpose.msra.mxu0 0.0
    %1491 = vmatprep.mubr.f32.mxu0 0.0
    %1492 = vmatmul.mubr.f32.gmra.mrb[0].mxu0 %v1423
    %v1493 = vpop.f32.mrb[0].mxu0
    %v1494 = vadd.f32 0.0, %v1493
    %v1495 = vpop.f32.mrb[0].mxu0
    %1496 = vdwg.mxu0
    %v1497 = vmul.f32 %v1494, 0.35355338
    %v1498 = vadd.f32 %v1497, %v1163
    %v1499 = vsel %vm396, %v1498, -inf
    %1500 = vmax.xlane.f32.xlu0 %v1499
    %v1501 = vpop.xlane.xlu0 %1500
    %v1502 = vsub.f32 %v1498, %v1501
    %v1503 = vmul.f32 %v1502, 1.442695
    %v1504 = vpow.pop %v1503
    %v1505 = vsel %vm396, %v1504, 0.0
    %1506 = vadd.xlane.f32.xlu0 %v1505
    %v1507 = vpop.xlane.xlu0 %1506
    %v1508 = vrcp.pop %v1507
    %v1509 = vmul.f32 %v1504, %v1508
    %1510 = vrot.lane.b32.xlu0 %v390, 48
    %v1511 = vpop.permute.xlu0 %1510
    %v1514 = vsel %vm396, %v1509, 0
    %1516 = vmatprep.subr.mxu0 0.0
    %1517 = vmatpush1.msra.mxu0 %v1511
    %1518 = vmatprep.subr.mxu0 0.0
    %1519 = vmatpush1.msra.mxu0 0.0
    %1520 = vmatprep.subr.mxu0 0.0
    %1521 = vmatpush1.msra.mxu0 0.0
    %1522 = vmatprep.subr.mxu0 0.0
    %1523 = vmatpush1.msra.mxu0 0.0
    %1524 = vmatprep.subr.mxu0 0.0
    %1525 = vmatpush1.msra.mxu0 0.0
    %1526 = vmatprep.subr.mxu0 0.0
    %1527 = vmatpush1.msra.mxu0 0.0
    %1528 = vmatprep.subr.mxu0 0.0
    %1529 = vmatpush1.msra.mxu0 0.0
    %1530 = vmatprep.subr.mxu0 0.0
    %1531 = vmatpush1.msra.mxu0 0.0
    %1532 = vmatprep.subr.mxu0 0.0
    %1533 = vmatpush1.msra.mxu0 0.0
    %1534 = vmatprep.subr.mxu0 0.0
    %1535 = vmatpush1.msra.mxu0 0.0
    %1536 = vmatprep.subr.mxu0 0.0
    %1537 = vmatpush1.msra.mxu0 0.0
    %1538 = vmatprep.subr.mxu0 0.0
    %1539 = vmatpush1.msra.mxu0 0.0
    %1540 = vmatprep.subr.mxu0 0.0
    %1541 = vmatpush1.msra.mxu0 0.0
    %1542 = vmatprep.subr.mxu0 0.0
    %1543 = vmatpush1.msra.mxu0 0.0
    %1544 = vmatprep.subr.mxu0 0.0
    %1545 = vmatpush1.msra.mxu0 0.0
    %1546 = vmatprep.subr.mxu0 0.0
    %1547 = vmatpush1.msra.mxu0 0.0
    %1548 = vmatprep.subr.mxu0 0.0
    %1549 = vmatpush1.msra.mxu0 0.0
    %1550 = vmatprep.subr.mxu0 0.0
    %1551 = vmatpush1.msra.mxu0 0.0
    %1552 = vmatprep.subr.mxu0 0.0
    %1553 = vmatpush1.msra.mxu0 0.0
    %1554 = vmatprep.subr.mxu0 0.0
    %1555 = vmatpush1.msra.mxu0 0.0
    %1556 = vmatprep.subr.mxu0 0.0
    %1557 = vmatpush1.msra.mxu0 0.0
    %1558 = vmatprep.subr.mxu0 0.0
    %1559 = vmatpush1.msra.mxu0 0.0
    %1560 = vmatprep.subr.mxu0 0.0
    %1561 = vmatpush1.msra.mxu0 0.0
    %1562 = vmatprep.subr.mxu0 0.0
    %1563 = vmatpush1.msra.mxu0 0.0
    %1564 = vmatprep.subr.mxu0 0.0
    %1565 = vmatpush1.msra.mxu0 0.0
    %1566 = vmatprep.subr.mxu0 0.0
    %1567 = vmatpush1.msra.mxu0 0.0
    %1568 = vmatprep.subr.mxu0 0.0
    %1569 = vmatpush1.msra.mxu0 0.0
    %1570 = vmatprep.subr.mxu0 0.0
    %1571 = vmatpush1.msra.mxu0 0.0
    %1572 = vmatprep.subr.mxu0 0.0
    %1573 = vmatpush1.msra.mxu0 0.0
    %1574 = vmatprep.subr.mxu0 0.0
    %1575 = vmatpush1.msra.mxu0 0.0
    %1576 = vmatprep.subr.mxu0 0.0
    %1577 = vmatpush1.msra.mxu0 0.0
    %1578 = vmatprep.subr.mxu0 0.0
    %1579 = vmatpush1.msra.mxu0 0.0
    %1580 = vmatprep.mubr.f32.mxu0 0.0
    %1581 = vmatmul.mubr.f32.gmra.mrb[0].mxu0 %v1514
    %v1582 = vpop.f32.mrb[0].mxu0
    %v1583 = vadd.f32 0.0, %v1582
    %v1584 = vpop.f32.mrb[0].mxu0
    %1585 = vdwg.mxu0
    %1586 = vrot.lane.b32.xlu0 %v390, 104
    %v1587 = vpop.permute.xlu0 %1586
    %1588 = vrot.lane.b32.xlu0 %v390, 72
    %v1589 = vpop.permute.xlu0 %1588
    %v1590 = vsel %vm396, %v1587, 0
    %v1592 = vsel %vm396, %v1589, 0
    %1594 = vmatprep.subr.mxu0 0.0
    %1595 = vmatpush1.xpose.msra.mxu0 %v1592
    %1596 = vmatprep.subr.mxu0 0.0
    %1597 = vmatpush1.xpose.msra.mxu0 0.0
    %1598 = vmatprep.subr.mxu0 0.0
    %1599 = vmatpush1.xpose.msra.mxu0 0.0
    %1600 = vmatprep.subr.mxu0 0.0
    %1601 = vmatpush1.xpose.msra.mxu0 0.0
    %1602 = vmatprep.subr.mxu0 0.0
    %1603 = vmatpush1.xpose.msra.mxu0 0.0
    %1604 = vmatprep.subr.mxu0 0.0
    %1605 = vmatpush1.xpose.msra.mxu0 0.0
    %1606 = vmatprep.subr.mxu0 0.0
    %1607 = vmatpush1.xpose.msra.mxu0 0.0
    %1608 = vmatprep.subr.mxu0 0.0
    %1609 = vmatpush1.xpose.msra.mxu0 0.0
    %1610 = vmatprep.subr.mxu0 0.0
    %1611 = vmatpush1.xpose.msra.mxu0 0.0
    %1612 = vmatprep.subr.mxu0 0.0
    %1613 = vmatpush1.xpose.msra.mxu0 0.0
    %1614 = vmatprep.subr.mxu0 0.0
    %1615 = vmatpush1.xpose.msra.mxu0 0.0
    %1616 = vmatprep.subr.mxu0 0.0
    %1617 = vmatpush1.xpose.msra.mxu0 0.0
    %1618 = vmatprep.subr.mxu0 0.0
    %1619 = vmatpush1.xpose.msra.mxu0 0.0
    %1620 = vmatprep.subr.mxu0 0.0
    %1621 = vmatpush1.xpose.msra.mxu0 0.0
    %1622 = vmatprep.subr.mxu0 0.0
    %1623 = vmatpush1.xpose.msra.mxu0 0.0
    %1624 = vmatprep.subr.mxu0 0.0
    %1625 = vmatpush1.xpose.msra.mxu0 0.0
    %1626 = vmatprep.subr.mxu0 0.0
    %1627 = vmatpush1.xpose.msra.mxu0 0.0
    %1628 = vmatprep.subr.mxu0 0.0
    %1629 = vmatpush1.xpose.msra.mxu0 0.0
    %1630 = vmatprep.subr.mxu0 0.0
    %1631 = vmatpush1.xpose.msra.mxu0 0.0
    %1632 = vmatprep.subr.mxu0 0.0
    %1633 = vmatpush1.xpose.msra.mxu0 0.0
    %1634 = vmatprep.subr.mxu0 0.0
    %1635 = vmatpush1.xpose.msra.mxu0 0.0
    %1636 = vmatprep.subr.mxu0 0.0
    %1637 = vmatpush1.xpose.msra.mxu0 0.0
    %1638 = vmatprep.subr.mxu0 0.0
    %1639 = vmatpush1.xpose.msra.mxu0 0.0
    %1640 = vmatprep.subr.mxu0 0.0
    %1641 = vmatpush1.xpose.msra.mxu0 0.0
    %1642 = vmatprep.subr.mxu0 0.0
    %1643 = vmatpush1.xpose.msra.mxu0 0.0
    %1644 = vmatprep.subr.mxu0 0.0
    %1645 = vmatpush1.xpose.msra.mxu0 0.0
    %1646 = vmatprep.subr.mxu0 0.0
    %1647 = vmatpush1.xpose.msra.mxu0 0.0
    %1648 = vmatprep.subr.mxu0 0.0
    %1649 = vmatpush1.xpose.msra.mxu0 0.0
    %1650 = vmatprep.subr.mxu0 0.0
    %1651 = vmatpush1.xpose.msra.mxu0 0.0
    %1652 = vmatprep.subr.mxu0 0.0
    %1653 = vmatpush1.xpose.msra.mxu0 0.0
    %1654 = vmatprep.subr.mxu0 0.0
    %1655 = vmatpush1.xpose.msra.mxu0 0.0
    %1656 = vmatprep.subr.mxu0 0.0
    %1657 = vmatpush1.xpose.msra.mxu0 0.0
    %1658 = vmatprep.mubr.f32.mxu0 0.0
    %1659 = vmatmul.mubr.f32.gmra.mrb[0].mxu0 %v1590
    %v1660 = vpop.f32.mrb[0].mxu0
    %v1661 = vadd.f32 0.0, %v1660
    %v1662 = vpop.f32.mrb[0].mxu0
    %1663 = vdwg.mxu0
    %v1664 = vmul.f32 %v1661, 0.35355338
    %v1665 = vadd.f32 %v1664, %v1163
    %v1666 = vsel %vm396, %v1665, -inf
    %1667 = vmax.xlane.f32.xlu0 %v1666
    %v1668 = vpop.xlane.xlu0 %1667
    %v1669 = vsub.f32 %v1665, %v1668
    %v1670 = vmul.f32 %v1669, 1.442695
    %v1671 = vpow.pop %v1670
    %v1672 = vsel %vm396, %v1671, 0.0
    %1673 = vadd.xlane.f32.xlu0 %v1672
    %v1674 = vpop.xlane.xlu0 %1673
    %v1675 = vrcp.pop %v1674
    %v1676 = vmul.f32 %v1671, %v1675
    %1677 = vrot.lane.b32.xlu0 %v390, 40
    %v1678 = vpop.permute.xlu0 %1677
    %v1681 = vsel %vm396, %v1676, 0
    %1683 = vmatprep.subr.mxu0 0.0
    %1684 = vmatpush1.msra.mxu0 %v1678
    %1685 = vmatprep.subr.mxu0 0.0
    %1686 = vmatpush1.msra.mxu0 0.0
    %1687 = vmatprep.subr.mxu0 0.0
    %1688 = vmatpush1.msra.mxu0 0.0
    %1689 = vmatprep.subr.mxu0 0.0
    %1690 = vmatpush1.msra.mxu0 0.0
    %1691 = vmatprep.subr.mxu0 0.0
    %1692 = vmatpush1.msra.mxu0 0.0
    %1693 = vmatprep.subr.mxu0 0.0
    %1694 = vmatpush1.msra.mxu0 0.0
    %1695 = vmatprep.subr.mxu0 0.0
    %1696 = vmatpush1.msra.mxu0 0.0
    %1697 = vmatprep.subr.mxu0 0.0
    %1698 = vmatpush1.msra.mxu0 0.0
    %1699 = vmatprep.subr.mxu0 0.0
    %1700 = vmatpush1.msra.mxu0 0.0
    %1701 = vmatprep.subr.mxu0 0.0
    %1702 = vmatpush1.msra.mxu0 0.0
    %1703 = vmatprep.subr.mxu0 0.0
    %1704 = vmatpush1.msra.mxu0 0.0
    %1705 = vmatprep.subr.mxu0 0.0
    %1706 = vmatpush1.msra.mxu0 0.0
    %1707 = vmatprep.subr.mxu0 0.0
    %1708 = vmatpush1.msra.mxu0 0.0
    %1709 = vmatprep.subr.mxu0 0.0
    %1710 = vmatpush1.msra.mxu0 0.0
    %1711 = vmatprep.subr.mxu0 0.0
    %1712 = vmatpush1.msra.mxu0 0.0
    %1713 = vmatprep.subr.mxu0 0.0
    %1714 = vmatpush1.msra.mxu0 0.0
    %1715 = vmatprep.subr.mxu0 0.0
    %1716 = vmatpush1.msra.mxu0 0.0
    %1717 = vmatprep.subr.mxu0 0.0
    %1718 = vmatpush1.msra.mxu0 0.0
    %1719 = vmatprep.subr.mxu0 0.0
    %1720 = vmatpush1.msra.mxu0 0.0
    %1721 = vmatprep.subr.mxu0 0.0
    %1722 = vmatpush1.msra.mxu0 0.0
    %1723 = vmatprep.subr.mxu0 0.0
    %1724 = vmatpush1.msra.mxu0 0.0
    %1725 = vmatprep.subr.mxu0 0.0
    %1726 = vmatpush1.msra.mxu0 0.0
    %1727 = vmatprep.subr.mxu0 0.0
    %1728 = vmatpush1.msra.mxu0 0.0
    %1729 = vmatprep.subr.mxu0 0.0
    %1730 = vmatpush1.msra.mxu0 0.0
    %1731 = vmatprep.subr.mxu0 0.0
    %1732 = vmatpush1.msra.mxu0 0.0
    %1733 = vmatprep.subr.mxu0 0.0
    %1734 = vmatpush1.msra.mxu0 0.0
    %1735 = vmatprep.subr.mxu0 0.0
    %1736 = vmatpush1.msra.mxu0 0.0
    %1737 = vmatprep.subr.mxu0 0.0
    %1738 = vmatpush1.msra.mxu0 0.0
    %1739 = vmatprep.subr.mxu0 0.0
    %1740 = vmatpush1.msra.mxu0 0.0
    %1741 = vmatprep.subr.mxu0 0.0
    %1742 = vmatpush1.msra.mxu0 0.0
    %1743 = vmatprep.subr.mxu0 0.0
    %1744 = vmatpush1.msra.mxu0 0.0
    %1745 = vmatprep.subr.mxu0 0.0
    %1746 = vmatpush1.msra.mxu0 0.0
    %1747 = vmatprep.mubr.f32.mxu0 0.0
    %1748 = vmatmul.mubr.f32.gmra.mrb[0].mxu0 %v1681
    %v1749 = vpop.f32.mrb[0].mxu0
    %v1750 = vadd.f32 0.0, %v1749
    %v1751 = vpop.f32.mrb[0].mxu0
    %1752 = vdwg.mxu0
    %1754 = vrot.lane.b32.xlu0 %v1416, 8
    %v1755 = vpop.permute.xlu0 %1754
    %1758 = vrot.lane.b32.xlu0 %v1583, 16
    %v1759 = vpop.permute.xlu0 %1758
    %1762 = vrot.lane.b32.xlu0 %v1750, 24
    %v1763 = vpop.permute.xlu0 %1762
    %v1765 = vsel %vm396, %v1249, %v1755
    %v1766 = vsel %vm1078, %v1765, %v1759
    %v1767 = vsel %vm1080, %v1766, %v1763
    %v1768 = vld [vmem:[%s17] sm:$0xff]
    %v1769 = vld [vmem:[%s17 + $0x8] sm:$0xff]
    %v1770 = vld [vmem:[%s17 + $0x10] sm:$0xff]
    %v1771 = vld [vmem:[%s17 + $0x18] sm:$0xff]
    %v1772 = vld [vmem:[%s19] sm:$0x1]
    %v1774 = vlaneseq
    %v1775 = vshrl.u32 %v1774, 7
    %v1776 = vsub.s32 0, %v1775
    %v1777 = vrot.slane %v1772, %v1776
    %v1780 = vsel %vm253, %v1081, 0
    %v1783 = vsel %vm253, %v1767, 0
    %1785 = vmatprep.subr.mxu0 0.0
    %1786 = vmatpush1.msra.mxu0 %v1768
    %1787 = vmatprep.subr.mxu0 0.0
    %1788 = vmatpush1.msra.mxu0 %v1769
    %1789 = vmatprep.subr.mxu0 0.0
    %1790 = vmatpush1.msra.mxu0 %v1770
    %1791 = vmatprep.subr.mxu0 0.0
    %1792 = vmatpush1.msra.mxu0 %v1771
    %1793 = vmatprep.subr.mxu0 0.0
    %1794 = vmatpush1.msra.mxu0 0.0
    %1795 = vmatprep.subr.mxu0 0.0
    %1796 = vmatpush1.msra.mxu0 0.0
    %1797 = vmatprep.subr.mxu0 0.0
    %1798 = vmatpush1.msra.mxu0 0.0
    %1799 = vmatprep.subr.mxu0 0.0
    %1800 = vmatpush1.msra.mxu0 0.0
    %1801 = vmatprep.subr.mxu0 0.0
    %1802 = vmatpush1.msra.mxu0 0.0
    %1803 = vmatprep.subr.mxu0 0.0
    %1804 = vmatpush1.msra.mxu0 0.0
    %1805 = vmatprep.subr.mxu0 0.0
    %1806 = vmatpush1.msra.mxu0 0.0
    %1807 = vmatprep.subr.mxu0 0.0
    %1808 = vmatpush1.msra.mxu0 0.0
    %1809 = vmatprep.subr.mxu0 0.0
    %1810 = vmatpush1.msra.mxu0 0.0
    %1811 = vmatprep.subr.mxu0 0.0
    %1812 = vmatpush1.msra.mxu0 0.0
    %1813 = vmatprep.subr.mxu0 0.0
    %1814 = vmatpush1.msra.mxu0 0.0
    %1815 = vmatprep.subr.mxu0 0.0
    %1816 = vmatpush1.msra.mxu0 0.0
    %1817 = vmatprep.subr.mxu0 0.0
    %1818 = vmatpush1.msra.mxu0 0.0
    %1819 = vmatprep.subr.mxu0 0.0
    %1820 = vmatpush1.msra.mxu0 0.0
    %1821 = vmatprep.subr.mxu0 0.0
    %1822 = vmatpush1.msra.mxu0 0.0
    %1823 = vmatprep.subr.mxu0 0.0
    %1824 = vmatpush1.msra.mxu0 0.0
    %1825 = vmatprep.subr.mxu0 0.0
    %1826 = vmatpush1.msra.mxu0 0.0
    %1827 = vmatprep.subr.mxu0 0.0
    %1828 = vmatpush1.msra.mxu0 0.0
    %1829 = vmatprep.subr.mxu0 0.0
    %1830 = vmatpush1.msra.mxu0 0.0
    %1831 = vmatprep.subr.mxu0 0.0
    %1832 = vmatpush1.msra.mxu0 0.0
    %1833 = vmatprep.subr.mxu0 0.0
    %1834 = vmatpush1.msra.mxu0 0.0
    %1835 = vmatprep.subr.mxu0 0.0
    %1836 = vmatpush1.msra.mxu0 0.0
    %1837 = vmatprep.subr.mxu0 0.0
    %1838 = vmatpush1.msra.mxu0 0.0
    %1839 = vmatprep.subr.mxu0 0.0
    %1840 = vmatpush1.msra.mxu0 0.0
    %1841 = vmatprep.subr.mxu0 0.0
    %1842 = vmatpush1.msra.mxu0 0.0
    %1843 = vmatprep.subr.mxu0 0.0
    %1844 = vmatpush1.msra.mxu0 0.0
    %1845 = vmatprep.subr.mxu0 0.0
    %1846 = vmatpush1.msra.mxu0 0.0
    %1847 = vmatprep.subr.mxu0 0.0
    %1848 = vmatpush1.msra.mxu0 0.0
    %1849 = vmatprep.mubr.f32.mxu0 0.0
    %1850 = vmatmul.mubr.f32.gmra.mrb[0].mxu0 %v1780
    %v1851 = vpop.f32.mrb[0].mxu0
    %v1852 = vadd.f32 %v1777, %v1851
    %v1853 = vpop.f32.mrb[0].mxu0
    %1854 = vmatprep.mubr.f32.mxu0 0.0
    %1855 = vmatmul.mubr.f32.gmra.mrb[0].mxu0 %v1783
    %v1856 = vpop.f32.mrb[0].mxu0
    %v1857 = vadd.f32 %v1777, %v1856
    %v1858 = vpop.f32.mrb[0].mxu0
    %1859 = vdwg.mxu0
    %v1860 = vadd.f32 %v1852, %v295
    %v1861 = vadd.f32 %v1857, %v296
    %v1862 = vld [vmem:[%s21] sm:$0x1]
    %v1863 = vld [vmem:[%s23] sm:$0x1]
    %v1864 = vsel %vm253, %v1860, 0.0
    %1865 = vadd.xlane.f32.xlu0 %v1864
    %v1866 = vpop.xlane.xlu0 %1865
    %v1867 = vsel %vm253, %v1861, 0.0
    %1868 = vadd.xlane.f32.xlu0 %v1867
    %v1869 = vpop.xlane.xlu0 %1868
    %v1870 = vmul.f32 %v1866, %v260
    %v1871 = vmul.f32 %v1869, %v260
    %v1872 = vsub.f32 %v1860, %v1870
    %v1873 = vsub.f32 %v1861, %v1871
    %v1874 = vmul.f32 %v1872, %v1872
    %v1875 = vmul.f32 %v1873, %v1873
    %v1876 = vsel %vm253, %v1874, 0.0
    %1877 = vadd.xlane.f32.xlu0 %v1876
    %v1878 = vpop.xlane.xlu0 %1877
    %v1879 = vsel %vm253, %v1875, 0.0
    %1880 = vadd.xlane.f32.xlu0 %v1879
    %v1881 = vpop.xlane.xlu0 %1880
    %v1882 = vmul.f32 %v1878, %v260
    %v1883 = vmul.f32 %v1881, %v260
    %v1884 = vadd.f32 %v1882, 1e-12
    %v1885 = vadd.f32 %v1883, 1e-12
    %v1886 = vrsqrt.pop %v1884
    %v1887 = vrsqrt.pop %v1885
    %v1888 = vmul.f32 %v1872, %v1886
    %v1889 = vmul.f32 %v1873, %v1887
    %v1891 = vlaneseq
    %v1892 = vshrl.u32 %v1891, 7
    %v1893 = vsub.s32 0, %v1892
    %v1894 = vrot.slane %v1862, %v1893
    %v1896 = vmul.f32 %v1888, %v1894
    %v1897 = vmul.f32 %v1889, %v1894
    %v1899 = vlaneseq
    %v1900 = vshrl.u32 %v1899, 7
    %v1901 = vsub.s32 0, %v1900
    %v1902 = vrot.slane %v1863, %v1901
    %v1904 = vadd.f32 %v1896, %v1902
    %v1905 = vadd.f32 %v1897, %v1902
    %v1906 = vld [vmem:[%s25] sm:$0xff]
    %v1907 = vld [vmem:[%s25 + $0x8] sm:$0xff]
    %v1908 = vld [vmem:[%s25 + $0x10] sm:$0xff]
    %v1909 = vld [vmem:[%s25 + $0x18] sm:$0xff]
    %v1910 = vld [vmem:[%s27] sm:$0x1]
    %v1912 = vlaneseq
    %v1913 = vshrl.u32 %v1912, 7
    %v1914 = vsub.s32 0, %v1913
    %v1915 = vrot.slane %v1910, %v1914
    %v1918 = vsel %vm253, %v1904, 0
    %v1921 = vsel %vm253, %v1905, 0
    %1923 = vmatprep.subr.mxu0 0.0
    %1924 = vmatpush1.msra.mxu0 %v1906
    %1925 = vmatprep.subr.mxu0 0.0
    %1926 = vmatpush1.msra.mxu0 %v1907
    %1927 = vmatprep.subr.mxu0 0.0
    %1928 = vmatpush1.msra.mxu0 %v1908
    %1929 = vmatprep.subr.mxu0 0.0
    %1930 = vmatpush1.msra.mxu0 %v1909
    %1931 = vmatprep.subr.mxu0 0.0
    %1932 = vmatpush1.msra.mxu0 0.0
    %1933 = vmatprep.subr.mxu0 0.0
    %1934 = vmatpush1.msra.mxu0 0.0
    %1935 = vmatprep.subr.mxu0 0.0
    %1936 = vmatpush1.msra.mxu0 0.0
    %1937 = vmatprep.subr.mxu0 0.0
    %1938 = vmatpush1.msra.mxu0 0.0
    %1939 = vmatprep.subr.mxu0 0.0
    %1940 = vmatpush1.msra.mxu0 0.0
    %1941 = vmatprep.subr.mxu0 0.0
    %1942 = vmatpush1.msra.mxu0 0.0
    %1943 = vmatprep.subr.mxu0 0.0
    %1944 = vmatpush1.msra.mxu0 0.0
    %1945 = vmatprep.subr.mxu0 0.0
    %1946 = vmatpush1.msra.mxu0 0.0
    %1947 = vmatprep.subr.mxu0 0.0
    %1948 = vmatpush1.msra.mxu0 0.0
    %1949 = vmatprep.subr.mxu0 0.0
    %1950 = vmatpush1.msra.mxu0 0.0
    %1951 = vmatprep.subr.mxu0 0.0
    %1952 = vmatpush1.msra.mxu0 0.0
    %1953 = vmatprep.subr.mxu0 0.0
    %1954 = vmatpush1.msra.mxu0 0.0
    %1955 = vmatprep.subr.mxu0 0.0
    %1956 = vmatpush1.msra.mxu0 0.0
    %1957 = vmatprep.subr.mxu0 0.0
    %1958 = vmatpush1.msra.mxu0 0.0
    %1959 = vmatprep.subr.mxu0 0.0
    %1960 = vmatpush1.msra.mxu0 0.0
    %1961 = vmatprep.subr.mxu0 0.0
    %1962 = vmatpush1.msra.mxu0 0.0
    %1963 = vmatprep.subr.mxu0 0.0
    %1964 = vmatpush1.msra.mxu0 0.0
    %1965 = vmatprep.subr.mxu0 0.0
    %1966 = vmatpush1.msra.mxu0 0.0
    %1967 = vmatprep.subr.mxu0 0.0
    %1968 = vmatpush1.msra.mxu0 0.0
    %1969 = vmatprep.subr.mxu0 0.0
    %1970 = vmatpush1.msra.mxu0 0.0
    %1971 = vmatprep.subr.mxu0 0.0
    %1972 = vmatpush1.msra.mxu0 0.0
    %1973 = vmatprep.subr.mxu0 0.0
    %1974 = vmatpush1.msra.mxu0 0.0
    %1975 = vmatprep.subr.mxu0 0.0
    %1976 = vmatpush1.msra.mxu0 0.0
    %1977 = vmatprep.subr.mxu0 0.0
    %1978 = vmatpush1.msra.mxu0 0.0
    %1979 = vmatprep.subr.mxu0 0.0
    %1980 = vmatpush1.msra.mxu0 0.0
    %1981 = vmatprep.subr.mxu0 0.0
    %1982 = vmatpush1.msra.mxu0 0.0
    %1983 = vmatprep.subr.mxu0 0.0
    %1984 = vmatpush1.msra.mxu0 0.0
    %1985 = vmatprep.subr.mxu0 0.0
    %1986 = vmatpush1.msra.mxu0 0.0
    %1987 = vmatprep.mubr.f32.mxu0 0.0
    %1988 = vmatmul.mubr.f32.gmra.mrb[0].mxu0 %v1918
    %v1989 = vpop.f32.mrb[0].mxu0
    %v1990 = vadd.f32 %v1915, %v1989
    %v1991 = vpop.f32.mrb[0].mxu0
    %1992 = vmatprep.mubr.f32.mxu0 0.0
    %1993 = vmatmul.mubr.f32.gmra.mrb[0].mxu0 %v1921
    %v1994 = vpop.f32.mrb[0].mxu0
    %v1995 = vadd.f32 %v1915, %v1994
    %v1996 = vpop.f32.mrb[0].mxu0
    %1997 = vdwg.mxu0
    %v1998 = vmul.f32 %v1990, 0.5
    %v1999 = vmul.f32 %v1995, 0.5
    %v2000 = vmul.f32 %v1990, 0.044715
    %v2001 = vmul.f32 %v1995, 0.044715
    %v2002 = vmul.f32 %v2000, %v1990
    %v2003 = vmul.f32 %v2001, %v1995
    %v2004 = vmul.f32 %v2002, %v1990
    %v2005 = vmul.f32 %v2003, %v1995
    %v2006 = vadd.f32 %v1990, %v2004
    %v2007 = vadd.f32 %v1995, %v2005
    %v2008 = vmul.f32 %v2006, 0.7978846
    %v2009 = vmul.f32 %v2007, 0.7978846
    %v2010 = vtanh.pop %v2008
    %v2011 = vtanh.pop %v2009
    %v2012 = vadd.f32 %v2010, 1.0
    %v2013 = vadd.f32 %v2011, 1.0
    %v2014 = vmul.f32 %v1998, %v2012
    %v2015 = vmul.f32 %v1999, %v2013
    %v2016 = vld [vmem:[%s29] sm:$0xff]
    %v2017 = vld [vmem:[%s29 + $0x8] sm:$0xff]
    %v2018 = vld [vmem:[%s29 + $0x10] sm:$0xff]
    %v2019 = vld [vmem:[%s29 + $0x18] sm:$0xff]
    %v2020 = vld [vmem:[%s29 + $0x20] sm:$0xff]
    %v2021 = vld [vmem:[%s29 + $0x28] sm:$0xff]
    %v2022 = vld [vmem:[%s29 + $0x30] sm:$0xff]
    %v2023 = vld [vmem:[%s29 + $0x38] sm:$0xff]
    %v2024 = vld [vmem:[%s31] sm:$0x1]
    %v2026 = vlaneseq
    %v2027 = vshrl.u32 %v2026, 7
    %v2028 = vsub.s32 0, %v2027
    %v2029 = vrot.slane %v2024, %v2028
    %vm2031 = vcmask 523264
    %v2033 = vsel %vm2031, %v2014, 0
    %v2036 = vsel %vm2031, %v2015, 0
    %2038 = vmatprep.subr.mxu0 0.0
    %2039 = vmatpush1.msra.mxu0 %v2016
    %2040 = vmatprep.subr.mxu0 0.0
    %2041 = vmatpush1.msra.mxu0 %v2017
    %2042 = vmatprep.subr.mxu0 0.0
    %2043 = vmatpush1.msra.mxu0 %v2018
    %2044 = vmatprep.subr.mxu0 0.0
    %2045 = vmatpush1.msra.mxu0 %v2019
    %2046 = vmatprep.subr.mxu0 0.0
    %2047 = vmatpush1.msra.mxu0 %v2020
    %2048 = vmatprep.subr.mxu0 0.0
    %2049 = vmatpush1.msra.mxu0 %v2021
    %2050 = vmatprep.subr.mxu0 0.0
    %2051 = vmatpush1.msra.mxu0 %v2022
    %2052 = vmatprep.subr.mxu0 0.0
    %2053 = vmatpush1.msra.mxu0 %v2023
    %2054 = vmatprep.subr.mxu0 0.0
    %2055 = vmatpush1.msra.mxu0 0.0
    %2056 = vmatprep.subr.mxu0 0.0
    %2057 = vmatpush1.msra.mxu0 0.0
    %2058 = vmatprep.subr.mxu0 0.0
    %2059 = vmatpush1.msra.mxu0 0.0
    %2060 = vmatprep.subr.mxu0 0.0
    %2061 = vmatpush1.msra.mxu0 0.0
    %2062 = vmatprep.subr.mxu0 0.0
    %2063 = vmatpush1.msra.mxu0 0.0
    %2064 = vmatprep.subr.mxu0 0.0
    %2065 = vmatpush1.msra.mxu0 0.0
    %2066 = vmatprep.subr.mxu0 0.0
    %2067 = vmatpush1.msra.mxu0 0.0
    %2068 = vmatprep.subr.mxu0 0.0
    %2069 = vmatpush1.msra.mxu0 0.0
    %2070 = vmatprep.subr.mxu0 0.0
    %2071 = vmatpush1.msra.mxu0 0.0
    %2072 = vmatprep.subr.mxu0 0.0
    %2073 = vmatpush1.msra.mxu0 0.0
    %2074 = vmatprep.subr.mxu0 0.0
    %2075 = vmatpush1.msra.mxu0 0.0
    %2076 = vmatprep.subr.mxu0 0.0
    %2077 = vmatpush1.msra.mxu0 0.0
    %2078 = vmatprep.subr.mxu0 0.0
    %2079 = vmatpush1.msra.mxu0 0.0
    %2080 = vmatprep.subr.mxu0 0.0
    %2081 = vmatpush1.msra.mxu0 0.0
    %2082 = vmatprep.subr.mxu0 0.0
    %2083 = vmatpush1.msra.mxu0 0.0
    %2084 = vmatprep.subr.mxu0 0.0
    %2085 = vmatpush1.msra.mxu0 0.0
    %2086 = vmatprep.subr.mxu0 0.0
    %2087 = vmatpush1.msra.mxu0 0.0
    %2088 = vmatprep.subr.mxu0 0.0
    %2089 = vmatpush1.msra.mxu0 0.0
    %2090 = vmatprep.subr.mxu0 0.0
    %2091 = vmatpush1.msra.mxu0 0.0
    %2092 = vmatprep.subr.mxu0 0.0
    %2093 = vmatpush1.msra.mxu0 0.0
    %2094 = vmatprep.subr.mxu0 0.0
    %2095 = vmatpush1.msra.mxu0 0.0
    %2096 = vmatprep.subr.mxu0 0.0
    %2097 = vmatpush1.msra.mxu0 0.0
    %2098 = vmatprep.subr.mxu0 0.0
    %2099 = vmatpush1.msra.mxu0 0.0
    %2100 = vmatprep.subr.mxu0 0.0
    %2101 = vmatpush1.msra.mxu0 0.0
    %2102 = vmatprep.mubr.f32.mxu0 0.0
    %2103 = vmatmul.mubr.f32.gmra.mrb[0].mxu0 %v2033
    %v2104 = vpop.f32.mrb[0].mxu0
    %v2105 = vadd.f32 %v2029, %v2104
    %v2106 = vpop.f32.mrb[0].mxu0
    %2107 = vmatprep.mubr.f32.mxu0 0.0
    %2108 = vmatmul.mubr.f32.gmra.mrb[0].mxu0 %v2036
    %v2109 = vpop.f32.mrb[0].mxu0
    %v2110 = vadd.f32 %v2029, %v2109
    %v2111 = vpop.f32.mrb[0].mxu0
    %2112 = vdwg.mxu0
    %v2113 = vadd.f32 %v2105, %v1904
    %v2114 = vadd.f32 %v2110, %v1905
    %v2115 = vld [vmem:[%s33] sm:$0x1]
    %v2116 = vld [vmem:[%s35] sm:$0x1]
    %v2117 = vsel %vm253, %v2113, 0.0
    %2118 = vadd.xlane.f32.xlu0 %v2117
    %v2119 = vpop.xlane.xlu0 %2118
    %v2120 = vsel %vm253, %v2114, 0.0
    %2121 = vadd.xlane.f32.xlu0 %v2120
    %v2122 = vpop.xlane.xlu0 %2121
    %v2123 = vmul.f32 %v2119, %v260
    %v2124 = vmul.f32 %v2122, %v260
    %v2125 = vsub.f32 %v2113, %v2123
    %v2126 = vsub.f32 %v2114, %v2124
    %v2127 = vmul.f32 %v2125, %v2125
    %v2128 = vmul.f32 %v2126, %v2126
    %v2129 = vsel %vm253, %v2127, 0.0
    %2130 = vadd.xlane.f32.xlu0 %v2129
    %v2131 = vpop.xlane.xlu0 %2130
    %v2132 = vsel %vm253, %v2128, 0.0
    %2133 = vadd.xlane.f32.xlu0 %v2132
    %v2134 = vpop.xlane.xlu0 %2133
    %v2135 = vmul.f32 %v2131, %v260
    %v2136 = vmul.f32 %v2134, %v260
    %v2137 = vadd.f32 %v2135, 1e-12
    %v2138 = vadd.f32 %v2136, 1e-12
    %v2139 = vrsqrt.pop %v2137
    %v2140 = vrsqrt.pop %v2138
    %v2141 = vmul.f32 %v2125, %v2139
    %v2142 = vmul.f32 %v2126, %v2140
    %v2144 = vlaneseq
    %v2145 = vshrl.u32 %v2144, 7
    %v2146 = vsub.s32 0, %v2145
    %v2147 = vrot.slane %v2115, %v2146
    %v2149 = vmul.f32 %v2141, %v2147
    %v2150 = vmul.f32 %v2142, %v2147
    %v2152 = vlaneseq
    %v2153 = vshrl.u32 %v2152, 7
    %v2154 = vsub.s32 0, %v2153
    %v2155 = vrot.slane %v2116, %v2154
    %v2157 = vadd.f32 %v2149, %v2155
    %v2158 = vadd.f32 %v2150, %v2155
    %v2159 = vld [vmem:[%s37] sm:$0xff]
    %v2160 = vld [vmem:[%s37 + $0x8] sm:$0xff]
    %v2161 = vld [vmem:[%s37 + $0x10] sm:$0xff]
    %v2162 = vld [vmem:[%s37 + $0x18] sm:$0xff]
    %v2163 = vld [vmem:[%s39] sm:$0x1]
    %v2165 = vlaneseq
    %v2166 = vshrl.u32 %v2165, 7
    %v2167 = vsub.s32 0, %v2166
    %v2168 = vrot.slane %v2163, %v2167
    %v2171 = vsel %vm253, %v2157, 0
    %v2174 = vsel %vm253, %v2158, 0
    %2176 = vmatprep.subr.mxu0 0.0
    %2177 = vmatpush1.msra.mxu0 %v2159
    %2178 = vmatprep.subr.mxu0 0.0
    %2179 = vmatpush1.msra.mxu0 %v2160
    %2180 = vmatprep.subr.mxu0 0.0
    %2181 = vmatpush1.msra.mxu0 %v2161
    %2182 = vmatprep.subr.mxu0 0.0
    %2183 = vmatpush1.msra.mxu0 %v2162
    %2184 = vmatprep.subr.mxu0 0.0
    %2185 = vmatpush1.msra.mxu0 0.0
    %2186 = vmatprep.subr.mxu0 0.0
    %2187 = vmatpush1.msra.mxu0 0.0
    %2188 = vmatprep.subr.mxu0 0.0
    %2189 = vmatpush1.msra.mxu0 0.0
    %2190 = vmatprep.subr.mxu0 0.0
    %2191 = vmatpush1.msra.mxu0 0.0
    %2192 = vmatprep.subr.mxu0 0.0
    %2193 = vmatpush1.msra.mxu0 0.0
    %2194 = vmatprep.subr.mxu0 0.0
    %2195 = vmatpush1.msra.mxu0 0.0
    %2196 = vmatprep.subr.mxu0 0.0
    %2197 = vmatpush1.msra.mxu0 0.0
    %2198 = vmatprep.subr.mxu0 0.0
    %2199 = vmatpush1.msra.mxu0 0.0
    %2200 = vmatprep.subr.mxu0 0.0
    %2201 = vmatpush1.msra.mxu0 0.0
    %2202 = vmatprep.subr.mxu0 0.0
    %2203 = vmatpush1.msra.mxu0 0.0
    %2204 = vmatprep.subr.mxu0 0.0
    %2205 = vmatpush1.msra.mxu0 0.0
    %2206 = vmatprep.subr.mxu0 0.0
    %2207 = vmatpush1.msra.mxu0 0.0
    %2208 = vmatprep.subr.mxu0 0.0
    %2209 = vmatpush1.msra.mxu0 0.0
    %2210 = vmatprep.subr.mxu0 0.0
    %2211 = vmatpush1.msra.mxu0 0.0
    %2212 = vmatprep.subr.mxu0 0.0
    %2213 = vmatpush1.msra.mxu0 0.0
    %2214 = vmatprep.subr.mxu0 0.0
    %2215 = vmatpush1.msra.mxu0 0.0
    %2216 = vmatprep.subr.mxu0 0.0
    %2217 = vmatpush1.msra.mxu0 0.0
    %2218 = vmatprep.subr.mxu0 0.0
    %2219 = vmatpush1.msra.mxu0 0.0
    %2220 = vmatprep.subr.mxu0 0.0
    %2221 = vmatpush1.msra.mxu0 0.0
    %2222 = vmatprep.subr.mxu0 0.0
    %2223 = vmatpush1.msra.mxu0 0.0
    %2224 = vmatprep.subr.mxu0 0.0
    %2225 = vmatpush1.msra.mxu0 0.0
    %2226 = vmatprep.subr.mxu0 0.0
    %2227 = vmatpush1.msra.mxu0 0.0
    %2228 = vmatprep.subr.mxu0 0.0
    %2229 = vmatpush1.msra.mxu0 0.0
    %2230 = vmatprep.subr.mxu0 0.0
    %2231 = vmatpush1.msra.mxu0 0.0
    %2232 = vmatprep.subr.mxu0 0.0
    %2233 = vmatpush1.msra.mxu0 0.0
    %2234 = vmatprep.subr.mxu0 0.0
    %2235 = vmatpush1.msra.mxu0 0.0
    %2236 = vmatprep.subr.mxu0 0.0
    %2237 = vmatpush1.msra.mxu0 0.0
    %2238 = vmatprep.subr.mxu0 0.0
    %2239 = vmatpush1.msra.mxu0 0.0
    %2240 = vmatprep.mubr.f32.mxu0 0.0
    %2241 = vmatmul.mubr.f32.gmra.mrb[0].mxu0 %v2171
    %v2242 = vpop.f32.mrb[0].mxu0
    %v2243 = vadd.f32 %v2168, %v2242
    %v2244 = vpop.f32.mrb[0].mxu0
    %2245 = vmatprep.mubr.f32.mxu0 0.0
    %2246 = vmatmul.mubr.f32.gmra.mrb[0].mxu0 %v2174
    %v2247 = vpop.f32.mrb[0].mxu0
    %v2248 = vadd.f32 %v2168, %v2247
    %v2249 = vpop.f32.mrb[0].mxu0
    %2250 = vdwg.mxu0
    %2252 = vrot.lane.b32.xlu0 %v2243, 96
    %v2253 = vpop.permute.xlu0 %2252
    %v2254 = vsel %vm396, %v2243, 0
    %v2256 = vsel %vm396, %v2253, 0
    %2258 = vmatprep.subr.mxu0 0.0
    %2259 = vmatpush1.xpose.msra.mxu0 %v2256
    %2260 = vmatprep.subr.mxu0 0.0
    %2261 = vmatpush1.xpose.msra.mxu0 0.0
    %2262 = vmatprep.subr.mxu0 0.0
    %2263 = vmatpush1.xpose.msra.mxu0 0.0
    %2264 = vmatprep.subr.mxu0 0.0
    %2265 = vmatpush1.xpose.msra.mxu0 0.0
    %2266 = vmatprep.subr.mxu0 0.0
    %2267 = vmatpush1.xpose.msra.mxu0 0.0
    %2268 = vmatprep.subr.mxu0 0.0
    %2269 = vmatpush1.xpose.msra.mxu0 0.0
    %2270 = vmatprep.subr.mxu0 0.0
    %2271 = vmatpush1.xpose.msra.mxu0 0.0
    %2272 = vmatprep.subr.mxu0 0.0
    %2273 = vmatpush1.xpose.msra.mxu0 0.0
    %2274 = vmatprep.subr.mxu0 0.0
    %2275 = vmatpush1.xpose.msra.mxu0 0.0
    %2276 = vmatprep.subr.mxu0 0.0
    %2277 = vmatpush1.xpose.msra.mxu0 0.0
    %2278 = vmatprep.subr.mxu0 0.0
    %2279 = vmatpush1.xpose.msra.mxu0 0.0
    %2280 = vmatprep.subr.mxu0 0.0
    %2281 = vmatpush1.xpose.msra.mxu0 0.0
    %2282 = vmatprep.subr.mxu0 0.0
    %2283 = vmatpush1.xpose.msra.mxu0 0.0
    %2284 = vmatprep.subr.mxu0 0.0
    %2285 = vmatpush1.xpose.msra.mxu0 0.0
    %2286 = vmatprep.subr.mxu0 0.0
    %2287 = vmatpush1.xpose.msra.mxu0 0.0
    %2288 = vmatprep.subr.mxu0 0.0
    %2289 = vmatpush1.xpose.msra.mxu0 0.0
    %2290 = vmatprep.subr.mxu0 0.0
    %2291 = vmatpush1.xpose.msra.mxu0 0.0
    %2292 = vmatprep.subr.mxu0 0.0
    %2293 = vmatpush1.xpose.msra.mxu0 0.0
    %2294 = vmatprep.subr.mxu0 0.0
    %2295 = vmatpush1.xpose.msra.mxu0 0.0
    %2296 = vmatprep.subr.mxu0 0.0
    %2297 = vmatpush1.xpose.msra.mxu0 0.0
    %2298 = vmatprep.subr.mxu0 0.0
    %2299 = vmatpush1.xpose.msra.mxu0 0.0
    %2300 = vmatprep.subr.mxu0 0.0
    %2301 = vmatpush1.xpose.msra.mxu0 0.0
    %2302 = vmatprep.subr.mxu0 0.0
    %2303 = vmatpush1.xpose.msra.mxu0 0.0
    %2304 = vmatprep.subr.mxu0 0.0
    %2305 = vmatpush1.xpose.msra.mxu0 0.0
    %2306 = vmatprep.subr.mxu0 0.0
    %2307 = vmatpush1.xpose.msra.mxu0 0.0
    %2308 = vmatprep.subr.mxu0 0.0
    %2309 = vmatpush1.xpose.msra.mxu0 0.0
    %2310 = vmatprep.subr.mxu0 0.0
    %2311 = vmatpush1.xpose.msra.mxu0 0.0
    %2312 = vmatprep.subr.mxu0 0.0
    %2313 = vmatpush1.xpose.msra.mxu0 0.0
    %2314 = vmatprep.subr.mxu0 0.0
    %2315 = vmatpush1.xpose.msra.mxu0 0.0
    %2316 = vmatprep.subr.mxu0 0.0
    %2317 = vmatpush1.xpose.msra.mxu0 0.0
    %2318 = vmatprep.subr.mxu0 0.0
    %2319 = vmatpush1.xpose.msra.mxu0 0.0
    %2320 = vmatprep.subr.mxu0 0.0
    %2321 = vmatpush1.xpose.msra.mxu0 0.0
    %2322 = vmatprep.mubr.f32.mxu0 0.0
    %2323 = vmatmul.mubr.f32.gmra.mrb[0].mxu0 %v2254
    %v2324 = vpop.f32.mrb[0].mxu0
    %v2325 = vadd.f32 0.0, %v2324
    %v2326 = vpop.f32.mrb[0].mxu0
    %2327 = vdwg.mxu0
    %v2328 = vmul.f32 %v2325, 0.35355338
    %v2329 = vadd.f32 %v2328, %v475
    %v2330 = vsel %vm396, %v2329, -inf
    %2331 = vmax.xlane.f32.xlu0 %v2330
    %v2332 = vpop.xlane.xlu0 %2331
    %v2333 = vsub.f32 %v2329, %v2332
    %v2334 = vmul.f32 %v2333, 1.442695
    %v2335 = vpow.pop %v2334
    %v2336 = vsel %vm396, %v2335, 0.0
    %2337 = vadd.xlane.f32.xlu0 %v2336
    %v2338 = vpop.xlane.xlu0 %2337
    %v2339 = vrcp.pop %v2338
    %v2340 = vmul.f32 %v2335, %v2339
    %2341 = vrot.lane.b32.xlu0 %v2243, 64
    %v2342 = vpop.permute.xlu0 %2341
    %v2345 = vsel %vm396, %v2340, 0
    %2347 = vmatprep.subr.mxu0 0.0
    %2348 = vmatpush1.msra.mxu0 %v2342
    %2349 = vmatprep.subr.mxu0 0.0
    %2350 = vmatpush1.msra.mxu0 0.0
    %2351 = vmatprep.subr.mxu0 0.0
    %2352 = vmatpush1.msra.mxu0 0.0
    %2353 = vmatprep.subr.mxu0 0.0
    %2354 = vmatpush1.msra.mxu0 0.0
    %2355 = vmatprep.subr.mxu0 0.0
    %2356 = vmatpush1.msra.mxu0 0.0
    %2357 = vmatprep.subr.mxu0 0.0
    %2358 = vmatpush1.msra.mxu0 0.0
    %2359 = vmatprep.subr.mxu0 0.0
    %2360 = vmatpush1.msra.mxu0 0.0
    %2361 = vmatprep.subr.mxu0 0.0
    %2362 = vmatpush1.msra.mxu0 0.0
    %2363 = vmatprep.subr.mxu0 0.0
    %2364 = vmatpush1.msra.mxu0 0.0
    %2365 = vmatprep.subr.mxu0 0.0
    %2366 = vmatpush1.msra.mxu0 0.0
    %2367 = vmatprep.subr.mxu0 0.0
    %2368 = vmatpush1.msra.mxu0 0.0
    %2369 = vmatprep.subr.mxu0 0.0
    %2370 = vmatpush1.msra.mxu0 0.0
    %2371 = vmatprep.subr.mxu0 0.0
    %2372 = vmatpush1.msra.mxu0 0.0
    %2373 = vmatprep.subr.mxu0 0.0
    %2374 = vmatpush1.msra.mxu0 0.0
    %2375 = vmatprep.subr.mxu0 0.0
    %2376 = vmatpush1.msra.mxu0 0.0
    %2377 = vmatprep.subr.mxu0 0.0
    %2378 = vmatpush1.msra.mxu0 0.0
    %2379 = vmatprep.subr.mxu0 0.0
    %2380 = vmatpush1.msra.mxu0 0.0
    %2381 = vmatprep.subr.mxu0 0.0
    %2382 = vmatpush1.msra.mxu0 0.0
    %2383 = vmatprep.subr.mxu0 0.0
    %2384 = vmatpush1.msra.mxu0 0.0
    %2385 = vmatprep.subr.mxu0 0.0
    %2386 = vmatpush1.msra.mxu0 0.0
    %2387 = vmatprep.subr.mxu0 0.0
    %2388 = vmatpush1.msra.mxu0 0.0
    %2389 = vmatprep.subr.mxu0 0.0
    %2390 = vmatpush1.msra.mxu0 0.0
    %2391 = vmatprep.subr.mxu0 0.0
    %2392 = vmatpush1.msra.mxu0 0.0
    %2393 = vmatprep.subr.mxu0 0.0
    %2394 = vmatpush1.msra.mxu0 0.0
    %2395 = vmatprep.subr.mxu0 0.0
    %2396 = vmatpush1.msra.mxu0 0.0
    %2397 = vmatprep.subr.mxu0 0.0
    %2398 = vmatpush1.msra.mxu0 0.0
    %2399 = vmatprep.subr.mxu0 0.0
    %2400 = vmatpush1.msra.mxu0 0.0
    %2401 = vmatprep.subr.mxu0 0.0
    %2402 = vmatpush1.msra.mxu0 0.0
    %2403 = vmatprep.subr.mxu0 0.0
    %2404 = vmatpush1.msra.mxu0 0.0
    %2405 = vmatprep.subr.mxu0 0.0
    %2406 = vmatpush1.msra.mxu0 0.0
    %2407 = vmatprep.subr.mxu0 0.0
    %2408 = vmatpush1.msra.mxu0 0.0
    %2409 = vmatprep.subr.mxu0 0.0
    %2410 = vmatpush1.msra.mxu0 0.0
    %2411 = vmatprep.mubr.f32.mxu0 0.0
    %2412 = vmatmul.mubr.f32.gmra.mrb[0].mxu0 %v2345
    %v2413 = vpop.f32.mrb[0].mxu0
    %v2414 = vadd.f32 0.0, %v2413
    %v2415 = vpop.f32.mrb[0].mxu0
    %2416 = vdwg.mxu0
    %2417 = vrot.lane.b32.xlu0 %v2243, 120
    %v2418 = vpop.permute.xlu0 %2417
    %2419 = vrot.lane.b32.xlu0 %v2243, 88
    %v2420 = vpop.permute.xlu0 %2419
    %v2421 = vsel %vm396, %v2418, 0
    %v2423 = vsel %vm396, %v2420, 0
    %2425 = vmatprep.subr.mxu0 0.0
    %2426 = vmatpush1.xpose.msra.mxu0 %v2423
    %2427 = vmatprep.subr.mxu0 0.0
    %2428 = vmatpush1.xpose.msra.mxu0 0.0
    %2429 = vmatprep.subr.mxu0 0.0
    %2430 = vmatpush1.xpose.msra.mxu0 0.0
    %2431 = vmatprep.subr.mxu0 0.0
    %2432 = vmatpush1.xpose.msra.mxu0 0.0
    %2433 = vmatprep.subr.mxu0 0.0
    %2434 = vmatpush1.xpose.msra.mxu0 0.0
    %2435 = vmatprep.subr.mxu0 0.0
    %2436 = vmatpush1.xpose.msra.mxu0 0.0
    %2437 = vmatprep.subr.mxu0 0.0
    %2438 = vmatpush1.xpose.msra.mxu0 0.0
    %2439 = vmatprep.subr.mxu0 0.0
    %2440 = vmatpush1.xpose.msra.mxu0 0.0
    %2441 = vmatprep.subr.mxu0 0.0
    %2442 = vmatpush1.xpose.msra.mxu0 0.0
    %2443 = vmatprep.subr.mxu0 0.0
    %2444 = vmatpush1.xpose.msra.mxu0 0.0
    %2445 = vmatprep.subr.mxu0 0.0
    %2446 = vmatpush1.xpose.msra.mxu0 0.0
    %2447 = vmatprep.subr.mxu0 0.0
    %2448 = vmatpush1.xpose.msra.mxu0 0.0
    %2449 = vmatprep.subr.mxu0 0.0
    %2450 = vmatpush1.xpose.msra.mxu0 0.0
    %2451 = vmatprep.subr.mxu0 0.0
    %2452 = vmatpush1.xpose.msra.mxu0 0.0
    %2453 = vmatprep.subr.mxu0 0.0
    %2454 = vmatpush1.xpose.msra.mxu0 0.0
    %2455 = vmatprep.subr.mxu0 0.0
    %2456 = vmatpush1.xpose.msra.mxu0 0.0
    %2457 = vmatprep.subr.mxu0 0.0
    %2458 = vmatpush1.xpose.msra.mxu0 0.0
    %2459 = vmatprep.subr.mxu0 0.0
    %2460 = vmatpush1.xpose.msra.mxu0 0.0
    %2461 = vmatprep.subr.mxu0 0.0
    %2462 = vmatpush1.xpose.msra.mxu0 0.0
    %2463 = vmatprep.subr.mxu0 0.0
    %2464 = vmatpush1.xpose.msra.mxu0 0.0
    %2465 = vmatprep.subr.mxu0 0.0
    %2466 = vmatpush1.xpose.msra.mxu0 0.0
    %2467 = vmatprep.subr.mxu0 0.0
    %2468 = vmatpush1.xpose.msra.mxu0 0.0
    %2469 = vmatprep.subr.mxu0 0.0
    %2470 = vmatpush1.xpose.msra.mxu0 0.0
    %2471 = vmatprep.subr.mxu0 0.0
    %2472 = vmatpush1.xpose.msra.mxu0 0.0
    %2473 = vmatprep.subr.mxu0 0.0
    %2474 = vmatpush1.xpose.msra.mxu0 0.0
    %2475 = vmatprep.subr.mxu0 0.0
    %2476 = vmatpush1.xpose.msra.mxu0 0.0
    %2477 = vmatprep.subr.mxu0 0.0
    %2478 = vmatpush1.xpose.msra.mxu0 0.0
    %2479 = vmatprep.subr.mxu0 0.0
    %2480 = vmatpush1.xpose.msra.mxu0 0.0
    %2481 = vmatprep.subr.mxu0 0.0
    %2482 = vmatpush1.xpose.msra.mxu0 0.0
    %2483 = vmatprep.subr.mxu0 0.0
    %2484 = vmatpush1.xpose.msra.mxu0 0.0
    %2485 = vmatprep.subr.mxu0 0.0
    %2486 = vmatpush1.xpose.msra.mxu0 0.0
    %2487 = vmatprep.subr.mxu0 0.0
    %2488 = vmatpush1.xpose.msra.mxu0 0.0
    %2489 = vmatprep.mubr.f32.mxu0 0.0
    %2490 = vmatmul.mubr.f32.gmra.mrb[0].mxu0 %v2421
    %v2491 = vpop.f32.mrb[0].mxu0
    %v2492 = vadd.f32 0.0, %v2491
    %v2493 = vpop.f32.mrb[0].mxu0
    %2494 = vdwg.mxu0
    %v2495 = vmul.f32 %v2492, 0.35355338
    %v2496 = vadd.f32 %v2495, %v475
    %v2497 = vsel %vm396, %v2496, -inf
    %2498 = vmax.xlane.f32.xlu0 %v2497
    %v2499 = vpop.xlane.xlu0 %2498
    %v2500 = vsub.f32 %v2496, %v2499
    %v2501 = vmul.f32 %v2500, 1.442695
    %v2502 = vpow.pop %v2501
    %v2503 = vsel %vm396, %v2502, 0.0
    %2504 = vadd.xlane.f32.xlu0 %v2503
    %v2505 = vpop.xlane.xlu0 %2504
    %v2506 = vrcp.pop %v2505
    %v2507 = vmul.f32 %v2502, %v2506
    %2508 = vrot.lane.b32.xlu0 %v2243, 56
    %v2509 = vpop.permute.xlu0 %2508
    %v2512 = vsel %vm396, %v2507, 0
    %2514 = vmatprep.subr.mxu0 0.0
    %2515 = vmatpush1.msra.mxu0 %v2509
    %2516 = vmatprep.subr.mxu0 0.0
    %2517 = vmatpush1.msra.mxu0 0.0
    %2518 = vmatprep.subr.mxu0 0.0
    %2519 = vmatpush1.msra.mxu0 0.0
    %2520 = vmatprep.subr.mxu0 0.0
    %2521 = vmatpush1.msra.mxu0 0.0
    %2522 = vmatprep.subr.mxu0 0.0
    %2523 = vmatpush1.msra.mxu0 0.0
    %2524 = vmatprep.subr.mxu0 0.0
    %2525 = vmatpush1.msra.mxu0 0.0
    %2526 = vmatprep.subr.mxu0 0.0
    %2527 = vmatpush1.msra.mxu0 0.0
    %2528 = vmatprep.subr.mxu0 0.0
    %2529 = vmatpush1.msra.mxu0 0.0
    %2530 = vmatprep.subr.mxu0 0.0
    %2531 = vmatpush1.msra.mxu0 0.0
    %2532 = vmatprep.subr.mxu0 0.0
    %2533 = vmatpush1.msra.mxu0 0.0
    %2534 = vmatprep.subr.mxu0 0.0
    %2535 = vmatpush1.msra.mxu0 0.0
    %2536 = vmatprep.subr.mxu0 0.0
    %2537 = vmatpush1.msra.mxu0 0.0
    %2538 = vmatprep.subr.mxu0 0.0
    %2539 = vmatpush1.msra.mxu0 0.0
    %2540 = vmatprep.subr.mxu0 0.0
    %2541 = vmatpush1.msra.mxu0 0.0
    %2542 = vmatprep.subr.mxu0 0.0
    %2543 = vmatpush1.msra.mxu0 0.0
    %2544 = vmatprep.subr.mxu0 0.0
    %2545 = vmatpush1.msra.mxu0 0.0
    %2546 = vmatprep.subr.mxu0 0.0
    %2547 = vmatpush1.msra.mxu0 0.0
    %2548 = vmatprep.subr.mxu0 0.0
    %2549 = vmatpush1.msra.mxu0 0.0
    %2550 = vmatprep.subr.mxu0 0.0
    %2551 = vmatpush1.msra.mxu0 0.0
    %2552 = vmatprep.subr.mxu0 0.0
    %2553 = vmatpush1.msra.mxu0 0.0
    %2554 = vmatprep.subr.mxu0 0.0
    %2555 = vmatpush1.msra.mxu0 0.0
    %2556 = vmatprep.subr.mxu0 0.0
    %2557 = vmatpush1.msra.mxu0 0.0
    %2558 = vmatprep.subr.mxu0 0.0
    %2559 = vmatpush1.msra.mxu0 0.0
    %2560 = vmatprep.subr.mxu0 0.0
    %2561 = vmatpush1.msra.mxu0 0.0
    %2562 = vmatprep.subr.mxu0 0.0
    %2563 = vmatpush1.msra.mxu0 0.0
    %2564 = vmatprep.subr.mxu0 0.0
    %2565 = vmatpush1.msra.mxu0 0.0
    %2566 = vmatprep.subr.mxu0 0.0
    %2567 = vmatpush1.msra.mxu0 0.0
    %2568 = vmatprep.subr.mxu0 0.0
    %2569 = vmatpush1.msra.mxu0 0.0
    %2570 = vmatprep.subr.mxu0 0.0
    %2571 = vmatpush1.msra.mxu0 0.0
    %2572 = vmatprep.subr.mxu0 0.0
    %2573 = vmatpush1.msra.mxu0 0.0
    %2574 = vmatprep.subr.mxu0 0.0
    %2575 = vmatpush1.msra.mxu0 0.0
    %2576 = vmatprep.subr.mxu0 0.0
    %2577 = vmatpush1.msra.mxu0 0.0
    %2578 = vmatprep.mubr.f32.mxu0 0.0
    %2579 = vmatmul.mubr.f32.gmra.mrb[0].mxu0 %v2512
    %v2580 = vpop.f32.mrb[0].mxu0
    %v2581 = vadd.f32 0.0, %v2580
    %v2582 = vpop.f32.mrb[0].mxu0
    %2583 = vdwg.mxu0
    %2584 = vrot.lane.b32.xlu0 %v2243, 112
    %v2585 = vpop.permute.xlu0 %2584
    %2586 = vrot.lane.b32.xlu0 %v2243, 80
    %v2587 = vpop.permute.xlu0 %2586
    %v2588 = vsel %vm396, %v2585, 0
    %v2590 = vsel %vm396, %v2587, 0
    %2592 = vmatprep.subr.mxu0 0.0
    %2593 = vmatpush1.xpose.msra.mxu0 %v2590
    %2594 = vmatprep.subr.mxu0 0.0
    %2595 = vmatpush1.xpose.msra.mxu0 0.0
    %2596 = vmatprep.subr.mxu0 0.0
    %2597 = vmatpush1.xpose.msra.mxu0 0.0
    %2598 = vmatprep.subr.mxu0 0.0
    %2599 = vmatpush1.xpose.msra.mxu0 0.0
    %2600 = vmatprep.subr.mxu0 0.0
    %2601 = vmatpush1.xpose.msra.mxu0 0.0
    %2602 = vmatprep.subr.mxu0 0.0
    %2603 = vmatpush1.xpose.msra.mxu0 0.0
    %2604 = vmatprep.subr.mxu0 0.0
    %2605 = vmatpush1.xpose.msra.mxu0 0.0
    %2606 = vmatprep.subr.mxu0 0.0
    %2607 = vmatpush1.xpose.msra.mxu0 0.0
    %2608 = vmatprep.subr.mxu0 0.0
    %2609 = vmatpush1.xpose.msra.mxu0 0.0
    %2610 = vmatprep.subr.mxu0 0.0
    %2611 = vmatpush1.xpose.msra.mxu0 0.0
    %2612 = vmatprep.subr.mxu0 0.0
    %2613 = vmatpush1.xpose.msra.mxu0 0.0
    %2614 = vmatprep.subr.mxu0 0.0
    %2615 = vmatpush1.xpose.msra.mxu0 0.0
    %2616 = vmatprep.subr.mxu0 0.0
    %2617 = vmatpush1.xpose.msra.mxu0 0.0
    %2618 = vmatprep.subr.mxu0 0.0
    %2619 = vmatpush1.xpose.msra.mxu0 0.0
    %2620 = vmatprep.subr.mxu0 0.0
    %2621 = vmatpush1.xpose.msra.mxu0 0.0
    %2622 = vmatprep.subr.mxu0 0.0
    %2623 = vmatpush1.xpose.msra.mxu0 0.0
    %2624 = vmatprep.subr.mxu0 0.0
    %2625 = vmatpush1.xpose.msra.mxu0 0.0
    %2626 = vmatprep.subr.mxu0 0.0
    %2627 = vmatpush1.xpose.msra.mxu0 0.0
    %2628 = vmatprep.subr.mxu0 0.0
    %2629 = vmatpush1.xpose.msra.mxu0 0.0
    %2630 = vmatprep.subr.mxu0 0.0
    %2631 = vmatpush1.xpose.msra.mxu0 0.0
    %2632 = vmatprep.subr.mxu0 0.0
    %2633 = vmatpush1.xpose.msra.mxu0 0.0
    %2634 = vmatprep.subr.mxu0 0.0
    %2635 = vmatpush1.xpose.msra.mxu0 0.0
    %2636 = vmatprep.subr.mxu0 0.0
    %2637 = vmatpush1.xpose.msra.mxu0 0.0
    %2638 = vmatprep.subr.mxu0 0.0
    %2639 = vmatpush1.xpose.msra.mxu0 0.0
    %2640 = vmatprep.subr.mxu0 0.0
    %2641 = vmatpush1.xpose.msra.mxu0 0.0
    %2642 = vmatprep.subr.mxu0 0.0
    %2643 = vmatpush1.xpose.msra.mxu0 0.0
    %2644 = vmatprep.subr.mxu0 0.0
    %2645 = vmatpush1.xpose.msra.mxu0 0.0
    %2646 = vmatprep.subr.mxu0 0.0
    %2647 = vmatpush1.xpose.msra.mxu0 0.0
    %2648 = vmatprep.subr.mxu0 0.0
    %2649 = vmatpush1.xpose.msra.mxu0 0.0
    %2650 = vmatprep.subr.mxu0 0.0
    %2651 = vmatpush1.xpose.msra.mxu0 0.0
    %2652 = vmatprep.subr.mxu0 0.0
    %2653 = vmatpush1.xpose.msra.mxu0 0.0
    %2654 = vmatprep.subr.mxu0 0.0
    %2655 = vmatpush1.xpose.msra.mxu0 0.0
    %2656 = vmatprep.mubr.f32.mxu0 0.0
    %2657 = vmatmul.mubr.f32.gmra.mrb[0].mxu0 %v2588
    %v2658 = vpop.f32.mrb[0].mxu0
    %v2659 = vadd.f32 0.0, %v2658
    %v2660 = vpop.f32.mrb[0].mxu0
    %2661 = vdwg.mxu0
    %v2662 = vmul.f32 %v2659, 0.35355338
    %v2663 = vadd.f32 %v2662, %v475
    %v2664 = vsel %vm396, %v2663, -inf
    %2665 = vmax.xlane.f32.xlu0 %v2664
    %v2666 = vpop.xlane.xlu0 %2665
    %v2667 = vsub.f32 %v2663, %v2666
    %v2668 = vmul.f32 %v2667, 1.442695
    %v2669 = vpow.pop %v2668
    %v2670 = vsel %vm396, %v2669, 0.0
    %2671 = vadd.xlane.f32.xlu0 %v2670
    %v2672 = vpop.xlane.xlu0 %2671
    %v2673 = vrcp.pop %v2672
    %v2674 = vmul.f32 %v2669, %v2673
    %2675 = vrot.lane.b32.xlu0 %v2243, 48
    %v2676 = vpop.permute.xlu0 %2675
    %v2679 = vsel %vm396, %v2674, 0
    %2681 = vmatprep.subr.mxu0 0.0
    %2682 = vmatpush1.msra.mxu0 %v2676
    %2683 = vmatprep.subr.mxu0 0.0
    %2684 = vmatpush1.msra.mxu0 0.0
    %2685 = vmatprep.subr.mxu0 0.0
    %2686 = vmatpush1.msra.mxu0 0.0
    %2687 = vmatprep.subr.mxu0 0.0
    %2688 = vmatpush1.msra.mxu0 0.0
    %2689 = vmatprep.subr.mxu0 0.0
    %2690 = vmatpush1.msra.mxu0 0.0
    %2691 = vmatprep.subr.mxu0 0.0
    %2692 = vmatpush1.msra.mxu0 0.0
    %2693 = vmatprep.subr.mxu0 0.0
    %2694 = vmatpush1.msra.mxu0 0.0
    %2695 = vmatprep.subr.mxu0 0.0
    %2696 = vmatpush1.msra.mxu0 0.0
    %2697 = vmatprep.subr.mxu0 0.0
    %2698 = vmatpush1.msra.mxu0 0.0
    %2699 = vmatprep.subr.mxu0 0.0
    %2700 = vmatpush1.msra.mxu0 0.0
    %2701 = vmatprep.subr.mxu0 0.0
    %2702 = vmatpush1.msra.mxu0 0.0
    %2703 = vmatprep.subr.mxu0 0.0
    %2704 = vmatpush1.msra.mxu0 0.0
    %2705 = vmatprep.subr.mxu0 0.0
    %2706 = vmatpush1.msra.mxu0 0.0
    %2707 = vmatprep.subr.mxu0 0.0
    %2708 = vmatpush1.msra.mxu0 0.0
    %2709 = vmatprep.subr.mxu0 0.0
    %2710 = vmatpush1.msra.mxu0 0.0
    %2711 = vmatprep.subr.mxu0 0.0
    %2712 = vmatpush1.msra.mxu0 0.0
    %2713 = vmatprep.subr.mxu0 0.0
    %2714 = vmatpush1.msra.mxu0 0.0
    %2715 = vmatprep.subr.mxu0 0.0
    %2716 = vmatpush1.msra.mxu0 0.0
    %2717 = vmatprep.subr.mxu0 0.0
    %2718 = vmatpush1.msra.mxu0 0.0
    %2719 = vmatprep.subr.mxu0 0.0
    %2720 = vmatpush1.msra.mxu0 0.0
    %2721 = vmatprep.subr.mxu0 0.0
    %2722 = vmatpush1.msra.mxu0 0.0
    %2723 = vmatprep.subr.mxu0 0.0
    %2724 = vmatpush1.msra.mxu0 0.0
    %2725 = vmatprep.subr.mxu0 0.0
    %2726 = vmatpush1.msra.mxu0 0.0
    %2727 = vmatprep.subr.mxu0 0.0
    %2728 = vmatpush1.msra.mxu0 0.0
    %2729 = vmatprep.subr.mxu0 0.0
    %2730 = vmatpush1.msra.mxu0 0.0
    %2731 = vmatprep.subr.mxu0 0.0
    %2732 = vmatpush1.msra.mxu0 0.0
    %2733 = vmatprep.subr.mxu0 0.0
    %2734 = vmatpush1.msra.mxu0 0.0
    %2735 = vmatprep.subr.mxu0 0.0
    %2736 = vmatpush1.msra.mxu0 0.0
    %2737 = vmatprep.subr.mxu0 0.0
    %2738 = vmatpush1.msra.mxu0 0.0
    %2739 = vmatprep.subr.mxu0 0.0
    %2740 = vmatpush1.msra.mxu0 0.0
    %2741 = vmatprep.subr.mxu0 0.0
    %2742 = vmatpush1.msra.mxu0 0.0
    %2743 = vmatprep.subr.mxu0 0.0
    %2744 = vmatpush1.msra.mxu0 0.0
    %2745 = vmatprep.mubr.f32.mxu0 0.0
    %2746 = vmatmul.mubr.f32.gmra.mrb[0].mxu0 %v2679
    %v2747 = vpop.f32.mrb[0].mxu0
    %v2748 = vadd.f32 0.0, %v2747
    %v2749 = vpop.f32.mrb[0].mxu0
    %2750 = vdwg.mxu0
    %2751 = vrot.lane.b32.xlu0 %v2243, 104
    %v2752 = vpop.permute.xlu0 %2751
    %2753 = vrot.lane.b32.xlu0 %v2243, 72
    %v2754 = vpop.permute.xlu0 %2753
    %v2755 = vsel %vm396, %v2752, 0
    %v2757 = vsel %vm396, %v2754, 0
    %2759 = vmatprep.subr.mxu0 0.0
    %2760 = vmatpush1.xpose.msra.mxu0 %v2757
    %2761 = vmatprep.subr.mxu0 0.0
    %2762 = vmatpush1.xpose.msra.mxu0 0.0
    %2763 = vmatprep.subr.mxu0 0.0
    %2764 = vmatpush1.xpose.msra.mxu0 0.0
    %2765 = vmatprep.subr.mxu0 0.0
    %2766 = vmatpush1.xpose.msra.mxu0 0.0
    %2767 = vmatprep.subr.mxu0 0.0
    %2768 = vmatpush1.xpose.msra.mxu0 0.0
    %2769 = vmatprep.subr.mxu0 0.0
    %2770 = vmatpush1.xpose.msra.mxu0 0.0
    %2771 = vmatprep.subr.mxu0 0.0
    %2772 = vmatpush1.xpose.msra.mxu0 0.0
    %2773 = vmatprep.subr.mxu0 0.0
    %2774 = vmatpush1.xpose.msra.mxu0 0.0
    %2775 = vmatprep.subr.mxu0 0.0
    %2776 = vmatpush1.xpose.msra.mxu0 0.0
    %2777 = vmatprep.subr.mxu0 0.0
    %2778 = vmatpush1.xpose.msra.mxu0 0.0
    %2779 = vmatprep.subr.mxu0 0.0
    %2780 = vmatpush1.xpose.msra.mxu0 0.0
    %2781 = vmatprep.subr.mxu0 0.0
    %2782 = vmatpush1.xpose.msra.mxu0 0.0
    %2783 = vmatprep.subr.mxu0 0.0
    %2784 = vmatpush1.xpose.msra.mxu0 0.0
    %2785 = vmatprep.subr.mxu0 0.0
    %2786 = vmatpush1.xpose.msra.mxu0 0.0
    %2787 = vmatprep.subr.mxu0 0.0
    %2788 = vmatpush1.xpose.msra.mxu0 0.0
    %2789 = vmatprep.subr.mxu0 0.0
    %2790 = vmatpush1.xpose.msra.mxu0 0.0
    %2791 = vmatprep.subr.mxu0 0.0
    %2792 = vmatpush1.xpose.msra.mxu0 0.0
    %2793 = vmatprep.subr.mxu0 0.0
    %2794 = vmatpush1.xpose.msra.mxu0 0.0
    %2795 = vmatprep.subr.mxu0 0.0
    %2796 = vmatpush1.xpose.msra.mxu0 0.0
    %2797 = vmatprep.subr.mxu0 0.0
    %2798 = vmatpush1.xpose.msra.mxu0 0.0
    %2799 = vmatprep.subr.mxu0 0.0
    %2800 = vmatpush1.xpose.msra.mxu0 0.0
    %2801 = vmatprep.subr.mxu0 0.0
    %2802 = vmatpush1.xpose.msra.mxu0 0.0
    %2803 = vmatprep.subr.mxu0 0.0
    %2804 = vmatpush1.xpose.msra.mxu0 0.0
    %2805 = vmatprep.subr.mxu0 0.0
    %2806 = vmatpush1.xpose.msra.mxu0 0.0
    %2807 = vmatprep.subr.mxu0 0.0
    %2808 = vmatpush1.xpose.msra.mxu0 0.0
    %2809 = vmatprep.subr.mxu0 0.0
    %2810 = vmatpush1.xpose.msra.mxu0 0.0
    %2811 = vmatprep.subr.mxu0 0.0
    %2812 = vmatpush1.xpose.msra.mxu0 0.0
    %2813 = vmatprep.subr.mxu0 0.0
    %2814 = vmatpush1.xpose.msra.mxu0 0.0
    %2815 = vmatprep.subr.mxu0 0.0
    %2816 = vmatpush1.xpose.msra.mxu0 0.0
    %2817 = vmatprep.subr.mxu0 0.0
    %2818 = vmatpush1.xpose.msra.mxu0 0.0
    %2819 = vmatprep.subr.mxu0 0.0
    %2820 = vmatpush1.xpose.msra.mxu0 0.0
    %2821 = vmatprep.subr.mxu0 0.0
    %2822 = vmatpush1.xpose.msra.mxu0 0.0
    %2823 = vmatprep.mubr.f32.mxu0 0.0
    %2824 = vmatmul.mubr.f32.gmra.mrb[0].mxu0 %v2755
    %v2825 = vpop.f32.mrb[0].mxu0
    %v2826 = vadd.f32 0.0, %v2825
    %v2827 = vpop.f32.mrb[0].mxu0
    %2828 = vdwg.mxu0
    %v2829 = vmul.f32 %v2826, 0.35355338
    %v2830 = vadd.f32 %v2829, %v475
    %v2831 = vsel %vm396, %v2830, -inf
    %2832 = vmax.xlane.f32.xlu0 %v2831
    %v2833 = vpop.xlane.xlu0 %2832
    %v2834 = vsub.f32 %v2830, %v2833
    %v2835 = vmul.f32 %v2834, 1.442695
    %v2836 = vpow.pop %v2835
    %v2837 = vsel %vm396, %v2836, 0.0
    %2838 = vadd.xlane.f32.xlu0 %v2837
    %v2839 = vpop.xlane.xlu0 %2838
    %v2840 = vrcp.pop %v2839
    %v2841 = vmul.f32 %v2836, %v2840
    %2842 = vrot.lane.b32.xlu0 %v2243, 40
    %v2843 = vpop.permute.xlu0 %2842
    %v2846 = vsel %vm396, %v2841, 0
    %2848 = vmatprep.subr.mxu0 0.0
    %2849 = vmatpush1.msra.mxu0 %v2843
    %2850 = vmatprep.subr.mxu0 0.0
    %2851 = vmatpush1.msra.mxu0 0.0
    %2852 = vmatprep.subr.mxu0 0.0
    %2853 = vmatpush1.msra.mxu0 0.0
    %2854 = vmatprep.subr.mxu0 0.0
    %2855 = vmatpush1.msra.mxu0 0.0
    %2856 = vmatprep.subr.mxu0 0.0
    %2857 = vmatpush1.msra.mxu0 0.0
    %2858 = vmatprep.subr.mxu0 0.0
    %2859 = vmatpush1.msra.mxu0 0.0
    %2860 = vmatprep.subr.mxu0 0.0
    %2861 = vmatpush1.msra.mxu0 0.0
    %2862 = vmatprep.subr.mxu0 0.0
    %2863 = vmatpush1.msra.mxu0 0.0
    %2864 = vmatprep.subr.mxu0 0.0
    %2865 = vmatpush1.msra.mxu0 0.0
    %2866 = vmatprep.subr.mxu0 0.0
    %2867 = vmatpush1.msra.mxu0 0.0
    %2868 = vmatprep.subr.mxu0 0.0
    %2869 = vmatpush1.msra.mxu0 0.0
    %2870 = vmatprep.subr.mxu0 0.0
    %2871 = vmatpush1.msra.mxu0 0.0
    %2872 = vmatprep.subr.mxu0 0.0
    %2873 = vmatpush1.msra.mxu0 0.0
    %2874 = vmatprep.subr.mxu0 0.0
    %2875 = vmatpush1.msra.mxu0 0.0
    %2876 = vmatprep.subr.mxu0 0.0
    %2877 = vmatpush1.msra.mxu0 0.0
    %2878 = vmatprep.subr.mxu0 0.0
    %2879 = vmatpush1.msra.mxu0 0.0
    %2880 = vmatprep.subr.mxu0 0.0
    %2881 = vmatpush1.msra.mxu0 0.0
    %2882 = vmatprep.subr.mxu0 0.0
    %2883 = vmatpush1.msra.mxu0 0.0
    %2884 = vmatprep.subr.mxu0 0.0
    %2885 = vmatpush1.msra.mxu0 0.0
    %2886 = vmatprep.subr.mxu0 0.0
    %2887 = vmatpush1.msra.mxu0 0.0
    %2888 = vmatprep.subr.mxu0 0.0
    %2889 = vmatpush1.msra.mxu0 0.0
    %2890 = vmatprep.subr.mxu0 0.0
    %2891 = vmatpush1.msra.mxu0 0.0
    %2892 = vmatprep.subr.mxu0 0.0
    %2893 = vmatpush1.msra.mxu0 0.0
    %2894 = vmatprep.subr.mxu0 0.0
    %2895 = vmatpush1.msra.mxu0 0.0
    %2896 = vmatprep.subr.mxu0 0.0
    %2897 = vmatpush1.msra.mxu0 0.0
    %2898 = vmatprep.subr.mxu0 0.0
    %2899 = vmatpush1.msra.mxu0 0.0
    %2900 = vmatprep.subr.mxu0 0.0
    %2901 = vmatpush1.msra.mxu0 0.0
    %2902 = vmatprep.subr.mxu0 0.0
    %2903 = vmatpush1.msra.mxu0 0.0
    %2904 = vmatprep.subr.mxu0 0.0
    %2905 = vmatpush1.msra.mxu0 0.0
    %2906 = vmatprep.subr.mxu0 0.0
    %2907 = vmatpush1.msra.mxu0 0.0
    %2908 = vmatprep.subr.mxu0 0.0
    %2909 = vmatpush1.msra.mxu0 0.0
    %2910 = vmatprep.subr.mxu0 0.0
    %2911 = vmatpush1.msra.mxu0 0.0
    %2912 = vmatprep.mubr.f32.mxu0 0.0
    %2913 = vmatmul.mubr.f32.gmra.mrb[0].mxu0 %v2846
    %v2914 = vpop.f32.mrb[0].mxu0
    %v2915 = vadd.f32 0.0, %v2914
    %v2916 = vpop.f32.mrb[0].mxu0
    %2917 = vdwg.mxu0
    %2919 = vrot.lane.b32.xlu0 %v2581, 8
    %v2920 = vpop.permute.xlu0 %2919
    %2923 = vrot.lane.b32.xlu0 %v2748, 16
    %v2924 = vpop.permute.xlu0 %2923
    %2927 = vrot.lane.b32.xlu0 %v2915, 24
    %v2928 = vpop.permute.xlu0 %2927
    %v2930 = vsel %vm396, %v2414, %v2920
    %v2931 = vsel %vm1078, %v2930, %v2924
    %v2932 = vsel %vm1080, %v2931, %v2928
    %2934 = vrot.lane.b32.xlu0 %v2248, 96
    %v2935 = vpop.permute.xlu0 %2934
    %v2936 = vsel %vm396, %v2248, 0
    %v2938 = vsel %vm396, %v2935, 0
    %2940 = vmatprep.subr.mxu0 0.0
    %2941 = vmatpush1.xpose.msra.mxu0 %v2938
    %2942 = vmatprep.subr.mxu0 0.0
    %2943 = vmatpush1.xpose.msra.mxu0 0.0
    %2944 = vmatprep.subr.mxu0 0.0
    %2945 = vmatpush1.xpose.msra.mxu0 0.0
    %2946 = vmatprep.subr.mxu0 0.0
    %2947 = vmatpush1.xpose.msra.mxu0 0.0
    %2948 = vmatprep.subr.mxu0 0.0
    %2949 = vmatpush1.xpose.msra.mxu0 0.0
    %2950 = vmatprep.subr.mxu0 0.0
    %2951 = vmatpush1.xpose.msra.mxu0 0.0
    %2952 = vmatprep.subr.mxu0 0.0
    %2953 = vmatpush1.xpose.msra.mxu0 0.0
    %2954 = vmatprep.subr.mxu0 0.0
    %2955 = vmatpush1.xpose.msra.mxu0 0.0
    %2956 = vmatprep.subr.mxu0 0.0
    %2957 = vmatpush1.xpose.msra.mxu0 0.0
    %2958 = vmatprep.subr.mxu0 0.0
    %2959 = vmatpush1.xpose.msra.mxu0 0.0
    %2960 = vmatprep.subr.mxu0 0.0
    %2961 = vmatpush1.xpose.msra.mxu0 0.0
    %2962 = vmatprep.subr.mxu0 0.0
    %2963 = vmatpush1.xpose.msra.mxu0 0.0
    %2964 = vmatprep.subr.mxu0 0.0
    %2965 = vmatpush1.xpose.msra.mxu0 0.0
    %2966 = vmatprep.subr.mxu0 0.0
    %2967 = vmatpush1.xpose.msra.mxu0 0.0
    %2968 = vmatprep.subr.mxu0 0.0
    %2969 = vmatpush1.xpose.msra.mxu0 0.0
    %2970 = vmatprep.subr.mxu0 0.0
    %2971 = vmatpush1.xpose.msra.mxu0 0.0
    %2972 = vmatprep.subr.mxu0 0.0
    %2973 = vmatpush1.xpose.msra.mxu0 0.0
    %2974 = vmatprep.subr.mxu0 0.0
    %2975 = vmatpush1.xpose.msra.mxu0 0.0
    %2976 = vmatprep.subr.mxu0 0.0
    %2977 = vmatpush1.xpose.msra.mxu0 0.0
    %2978 = vmatprep.subr.mxu0 0.0
    %2979 = vmatpush1.xpose.msra.mxu0 0.0
    %2980 = vmatprep.subr.mxu0 0.0
    %2981 = vmatpush1.xpose.msra.mxu0 0.0
    %2982 = vmatprep.subr.mxu0 0.0
    %2983 = vmatpush1.xpose.msra.mxu0 0.0
    %2984 = vmatprep.subr.mxu0 0.0
    %2985 = vmatpush1.xpose.msra.mxu0 0.0
    %2986 = vmatprep.subr.mxu0 0.0
    %2987 = vmatpush1.xpose.msra.mxu0 0.0
    %2988 = vmatprep.subr.mxu0 0.0
    %2989 = vmatpush1.xpose.msra.mxu0 0.0
    %2990 = vmatprep.subr.mxu0 0.0
    %2991 = vmatpush1.xpose.msra.mxu0 0.0
    %2992 = vmatprep.subr.mxu0 0.0
    %2993 = vmatpush1.xpose.msra.mxu0 0.0
    %2994 = vmatprep.subr.mxu0 0.0
    %2995 = vmatpush1.xpose.msra.mxu0 0.0
    %2996 = vmatprep.subr.mxu0 0.0
    %2997 = vmatpush1.xpose.msra.mxu0 0.0
    %2998 = vmatprep.subr.mxu0 0.0
    %2999 = vmatpush1.xpose.msra.mxu0 0.0
    %3000 = vmatprep.subr.mxu0 0.0
    %3001 = vmatpush1.xpose.msra.mxu0 0.0
    %3002 = vmatprep.subr.mxu0 0.0
    %3003 = vmatpush1.xpose.msra.mxu0 0.0
    %3004 = vmatprep.mubr.f32.mxu0 0.0
    %3005 = vmatmul.mubr.f32.gmra.mrb[0].mxu0 %v2936
    %v3006 = vpop.f32.mrb[0].mxu0
    %v3007 = vadd.f32 0.0, %v3006
    %v3008 = vpop.f32.mrb[0].mxu0
    %3009 = vdwg.mxu0
    %v3010 = vmul.f32 %v3007, 0.35355338
    %v3011 = vadd.f32 %v3010, %v1163
    %v3012 = vsel %vm396, %v3011, -inf
    %3013 = vmax.xlane.f32.xlu0 %v3012
    %v3014 = vpop.xlane.xlu0 %3013
    %v3015 = vsub.f32 %v3011, %v3014
    %v3016 = vmul.f32 %v3015, 1.442695
    %v3017 = vpow.pop %v3016
    %v3018 = vsel %vm396, %v3017, 0.0
    %3019 = vadd.xlane.f32.xlu0 %v3018
    %v3020 = vpop.xlane.xlu0 %3019
    %v3021 = vrcp.pop %v3020
    %v3022 = vmul.f32 %v3017, %v3021
    %3023 = vrot.lane.b32.xlu0 %v2248, 64
    %v3024 = vpop.permute.xlu0 %3023
    %v3027 = vsel %vm396, %v3022, 0
    %3029 = vmatprep.subr.mxu0 0.0
    %3030 = vmatpush1.msra.mxu0 %v3024
    %3031 = vmatprep.subr.mxu0 0.0
    %3032 = vmatpush1.msra.mxu0 0.0
    %3033 = vmatprep.subr.mxu0 0.0
    %3034 = vmatpush1.msra.mxu0 0.0
    %3035 = vmatprep.subr.mxu0 0.0
    %3036 = vmatpush1.msra.mxu0 0.0
    %3037 = vmatprep.subr.mxu0 0.0
    %3038 = vmatpush1.msra.mxu0 0.0
    %3039 = vmatprep.subr.mxu0 0.0
    %3040 = vmatpush1.msra.mxu0 0.0
    %3041 = vmatprep.subr.mxu0 0.0
    %3042 = vmatpush1.msra.mxu0 0.0
    %3043 = vmatprep.subr.mxu0 0.0
    %3044 = vmatpush1.msra.mxu0 0.0
    %3045 = vmatprep.subr.mxu0 0.0
    %3046 = vmatpush1.msra.mxu0 0.0
    %3047 = vmatprep.subr.mxu0 0.0
    %3048 = vmatpush1.msra.mxu0 0.0
    %3049 = vmatprep.subr.mxu0 0.0
    %3050 = vmatpush1.msra.mxu0 0.0
    %3051 = vmatprep.subr.mxu0 0.0
    %3052 = vmatpush1.msra.mxu0 0.0
    %3053 = vmatprep.subr.mxu0 0.0
    %3054 = vmatpush1.msra.mxu0 0.0
    %3055 = vmatprep.subr.mxu0 0.0
    %3056 = vmatpush1.msra.mxu0 0.0
    %3057 = vmatprep.subr.mxu0 0.0
    %3058 = vmatpush1.msra.mxu0 0.0
    %3059 = vmatprep.subr.mxu0 0.0
    %3060 = vmatpush1.msra.mxu0 0.0
    %3061 = vmatprep.subr.mxu0 0.0
    %3062 = vmatpush1.msra.mxu0 0.0
    %3063 = vmatprep.subr.mxu0 0.0
    %3064 = vmatpush1.msra.mxu0 0.0
    %3065 = vmatprep.subr.mxu0 0.0
    %3066 = vmatpush1.msra.mxu0 0.0
    %3067 = vmatprep.subr.mxu0 0.0
    %3068 = vmatpush1.msra.mxu0 0.0
    %3069 = vmatprep.subr.mxu0 0.0
    %3070 = vmatpush1.msra.mxu0 0.0
    %3071 = vmatprep.subr.mxu0 0.0
    %3072 = vmatpush1.msra.mxu0 0.0
    %3073 = vmatprep.subr.mxu0 0.0
    %3074 = vmatpush1.msra.mxu0 0.0
    %3075 = vmatprep.subr.mxu0 0.0
    %3076 = vmatpush1.msra.mxu0 0.0
    %3077 = vmatprep.subr.mxu0 0.0
    %3078 = vmatpush1.msra.mxu0 0.0
    %3079 = vmatprep.subr.mxu0 0.0
    %3080 = vmatpush1.msra.mxu0 0.0
    %3081 = vmatprep.subr.mxu0 0.0
    %3082 = vmatpush1.msra.mxu0 0.0
    %3083 = vmatprep.subr.mxu0 0.0
    %3084 = vmatpush1.msra.mxu0 0.0
    %3085 = vmatprep.subr.mxu0 0.0
    %3086 = vmatpush1.msra.mxu0 0.0
    %3087 = vmatprep.subr.mxu0 0.0
    %3088 = vmatpush1.msra.mxu0 0.0
    %3089 = vmatprep.subr.mxu0 0.0
    %3090 = vmatpush1.msra.mxu0 0.0
    %3091 = vmatprep.subr.mxu0 0.0
    %3092 = vmatpush1.msra.mxu0 0.0
    %3093 = vmatprep.mubr.f32.mxu0 0.0
    %3094 = vmatmul.mubr.f32.gmra.mrb[0].mxu0 %v3027
    %v3095 = vpop.f32.mrb[0].mxu0
    %v3096 = vadd.f32 0.0, %v3095
    %v3097 = vpop.f32.mrb[0].mxu0
    %3098 = vdwg.mxu0
    %3099 = vrot.lane.b32.xlu0 %v2248, 120
    %v3100 = vpop.permute.xlu0 %3099
    %3101 = vrot.lane.b32.xlu0 %v2248, 88
    %v3102 = vpop.permute.xlu0 %3101
    %v3103 = vsel %vm396, %v3100, 0
    %v3105 = vsel %vm396, %v3102, 0
    %3107 = vmatprep.subr.mxu0 0.0
    %3108 = vmatpush1.xpose.msra.mxu0 %v3105
    %3109 = vmatprep.subr.mxu0 0.0
    %3110 = vmatpush1.xpose.msra.mxu0 0.0
    %3111 = vmatprep.subr.mxu0 0.0
    %3112 = vmatpush1.xpose.msra.mxu0 0.0
    %3113 = vmatprep.subr.mxu0 0.0
    %3114 = vmatpush1.xpose.msra.mxu0 0.0
    %3115 = vmatprep.subr.mxu0 0.0
    %3116 = vmatpush1.xpose.msra.mxu0 0.0
    %3117 = vmatprep.subr.mxu0 0.0
    %3118 = vmatpush1.xpose.msra.mxu0 0.0
    %3119 = vmatprep.subr.mxu0 0.0
    %3120 = vmatpush1.xpose.msra.mxu0 0.0
    %3121 = vmatprep.subr.mxu0 0.0
    %3122 = vmatpush1.xpose.msra.mxu0 0.0
    %3123 = vmatprep.subr.mxu0 0.0
    %3124 = vmatpush1.xpose.msra.mxu0 0.0
    %3125 = vmatprep.subr.mxu0 0.0
    %3126 = vmatpush1.xpose.msra.mxu0 0.0
    %3127 = vmatprep.subr.mxu0 0.0
    %3128 = vmatpush1.xpose.msra.mxu0 0.0
    %3129 = vmatprep.subr.mxu0 0.0
    %3130 = vmatpush1.xpose.msra.mxu0 0.0
    %3131 = vmatprep.subr.mxu0 0.0
    %3132 = vmatpush1.xpose.msra.mxu0 0.0
    %3133 = vmatprep.subr.mxu0 0.0
    %3134 = vmatpush1.xpose.msra.mxu0 0.0
    %3135 = vmatprep.subr.mxu0 0.0
    %3136 = vmatpush1.xpose.msra.mxu0 0.0
    %3137 = vmatprep.subr.mxu0 0.0
    %3138 = vmatpush1.xpose.msra.mxu0 0.0
    %3139 = vmatprep.subr.mxu0 0.0
    %3140 = vmatpush1.xpose.msra.mxu0 0.0
    %3141 = vmatprep.subr.mxu0 0.0
    %3142 = vmatpush1.xpose.msra.mxu0 0.0
    %3143 = vmatprep.subr.mxu0 0.0
    %3144 = vmatpush1.xpose.msra.mxu0 0.0
    %3145 = vmatprep.subr.mxu0 0.0
    %3146 = vmatpush1.xpose.msra.mxu0 0.0
    %3147 = vmatprep.subr.mxu0 0.0
    %3148 = vmatpush1.xpose.msra.mxu0 0.0
    %3149 = vmatprep.subr.mxu0 0.0
    %3150 = vmatpush1.xpose.msra.mxu0 0.0
    %3151 = vmatprep.subr.mxu0 0.0
    %3152 = vmatpush1.xpose.msra.mxu0 0.0
    %3153 = vmatprep.subr.mxu0 0.0
    %3154 = vmatpush1.xpose.msra.mxu0 0.0
    %3155 = vmatprep.subr.mxu0 0.0
    %3156 = vmatpush1.xpose.msra.mxu0 0.0
    %3157 = vmatprep.subr.mxu0 0.0
    %3158 = vmatpush1.xpose.msra.mxu0 0.0
    %3159 = vmatprep.subr.mxu0 0.0
    %3160 = vmatpush1.xpose.msra.mxu0 0.0
    %3161 = vmatprep.subr.mxu0 0.0
    %3162 = vmatpush1.xpose.msra.mxu0 0.0
    %3163 = vmatprep.subr.mxu0 0.0
    %3164 = vmatpush1.xpose.msra.mxu0 0.0
    %3165 = vmatprep.subr.mxu0 0.0
    %3166 = vmatpush1.xpose.msra.mxu0 0.0
    %3167 = vmatprep.subr.mxu0 0.0
    %3168 = vmatpush1.xpose.msra.mxu0 0.0
    %3169 = vmatprep.subr.mxu0 0.0
    %3170 = vmatpush1.xpose.msra.mxu0 0.0
    %3171 = vmatprep.mubr.f32.mxu0 0.0
    %3172 = vmatmul.mubr.f32.gmra.mrb[0].mxu0 %v3103
    %v3173 = vpop.f32.mrb[0].mxu0
    %v3174 = vadd.f32 0.0, %v3173
    %v3175 = vpop.f32.mrb[0].mxu0
    %3176 = vdwg.mxu0
    %v3177 = vmul.f32 %v3174, 0.35355338
    %v3178 = vadd.f32 %v3177, %v1163
    %v3179 = vsel %vm396, %v3178, -inf
    %3180 = vmax.xlane.f32.xlu0 %v3179
    %v3181 = vpop.xlane.xlu0 %3180
    %v3182 = vsub.f32 %v3178, %v3181
    %v3183 = vmul.f32 %v3182, 1.442695
    %v3184 = vpow.pop %v3183
    %v3185 = vsel %vm396, %v3184, 0.0
    %3186 = vadd.xlane.f32.xlu0 %v3185
    %v3187 = vpop.xlane.xlu0 %3186
    %v3188 = vrcp.pop %v3187
    %v3189 = vmul.f32 %v3184, %v3188
    %3190 = vrot.lane.b32.xlu0 %v2248, 56
    %v3191 = vpop.permute.xlu0 %3190
    %v3194 = vsel %vm396, %v3189, 0
    %3196 = vmatprep.subr.mxu0 0.0
    %3197 = vmatpush1.msra.mxu0 %v3191
    %3198 = vmatprep.subr.mxu0 0.0
    %3199 = vmatpush1.msra.mxu0 0.0
    %3200 = vmatprep.subr.mxu0 0.0
    %3201 = vmatpush1.msra.mxu0 0.0
    %3202 = vmatprep.subr.mxu0 0.0
    %3203 = vmatpush1.msra.mxu0 0.0
    %3204 = vmatprep.subr.mxu0 0.0
    %3205 = vmatpush1.msra.mxu0 0.0
    %3206 = vmatprep.subr.mxu0 0.0
    %3207 = vmatpush1.msra.mxu0 0.0
    %3208 = vmatprep.subr.mxu0 0.0
    %3209 = vmatpush1.msra.mxu0 0.0
    %3210 = vmatprep.subr.mxu0 0.0
    %3211 = vmatpush1.msra.mxu0 0.0
    %3212 = vmatprep.subr.mxu0 0.0
    %3213 = vmatpush1.msra.mxu0 0.0
    %3214 = vmatprep.subr.mxu0 0.0
    %3215 = vmatpush1.msra.mxu0 0.0
    %3216 = vmatprep.subr.mxu0 0.0
    %3217 = vmatpush1.msra.mxu0 0.0
    %3218 = vmatprep.subr.mxu0 0.0
    %3219 = vmatpush1.msra.mxu0 0.0
    %3220 = vmatprep.subr.mxu0 0.0
    %3221 = vmatpush1.msra.mxu0 0.0
    %3222 = vmatprep.subr.mxu0 0.0
    %3223 = vmatpush1.msra.mxu0 0.0
    %3224 = vmatprep.subr.mxu0 0.0
    %3225 = vmatpush1.msra.mxu0 0.0
    %3226 = vmatprep.subr.mxu0 0.0
    %3227 = vmatpush1.msra.mxu0 0.0
    %3228 = vmatprep.subr.mxu0 0.0
    %3229 = vmatpush1.msra.mxu0 0.0
    %3230 = vmatprep.subr.mxu0 0.0
    %3231 = vmatpush1.msra.mxu0 0.0
    %3232 = vmatprep.subr.mxu0 0.0
    %3233 = vmatpush1.msra.mxu0 0.0
    %3234 = vmatprep.subr.mxu0 0.0
    %3235 = vmatpush1.msra.mxu0 0.0
    %3236 = vmatprep.subr.mxu0 0.0
    %3237 = vmatpush1.msra.mxu0 0.0
    %3238 = vmatprep.subr.mxu0 0.0
    %3239 = vmatpush1.msra.mxu0 0.0
    %3240 = vmatprep.subr.mxu0 0.0
    %3241 = vmatpush1.msra.mxu0 0.0
    %3242 = vmatprep.subr.mxu0 0.0
    %3243 = vmatpush1.msra.mxu0 0.0
    %3244 = vmatprep.subr.mxu0 0.0
    %3245 = vmatpush1.msra.mxu0 0.0
    %3246 = vmatprep.subr.mxu0 0.0
    %3247 = vmatpush1.msra.mxu0 0.0
    %3248 = vmatprep.subr.mxu0 0.0
    %3249 = vmatpush1.msra.mxu0 0.0
    %3250 = vmatprep.subr.mxu0 0.0
    %3251 = vmatpush1.msra.mxu0 0.0
    %3252 = vmatprep.subr.mxu0 0.0
    %3253 = vmatpush1.msra.mxu0 0.0
    %3254 = vmatprep.subr.mxu0 0.0
    %3255 = vmatpush1.msra.mxu0 0.0
    %3256 = vmatprep.subr.mxu0 0.0
    %3257 = vmatpush1.msra.mxu0 0.0
    %3258 = vmatprep.subr.mxu0 0.0
    %3259 = vmatpush1.msra.mxu0 0.0
    %3260 = vmatprep.mubr.f32.mxu0 0.0
    %3261 = vmatmul.mubr.f32.gmra.mrb[0].mxu0 %v3194
    %v3262 = vpop.f32.mrb[0].mxu0
    %v3263 = vadd.f32 0.0, %v3262
    %v3264 = vpop.f32.mrb[0].mxu0
    %3265 = vdwg.mxu0
    %3266 = vrot.lane.b32.xlu0 %v2248, 112
    %v3267 = vpop.permute.xlu0 %3266
    %3268 = vrot.lane.b32.xlu0 %v2248, 80
    %v3269 = vpop.permute.xlu0 %3268
    %v3270 = vsel %vm396, %v3267, 0
    %v3272 = vsel %vm396, %v3269, 0
    %3274 = vmatprep.subr.mxu0 0.0
    %3275 = vmatpush1.xpose.msra.mxu0 %v3272
    %3276 = vmatprep.subr.mxu0 0.0
    %3277 = vmatpush1.xpose.msra.mxu0 0.0
    %3278 = vmatprep.subr.mxu0 0.0
    %3279 = vmatpush1.xpose.msra.mxu0 0.0
    %3280 = vmatprep.subr.mxu0 0.0
    %3281 = vmatpush1.xpose.msra.mxu0 0.0
    %3282 = vmatprep.subr.mxu0 0.0
    %3283 = vmatpush1.xpose.msra.mxu0 0.0
    %3284 = vmatprep.subr.mxu0 0.0
    %3285 = vmatpush1.xpose.msra.mxu0 0.0
    %3286 = vmatprep.subr.mxu0 0.0
    %3287 = vmatpush1.xpose.msra.mxu0 0.0
    %3288 = vmatprep.subr.mxu0 0.0
    %3289 = vmatpush1.xpose.msra.mxu0 0.0
    %3290 = vmatprep.subr.mxu0 0.0
    %3291 = vmatpush1.xpose.msra.mxu0 0.0
    %3292 = vmatprep.subr.mxu0 0.0
    %3293 = vmatpush1.xpose.msra.mxu0 0.0
    %3294 = vmatprep.subr.mxu0 0.0
    %3295 = vmatpush1.xpose.msra.mxu0 0.0
    %3296 = vmatprep.subr.mxu0 0.0
    %3297 = vmatpush1.xpose.msra.mxu0 0.0
    %3298 = vmatprep.subr.mxu0 0.0
    %3299 = vmatpush1.xpose.msra.mxu0 0.0
    %3300 = vmatprep.subr.mxu0 0.0
    %3301 = vmatpush1.xpose.msra.mxu0 0.0
    %3302 = vmatprep.subr.mxu0 0.0
    %3303 = vmatpush1.xpose.msra.mxu0 0.0
    %3304 = vmatprep.subr.mxu0 0.0
    %3305 = vmatpush1.xpose.msra.mxu0 0.0
    %3306 = vmatprep.subr.mxu0 0.0
    %3307 = vmatpush1.xpose.msra.mxu0 0.0
    %3308 = vmatprep.subr.mxu0 0.0
    %3309 = vmatpush1.xpose.msra.mxu0 0.0
    %3310 = vmatprep.subr.mxu0 0.0
    %3311 = vmatpush1.xpose.msra.mxu0 0.0
    %3312 = vmatprep.subr.mxu0 0.0
    %3313 = vmatpush1.xpose.msra.mxu0 0.0
    %3314 = vmatprep.subr.mxu0 0.0
    %3315 = vmatpush1.xpose.msra.mxu0 0.0
    %3316 = vmatprep.subr.mxu0 0.0
    %3317 = vmatpush1.xpose.msra.mxu0 0.0
    %3318 = vmatprep.subr.mxu0 0.0
    %3319 = vmatpush1.xpose.msra.mxu0 0.0
    %3320 = vmatprep.subr.mxu0 0.0
    %3321 = vmatpush1.xpose.msra.mxu0 0.0
    %3322 = vmatprep.subr.mxu0 0.0
    %3323 = vmatpush1.xpose.msra.mxu0 0.0
    %3324 = vmatprep.subr.mxu0 0.0
    %3325 = vmatpush1.xpose.msra.mxu0 0.0
    %3326 = vmatprep.subr.mxu0 0.0
    %3327 = vmatpush1.xpose.msra.mxu0 0.0
    %3328 = vmatprep.subr.mxu0 0.0
    %3329 = vmatpush1.xpose.msra.mxu0 0.0
    %3330 = vmatprep.subr.mxu0 0.0
    %3331 = vmatpush1.xpose.msra.mxu0 0.0
    %3332 = vmatprep.subr.mxu0 0.0
    %3333 = vmatpush1.xpose.msra.mxu0 0.0
    %3334 = vmatprep.subr.mxu0 0.0
    %3335 = vmatpush1.xpose.msra.mxu0 0.0
    %3336 = vmatprep.subr.mxu0 0.0
    %3337 = vmatpush1.xpose.msra.mxu0 0.0
    %3338 = vmatprep.mubr.f32.mxu0 0.0
    %3339 = vmatmul.mubr.f32.gmra.mrb[0].mxu0 %v3270
    %v3340 = vpop.f32.mrb[0].mxu0
    %v3341 = vadd.f32 0.0, %v3340
    %v3342 = vpop.f32.mrb[0].mxu0
    %3343 = vdwg.mxu0
    %v3344 = vmul.f32 %v3341, 0.35355338
    %v3345 = vadd.f32 %v3344, %v1163
    %v3346 = vsel %vm396, %v3345, -inf
    %3347 = vmax.xlane.f32.xlu0 %v3346
    %v3348 = vpop.xlane.xlu0 %3347
    %v3349 = vsub.f32 %v3345, %v3348
    %v3350 = vmul.f32 %v3349, 1.442695
    %v3351 = vpow.pop %v3350
    %v3352 = vsel %vm396, %v3351, 0.0
    %3353 = vadd.xlane.f32.xlu0 %v3352
    %v3354 = vpop.xlane.xlu0 %3353
    %v3355 = vrcp.pop %v3354
    %v3356 = vmul.f32 %v3351, %v3355
    %3357 = vrot.lane.b32.xlu0 %v2248, 48
    %v3358 = vpop.permute.xlu0 %3357
    %v3361 = vsel %vm396, %v3356, 0
    %3363 = vmatprep.subr.mxu0 0.0
    %3364 = vmatpush1.msra.mxu0 %v3358
    %3365 = vmatprep.subr.mxu0 0.0
    %3366 = vmatpush1.msra.mxu0 0.0
    %3367 = vmatprep.subr.mxu0 0.0
    %3368 = vmatpush1.msra.mxu0 0.0
    %3369 = vmatprep.subr.mxu0 0.0
    %3370 = vmatpush1.msra.mxu0 0.0
    %3371 = vmatprep.subr.mxu0 0.0
    %3372 = vmatpush1.msra.mxu0 0.0
    %3373 = vmatprep.subr.mxu0 0.0
    %3374 = vmatpush1.msra.mxu0 0.0
    %3375 = vmatprep.subr.mxu0 0.0
    %3376 = vmatpush1.msra.mxu0 0.0
    %3377 = vmatprep.subr.mxu0 0.0
    %3378 = vmatpush1.msra.mxu0 0.0
    %3379 = vmatprep.subr.mxu0 0.0
    %3380 = vmatpush1.msra.mxu0 0.0
    %3381 = vmatprep.subr.mxu0 0.0
    %3382 = vmatpush1.msra.mxu0 0.0
    %3383 = vmatprep.subr.mxu0 0.0
    %3384 = vmatpush1.msra.mxu0 0.0
    %3385 = vmatprep.subr.mxu0 0.0
    %3386 = vmatpush1.msra.mxu0 0.0
    %3387 = vmatprep.subr.mxu0 0.0
    %3388 = vmatpush1.msra.mxu0 0.0
    %3389 = vmatprep.subr.mxu0 0.0
    %3390 = vmatpush1.msra.mxu0 0.0
    %3391 = vmatprep.subr.mxu0 0.0
    %3392 = vmatpush1.msra.mxu0 0.0
    %3393 = vmatprep.subr.mxu0 0.0
    %3394 = vmatpush1.msra.mxu0 0.0
    %3395 = vmatprep.subr.mxu0 0.0
    %3396 = vmatpush1.msra.mxu0 0.0
    %3397 = vmatprep.subr.mxu0 0.0
    %3398 = vmatpush1.msra.mxu0 0.0
    %3399 = vmatprep.subr.mxu0 0.0
    %3400 = vmatpush1.msra.mxu0 0.0
    %3401 = vmatprep.subr.mxu0 0.0
    %3402 = vmatpush1.msra.mxu0 0.0
    %3403 = vmatprep.subr.mxu0 0.0
    %3404 = vmatpush1.msra.mxu0 0.0
    %3405 = vmatprep.subr.mxu0 0.0
    %3406 = vmatpush1.msra.mxu0 0.0
    %3407 = vmatprep.subr.mxu0 0.0
    %3408 = vmatpush1.msra.mxu0 0.0
    %3409 = vmatprep.subr.mxu0 0.0
    %3410 = vmatpush1.msra.mxu0 0.0
    %3411 = vmatprep.subr.mxu0 0.0
    %3412 = vmatpush1.msra.mxu0 0.0
    %3413 = vmatprep.subr.mxu0 0.0
    %3414 = vmatpush1.msra.mxu0 0.0
    %3415 = vmatprep.subr.mxu0 0.0
    %3416 = vmatpush1.msra.mxu0 0.0
    %3417 = vmatprep.subr.mxu0 0.0
    %3418 = vmatpush1.msra.mxu0 0.0
    %3419 = vmatprep.subr.mxu0 0.0
    %3420 = vmatpush1.msra.mxu0 0.0
    %3421 = vmatprep.subr.mxu0 0.0
    %3422 = vmatpush1.msra.mxu0 0.0
    %3423 = vmatprep.subr.mxu0 0.0
    %3424 = vmatpush1.msra.mxu0 0.0
    %3425 = vmatprep.subr.mxu0 0.0
    %3426 = vmatpush1.msra.mxu0 0.0
    %3427 = vmatprep.mubr.f32.mxu0 0.0
    %3428 = vmatmul.mubr.f32.gmra.mrb[0].mxu0 %v3361
    %v3429 = vpop.f32.mrb[0].mxu0
    %v3430 = vadd.f32 0.0, %v3429
    %v3431 = vpop.f32.mrb[0].mxu0
    %3432 = vdwg.mxu0
    %3433 = vrot.lane.b32.xlu0 %v2248, 104
    %v3434 = vpop.permute.xlu0 %3433
    %3435 = vrot.lane.b32.xlu0 %v2248, 72
    %v3436 = vpop.permute.xlu0 %3435
    %v3437 = vsel %vm396, %v3434, 0
    %v3439 = vsel %vm396, %v3436, 0
    %3441 = vmatprep.subr.mxu0 0.0
    %3442 = vmatpush1.xpose.msra.mxu0 %v3439
    %3443 = vmatprep.subr.mxu0 0.0
    %3444 = vmatpush1.xpose.msra.mxu0 0.0
    %3445 = vmatprep.subr.mxu0 0.0
    %3446 = vmatpush1.xpose.msra.mxu0 0.0
    %3447 = vmatprep.subr.mxu0 0.0
    %3448 = vmatpush1.xpose.msra.mxu0 0.0
    %3449 = vmatprep.subr.mxu0 0.0
    %3450 = vmatpush1.xpose.msra.mxu0 0.0
    %3451 = vmatprep.subr.mxu0 0.0
    %3452 = vmatpush1.xpose.msra.mxu0 0.0
    %3453 = vmatprep.subr.mxu0 0.0
    %3454 = vmatpush1.xpose.msra.mxu0 0.0
    %3455 = vmatprep.subr.mxu0 0.0
    %3456 = vmatpush1.xpose.msra.mxu0 0.0
    %3457 = vmatprep.subr.mxu0 0.0
    %3458 = vmatpush1.xpose.msra.mxu0 0.0
    %3459 = vmatprep.subr.mxu0 0.0
    %3460 = vmatpush1.xpose.msra.mxu0 0.0
    %3461 = vmatprep.subr.mxu0 0.0
    %3462 = vmatpush1.xpose.msra.mxu0 0.0
    %3463 = vmatprep.subr.mxu0 0.0
    %3464 = vmatpush1.xpose.msra.mxu0 0.0
    %3465 = vmatprep.subr.mxu0 0.0
    %3466 = vmatpush1.xpose.msra.mxu0 0.0
    %3467 = vmatprep.subr.mxu0 0.0
    %3468 = vmatpush1.xpose.msra.mxu0 0.0
    %3469 = vmatprep.subr.mxu0 0.0
    %3470 = vmatpush1.xpose.msra.mxu0 0.0
    %3471 = vmatprep.subr.mxu0 0.0
    %3472 = vmatpush1.xpose.msra.mxu0 0.0
    %3473 = vmatprep.subr.mxu0 0.0
    %3474 = vmatpush1.xpose.msra.mxu0 0.0
    %3475 = vmatprep.subr.mxu0 0.0
    %3476 = vmatpush1.xpose.msra.mxu0 0.0
    %3477 = vmatprep.subr.mxu0 0.0
    %3478 = vmatpush1.xpose.msra.mxu0 0.0
    %3479 = vmatprep.subr.mxu0 0.0
    %3480 = vmatpush1.xpose.msra.mxu0 0.0
    %3481 = vmatprep.subr.mxu0 0.0
    %3482 = vmatpush1.xpose.msra.mxu0 0.0
    %3483 = vmatprep.subr.mxu0 0.0
    %3484 = vmatpush1.xpose.msra.mxu0 0.0
    %3485 = vmatprep.subr.mxu0 0.0
    %3486 = vmatpush1.xpose.msra.mxu0 0.0
    %3487 = vmatprep.subr.mxu0 0.0
    %3488 = vmatpush1.xpose.msra.mxu0 0.0
    %3489 = vmatprep.subr.mxu0 0.0
    %3490 = vmatpush1.xpose.msra.mxu0 0.0
    %3491 = vmatprep.subr.mxu0 0.0
    %3492 = vmatpush1.xpose.msra.mxu0 0.0
    %3493 = vmatprep.subr.mxu0 0.0
    %3494 = vmatpush1.xpose.msra.mxu0 0.0
    %3495 = vmatprep.subr.mxu0 0.0
    %3496 = vmatpush1.xpose.msra.mxu0 0.0
    %3497 = vmatprep.subr.mxu0 0.0
    %3498 = vmatpush1.xpose.msra.mxu0 0.0
    %3499 = vmatprep.subr.mxu0 0.0
    %3500 = vmatpush1.xpose.msra.mxu0 0.0
    %3501 = vmatprep.subr.mxu0 0.0
    %3502 = vmatpush1.xpose.msra.mxu0 0.0
    %3503 = vmatprep.subr.mxu0 0.0
    %3504 = vmatpush1.xpose.msra.mxu0 0.0
    %3505 = vmatprep.mubr.f32.mxu0 0.0
    %3506 = vmatmul.mubr.f32.gmra.mrb[0].mxu0 %v3437
    %v3507 = vpop.f32.mrb[0].mxu0
    %v3508 = vadd.f32 0.0, %v3507
    %v3509 = vpop.f32.mrb[0].mxu0
    %3510 = vdwg.mxu0
    %v3511 = vmul.f32 %v3508, 0.35355338
    %v3512 = vadd.f32 %v3511, %v1163
    %v3513 = vsel %vm396, %v3512, -inf
    %3514 = vmax.xlane.f32.xlu0 %v3513
    %v3515 = vpop.xlane.xlu0 %3514
    %v3516 = vsub.f32 %v3512, %v3515
    %v3517 = vmul.f32 %v3516, 1.442695
    %v3518 = vpow.pop %v3517
    %v3519 = vsel %vm396, %v3518, 0.0
    %3520 = vadd.xlane.f32.xlu0 %v3519
    %v3521 = vpop.xlane.xlu0 %3520
    %v3522 = vrcp.pop %v3521
    %v3523 = vmul.f32 %v3518, %v3522
    %3524 = vrot.lane.b32.xlu0 %v2248, 40
    %v3525 = vpop.permute.xlu0 %3524
    %v3528 = vsel %vm396, %v3523, 0
    %3530 = vmatprep.subr.mxu0 0.0
    %3531 = vmatpush1.msra.mxu0 %v3525
    %3532 = vmatprep.subr.mxu0 0.0
    %3533 = vmatpush1.msra.mxu0 0.0
    %3534 = vmatprep.subr.mxu0 0.0
    %3535 = vmatpush1.msra.mxu0 0.0
    %3536 = vmatprep.subr.mxu0 0.0
    %3537 = vmatpush1.msra.mxu0 0.0
    %3538 = vmatprep.subr.mxu0 0.0
    %3539 = vmatpush1.msra.mxu0 0.0
    %3540 = vmatprep.subr.mxu0 0.0
    %3541 = vmatpush1.msra.mxu0 0.0
    %3542 = vmatprep.subr.mxu0 0.0
    %3543 = vmatpush1.msra.mxu0 0.0
    %3544 = vmatprep.subr.mxu0 0.0
    %3545 = vmatpush1.msra.mxu0 0.0
    %3546 = vmatprep.subr.mxu0 0.0
    %3547 = vmatpush1.msra.mxu0 0.0
    %3548 = vmatprep.subr.mxu0 0.0
    %3549 = vmatpush1.msra.mxu0 0.0
    %3550 = vmatprep.subr.mxu0 0.0
    %3551 = vmatpush1.msra.mxu0 0.0
    %3552 = vmatprep.subr.mxu0 0.0
    %3553 = vmatpush1.msra.mxu0 0.0
    %3554 = vmatprep.subr.mxu0 0.0
    %3555 = vmatpush1.msra.mxu0 0.0
    %3556 = vmatprep.subr.mxu0 0.0
    %3557 = vmatpush1.msra.mxu0 0.0
    %3558 = vmatprep.subr.mxu0 0.0
    %3559 = vmatpush1.msra.mxu0 0.0
    %3560 = vmatprep.subr.mxu0 0.0
    %3561 = vmatpush1.msra.mxu0 0.0
    %3562 = vmatprep.subr.mxu0 0.0
    %3563 = vmatpush1.msra.mxu0 0.0
    %3564 = vmatprep.subr.mxu0 0.0
    %3565 = vmatpush1.msra.mxu0 0.0
    %3566 = vmatprep.subr.mxu0 0.0
    %3567 = vmatpush1.msra.mxu0 0.0
    %3568 = vmatprep.subr.mxu0 0.0
    %3569 = vmatpush1.msra.mxu0 0.0
    %3570 = vmatprep.subr.mxu0 0.0
    %3571 = vmatpush1.msra.mxu0 0.0
    %3572 = vmatprep.subr.mxu0 0.0
    %3573 = vmatpush1.msra.mxu0 0.0
    %3574 = vmatprep.subr.mxu0 0.0
    %3575 = vmatpush1.msra.mxu0 0.0
    %3576 = vmatprep.subr.mxu0 0.0
    %3577 = vmatpush1.msra.mxu0 0.0
    %3578 = vmatprep.subr.mxu0 0.0
    %3579 = vmatpush1.msra.mxu0 0.0
    %3580 = vmatprep.subr.mxu0 0.0
    %3581 = vmatpush1.msra.mxu0 0.0
    %3582 = vmatprep.subr.mxu0 0.0
    %3583 = vmatpush1.msra.mxu0 0.0
    %3584 = vmatprep.subr.mxu0 0.0
    %3585 = vmatpush1.msra.mxu0 0.0
    %3586 = vmatprep.subr.mxu0 0.0
    %3587 = vmatpush1.msra.mxu0 0.0
    %3588 = vmatprep.subr.mxu0 0.0
    %3589 = vmatpush1.msra.mxu0 0.0
    %3590 = vmatprep.subr.mxu0 0.0
    %3591 = vmatpush1.msra.mxu0 0.0
    %3592 = vmatprep.subr.mxu0 0.0
    %3593 = vmatpush1.msra.mxu0 0.0
    %3594 = vmatprep.mubr.f32.mxu0 0.0
    %3595 = vmatmul.mubr.f32.gmra.mrb[0].mxu0 %v3528
    %v3596 = vpop.f32.mrb[0].mxu0
    %v3597 = vadd.f32 0.0, %v3596
    %v3598 = vpop.f32.mrb[0].mxu0
    %3599 = vdwg.mxu0
    %3601 = vrot.lane.b32.xlu0 %v3263, 8
    %v3602 = vpop.permute.xlu0 %3601
    %3605 = vrot.lane.b32.xlu0 %v3430, 16
    %v3606 = vpop.permute.xlu0 %3605
    %3609 = vrot.lane.b32.xlu0 %v3597, 24
    %v3610 = vpop.permute.xlu0 %3609
    %v3612 = vsel %vm396, %v3096, %v3602
    %v3613 = vsel %vm1078, %v3612, %v3606
    %v3614 = vsel %vm1080, %v3613, %v3610
    %v3615 = vld [vmem:[%s41] sm:$0xff]
    %v3616 = vld [vmem:[%s41 + $0x8] sm:$0xff]
    %v3617 = vld [vmem:[%s41 + $0x10] sm:$0xff]
    %v3618 = vld [vmem:[%s41 + $0x18] sm:$0xff]
    %v3619 = vld [vmem:[%s43] sm:$0x1]
    %v3621 = vlaneseq
    %v3622 = vshrl.u32 %v3621, 7
    %v3623 = vsub.s32 0, %v3622
    %v3624 = vrot.slane %v3619, %v3623
    %v3627 = vsel %vm253, %v2932, 0
    %v3630 = vsel %vm253, %v3614, 0
    %3632 = vmatprep.subr.mxu0 0.0
    %3633 = vmatpush1.msra.mxu0 %v3615
    %3634 = vmatprep.subr.mxu0 0.0
    %3635 = vmatpush1.msra.mxu0 %v3616
    %3636 = vmatprep.subr.mxu0 0.0
    %3637 = vmatpush1.msra.mxu0 %v3617
    %3638 = vmatprep.subr.mxu0 0.0
    %3639 = vmatpush1.msra.mxu0 %v3618
    %3640 = vmatprep.subr.mxu0 0.0
    %3641 = vmatpush1.msra.mxu0 0.0
    %3642 = vmatprep.subr.mxu0 0.0
    %3643 = vmatpush1.msra.mxu0 0.0
    %3644 = vmatprep.subr.mxu0 0.0
    %3645 = vmatpush1.msra.mxu0 0.0
    %3646 = vmatprep.subr.mxu0 0.0
    %3647 = vmatpush1.msra.mxu0 0.0
    %3648 = vmatprep.subr.mxu0 0.0
    %3649 = vmatpush1.msra.mxu0 0.0
    %3650 = vmatprep.subr.mxu0 0.0
    %3651 = vmatpush1.msra.mxu0 0.0
    %3652 = vmatprep.subr.mxu0 0.0
    %3653 = vmatpush1.msra.mxu0 0.0
    %3654 = vmatprep.subr.mxu0 0.0
    %3655 = vmatpush1.msra.mxu0 0.0
    %3656 = vmatprep.subr.mxu0 0.0
    %3657 = vmatpush1.msra.mxu0 0.0
    %3658 = vmatprep.subr.mxu0 0.0
    %3659 = vmatpush1.msra.mxu0 0.0
    %3660 = vmatprep.subr.mxu0 0.0
    %3661 = vmatpush1.msra.mxu0 0.0
    %3662 = vmatprep.subr.mxu0 0.0
    %3663 = vmatpush1.msra.mxu0 0.0
    %3664 = vmatprep.subr.mxu0 0.0
    %3665 = vmatpush1.msra.mxu0 0.0
    %3666 = vmatprep.subr.mxu0 0.0
    %3667 = vmatpush1.msra.mxu0 0.0
    %3668 = vmatprep.subr.mxu0 0.0
    %3669 = vmatpush1.msra.mxu0 0.0
    %3670 = vmatprep.subr.mxu0 0.0
    %3671 = vmatpush1.msra.mxu0 0.0
    %3672 = vmatprep.subr.mxu0 0.0
    %3673 = vmatpush1.msra.mxu0 0.0
    %3674 = vmatprep.subr.mxu0 0.0
    %3675 = vmatpush1.msra.mxu0 0.0
    %3676 = vmatprep.subr.mxu0 0.0
    %3677 = vmatpush1.msra.mxu0 0.0
    %3678 = vmatprep.subr.mxu0 0.0
    %3679 = vmatpush1.msra.mxu0 0.0
    %3680 = vmatprep.subr.mxu0 0.0
    %3681 = vmatpush1.msra.mxu0 0.0
    %3682 = vmatprep.subr.mxu0 0.0
    %3683 = vmatpush1.msra.mxu0 0.0
    %3684 = vmatprep.subr.mxu0 0.0
    %3685 = vmatpush1.msra.mxu0 0.0
    %3686 = vmatprep.subr.mxu0 0.0
    %3687 = vmatpush1.msra.mxu0 0.0
    %3688 = vmatprep.subr.mxu0 0.0
    %3689 = vmatpush1.msra.mxu0 0.0
    %3690 = vmatprep.subr.mxu0 0.0
    %3691 = vmatpush1.msra.mxu0 0.0
    %3692 = vmatprep.subr.mxu0 0.0
    %3693 = vmatpush1.msra.mxu0 0.0
    %3694 = vmatprep.subr.mxu0 0.0
    %3695 = vmatpush1.msra.mxu0 0.0
    %3696 = vmatprep.mubr.f32.mxu0 0.0
    %3697 = vmatmul.mubr.f32.gmra.mrb[0].mxu0 %v3627
    %v3698 = vpop.f32.mrb[0].mxu0
    %v3699 = vadd.f32 %v3624, %v3698
    %v3700 = vpop.f32.mrb[0].mxu0
    %3701 = vmatprep.mubr.f32.mxu0 0.0
    %3702 = vmatmul.mubr.f32.gmra.mrb[0].mxu0 %v3630
    %v3703 = vpop.f32.mrb[0].mxu0
    %v3704 = vadd.f32 %v3624, %v3703
    %v3705 = vpop.f32.mrb[0].mxu0
    %3706 = vdwg.mxu0
    %v3707 = vadd.f32 %v3699, %v2157
    %v3708 = vadd.f32 %v3704, %v2158
    %v3709 = vld [vmem:[%s45] sm:$0x1]
    %v3710 = vld [vmem:[%s47] sm:$0x1]
    %v3711 = vsel %vm253, %v3707, 0.0
    %3712 = vadd.xlane.f32.xlu0 %v3711
    %v3713 = vpop.xlane.xlu0 %3712
    %v3714 = vsel %vm253, %v3708, 0.0
    %3715 = vadd.xlane.f32.xlu0 %v3714
    %v3716 = vpop.xlane.xlu0 %3715
    %v3717 = vmul.f32 %v3713, %v260
    %v3718 = vmul.f32 %v3716, %v260
    %v3719 = vsub.f32 %v3707, %v3717
    %v3720 = vsub.f32 %v3708, %v3718
    %v3721 = vmul.f32 %v3719, %v3719
    %v3722 = vmul.f32 %v3720, %v3720
    %v3723 = vsel %vm253, %v3721, 0.0
    %3724 = vadd.xlane.f32.xlu0 %v3723
    %v3725 = vpop.xlane.xlu0 %3724
    %v3726 = vsel %vm253, %v3722, 0.0
    %3727 = vadd.xlane.f32.xlu0 %v3726
    %v3728 = vpop.xlane.xlu0 %3727
    %v3729 = vmul.f32 %v3725, %v260
    %v3730 = vmul.f32 %v3728, %v260
    %v3731 = vadd.f32 %v3729, 1e-12
    %v3732 = vadd.f32 %v3730, 1e-12
    %v3733 = vrsqrt.pop %v3731
    %v3734 = vrsqrt.pop %v3732
    %v3735 = vmul.f32 %v3719, %v3733
    %v3736 = vmul.f32 %v3720, %v3734
    %v3738 = vlaneseq
    %v3739 = vshrl.u32 %v3738, 7
    %v3740 = vsub.s32 0, %v3739
    %v3741 = vrot.slane %v3709, %v3740
    %v3743 = vmul.f32 %v3735, %v3741
    %v3744 = vmul.f32 %v3736, %v3741
    %v3746 = vlaneseq
    %v3747 = vshrl.u32 %v3746, 7
    %v3748 = vsub.s32 0, %v3747
    %v3749 = vrot.slane %v3710, %v3748
    %v3751 = vadd.f32 %v3743, %v3749
    %v3752 = vadd.f32 %v3744, %v3749
    %v3753 = vld [vmem:[%s49] sm:$0xff]
    %v3754 = vld [vmem:[%s49 + $0x8] sm:$0xff]
    %v3755 = vld [vmem:[%s49 + $0x10] sm:$0xff]
    %v3756 = vld [vmem:[%s49 + $0x18] sm:$0xff]
    %v3757 = vld [vmem:[%s51] sm:$0x1]
    %v3759 = vlaneseq
    %v3760 = vshrl.u32 %v3759, 7
    %v3761 = vsub.s32 0, %v3760
    %v3762 = vrot.slane %v3757, %v3761
    %v3765 = vsel %vm253, %v3751, 0
    %v3768 = vsel %vm253, %v3752, 0
    %3770 = vmatprep.subr.mxu0 0.0
    %3771 = vmatpush1.msra.mxu0 %v3753
    %3772 = vmatprep.subr.mxu0 0.0
    %3773 = vmatpush1.msra.mxu0 %v3754
    %3774 = vmatprep.subr.mxu0 0.0
    %3775 = vmatpush1.msra.mxu0 %v3755
    %3776 = vmatprep.subr.mxu0 0.0
    %3777 = vmatpush1.msra.mxu0 %v3756
    %3778 = vmatprep.subr.mxu0 0.0
    %3779 = vmatpush1.msra.mxu0 0.0
    %3780 = vmatprep.subr.mxu0 0.0
    %3781 = vmatpush1.msra.mxu0 0.0
    %3782 = vmatprep.subr.mxu0 0.0
    %3783 = vmatpush1.msra.mxu0 0.0
    %3784 = vmatprep.subr.mxu0 0.0
    %3785 = vmatpush1.msra.mxu0 0.0
    %3786 = vmatprep.subr.mxu0 0.0
    %3787 = vmatpush1.msra.mxu0 0.0
    %3788 = vmatprep.subr.mxu0 0.0
    %3789 = vmatpush1.msra.mxu0 0.0
    %3790 = vmatprep.subr.mxu0 0.0
    %3791 = vmatpush1.msra.mxu0 0.0
    %3792 = vmatprep.subr.mxu0 0.0
    %3793 = vmatpush1.msra.mxu0 0.0
    %3794 = vmatprep.subr.mxu0 0.0
    %3795 = vmatpush1.msra.mxu0 0.0
    %3796 = vmatprep.subr.mxu0 0.0
    %3797 = vmatpush1.msra.mxu0 0.0
    %3798 = vmatprep.subr.mxu0 0.0
    %3799 = vmatpush1.msra.mxu0 0.0
    %3800 = vmatprep.subr.mxu0 0.0
    %3801 = vmatpush1.msra.mxu0 0.0
    %3802 = vmatprep.subr.mxu0 0.0
    %3803 = vmatpush1.msra.mxu0 0.0
    %3804 = vmatprep.subr.mxu0 0.0
    %3805 = vmatpush1.msra.mxu0 0.0
    %3806 = vmatprep.subr.mxu0 0.0
    %3807 = vmatpush1.msra.mxu0 0.0
    %3808 = vmatprep.subr.mxu0 0.0
    %3809 = vmatpush1.msra.mxu0 0.0
    %3810 = vmatprep.subr.mxu0 0.0
    %3811 = vmatpush1.msra.mxu0 0.0
    %3812 = vmatprep.subr.mxu0 0.0
    %3813 = vmatpush1.msra.mxu0 0.0
    %3814 = vmatprep.subr.mxu0 0.0
    %3815 = vmatpush1.msra.mxu0 0.0
    %3816 = vmatprep.subr.mxu0 0.0
    %3817 = vmatpush1.msra.mxu0 0.0
    %3818 = vmatprep.subr.mxu0 0.0
    %3819 = vmatpush1.msra.mxu0 0.0
    %3820 = vmatprep.subr.mxu0 0.0
    %3821 = vmatpush1.msra.mxu0 0.0
    %3822 = vmatprep.subr.mxu0 0.0
    %3823 = vmatpush1.msra.mxu0 0.0
    %3824 = vmatprep.subr.mxu0 0.0
    %3825 = vmatpush1.msra.mxu0 0.0
    %3826 = vmatprep.subr.mxu0 0.0
    %3827 = vmatpush1.msra.mxu0 0.0
    %3828 = vmatprep.subr.mxu0 0.0
    %3829 = vmatpush1.msra.mxu0 0.0
    %3830 = vmatprep.subr.mxu0 0.0
    %3831 = vmatpush1.msra.mxu0 0.0
    %3832 = vmatprep.subr.mxu0 0.0
    %3833 = vmatpush1.msra.mxu0 0.0
    %3834 = vmatprep.mubr.f32.mxu0 0.0
    %3835 = vmatmul.mubr.f32.gmra.mrb[0].mxu0 %v3765
    %v3836 = vpop.f32.mrb[0].mxu0
    %v3837 = vadd.f32 %v3762, %v3836
    %v3838 = vpop.f32.mrb[0].mxu0
    %3839 = vmatprep.mubr.f32.mxu0 0.0
    %3840 = vmatmul.mubr.f32.gmra.mrb[0].mxu0 %v3768
    %v3841 = vpop.f32.mrb[0].mxu0
    %v3842 = vadd.f32 %v3762, %v3841
    %v3843 = vpop.f32.mrb[0].mxu0
    %3844 = vdwg.mxu0
    %v3845 = vmul.f32 %v3837, 0.5
    %v3846 = vmul.f32 %v3842, 0.5
    %v3847 = vmul.f32 %v3837, 0.044715
    %v3848 = vmul.f32 %v3842, 0.044715
    %v3849 = vmul.f32 %v3847, %v3837
    %v3850 = vmul.f32 %v3848, %v3842
    %v3851 = vmul.f32 %v3849, %v3837
    %v3852 = vmul.f32 %v3850, %v3842
    %v3853 = vadd.f32 %v3837, %v3851
    %v3854 = vadd.f32 %v3842, %v3852
    %v3855 = vmul.f32 %v3853, 0.7978846
    %v3856 = vmul.f32 %v3854, 0.7978846
    %v3857 = vtanh.pop %v3855
    %v3858 = vtanh.pop %v3856
    %v3859 = vadd.f32 %v3857, 1.0
    %v3860 = vadd.f32 %v3858, 1.0
    %v3861 = vmul.f32 %v3845, %v3859
    %v3862 = vmul.f32 %v3846, %v3860
    %v3863 = vld [vmem:[%s53] sm:$0xff]
    %v3864 = vld [vmem:[%s53 + $0x8] sm:$0xff]
    %v3865 = vld [vmem:[%s53 + $0x10] sm:$0xff]
    %v3866 = vld [vmem:[%s53 + $0x18] sm:$0xff]
    %v3867 = vld [vmem:[%s53 + $0x20] sm:$0xff]
    %v3868 = vld [vmem:[%s53 + $0x28] sm:$0xff]
    %v3869 = vld [vmem:[%s53 + $0x30] sm:$0xff]
    %v3870 = vld [vmem:[%s53 + $0x38] sm:$0xff]
    %v3871 = vld [vmem:[%s55] sm:$0x1]
    %v3873 = vlaneseq
    %v3874 = vshrl.u32 %v3873, 7
    %v3875 = vsub.s32 0, %v3874
    %v3876 = vrot.slane %v3871, %v3875
    %v3879 = vsel %vm2031, %v3861, 0
    %v3882 = vsel %vm2031, %v3862, 0
    %3884 = vmatprep.subr.mxu0 0.0
    %3885 = vmatpush1.msra.mxu0 %v3863
    %3886 = vmatprep.subr.mxu0 0.0
    %3887 = vmatpush1.msra.mxu0 %v3864
    %3888 = vmatprep.subr.mxu0 0.0
    %3889 = vmatpush1.msra.mxu0 %v3865
    %3890 = vmatprep.subr.mxu0 0.0
    %3891 = vmatpush1.msra.mxu0 %v3866
    %3892 = vmatprep.subr.mxu0 0.0
    %3893 = vmatpush1.msra.mxu0 %v3867
    %3894 = vmatprep.subr.mxu0 0.0
    %3895 = vmatpush1.msra.mxu0 %v3868
    %3896 = vmatprep.subr.mxu0 0.0
    %3897 = vmatpush1.msra.mxu0 %v3869
    %3898 = vmatprep.subr.mxu0 0.0
    %3899 = vmatpush1.msra.mxu0 %v3870
    %3900 = vmatprep.subr.mxu0 0.0
    %3901 = vmatpush1.msra.mxu0 0.0
    %3902 = vmatprep.subr.mxu0 0.0
    %3903 = vmatpush1.msra.mxu0 0.0
    %3904 = vmatprep.subr.mxu0 0.0
    %3905 = vmatpush1.msra.mxu0 0.0
    %3906 = vmatprep.subr.mxu0 0.0
    %3907 = vmatpush1.msra.mxu0 0.0
    %3908 = vmatprep.subr.mxu0 0.0
    %3909 = vmatpush1.msra.mxu0 0.0
    %3910 = vmatprep.subr.mxu0 0.0
    %3911 = vmatpush1.msra.mxu0 0.0
    %3912 = vmatprep.subr.mxu0 0.0
    %3913 = vmatpush1.msra.mxu0 0.0
    %3914 = vmatprep.subr.mxu0 0.0
    %3915 = vmatpush1.msra.mxu0 0.0
    %3916 = vmatprep.subr.mxu0 0.0
    %3917 = vmatpush1.msra.mxu0 0.0
    %3918 = vmatprep.subr.mxu0 0.0
    %3919 = vmatpush1.msra.mxu0 0.0
    %3920 = vmatprep.subr.mxu0 0.0
    %3921 = vmatpush1.msra.mxu0 0.0
    %3922 = vmatprep.subr.mxu0 0.0
    %3923 = vmatpush1.msra.mxu0 0.0
    %3924 = vmatprep.subr.mxu0 0.0
    %3925 = vmatpush1.msra.mxu0 0.0
    %3926 = vmatprep.subr.mxu0 0.0
    %3927 = vmatpush1.msra.mxu0 0.0
    %3928 = vmatprep.subr.mxu0 0.0
    %3929 = vmatpush1.msra.mxu0 0.0
    %3930 = vmatprep.subr.mxu0 0.0
    %3931 = vmatpush1.msra.mxu0 0.0
    %3932 = vmatprep.subr.mxu0 0.0
    %3933 = vmatpush1.msra.mxu0 0.0
    %3934 = vmatprep.subr.mxu0 0.0
    %3935 = vmatpush1.msra.mxu0 0.0
    %3936 = vmatprep.subr.mxu0 0.0
    %3937 = vmatpush1.msra.mxu0 0.0
    %3938 = vmatprep.subr.mxu0 0.0
    %3939 = vmatpush1.msra.mxu0 0.0
    %3940 = vmatprep.subr.mxu0 0.0
    %3941 = vmatpush1.msra.mxu0 0.0
    %3942 = vmatprep.subr.mxu0 0.0
    %3943 = vmatpush1.msra.mxu0 0.0
    %3944 = vmatprep.subr.mxu0 0.0
    %3945 = vmatpush1.msra.mxu0 0.0
    %3946 = vmatprep.subr.mxu0 0.0
    %3947 = vmatpush1.msra.mxu0 0.0
    %3948 = vmatprep.mubr.f32.mxu0 0.0
    %3949 = vmatmul.mubr.f32.gmra.mrb[0].mxu0 %v3879
    %v3950 = vpop.f32.mrb[0].mxu0
    %v3951 = vadd.f32 %v3876, %v3950
    %v3952 = vpop.f32.mrb[0].mxu0
    %3953 = vmatprep.mubr.f32.mxu0 0.0
    %3954 = vmatmul.mubr.f32.gmra.mrb[0].mxu0 %v3882
    %v3955 = vpop.f32.mrb[0].mxu0
    %v3956 = vadd.f32 %v3876, %v3955
    %v3957 = vpop.f32.mrb[0].mxu0
    %3958 = vdwg.mxu0
    %v3959 = vadd.f32 %v3951, %v3751
    %v3960 = vadd.f32 %v3956, %v3752
    %v3961 = vld [vmem:[%s57] sm:$0x1]
    %v3962 = vld [vmem:[%s59] sm:$0x1]
    %v3963 = vsel %vm253, %v3959, 0.0
    %3964 = vadd.xlane.f32.xlu0 %v3963
    %v3965 = vpop.xlane.xlu0 %3964
    %v3966 = vsel %vm253, %v3960, 0.0
    %3967 = vadd.xlane.f32.xlu0 %v3966
    %v3968 = vpop.xlane.xlu0 %3967
    %v3969 = vmul.f32 %v3965, %v260
    %v3970 = vmul.f32 %v3968, %v260
    %v3971 = vsub.f32 %v3959, %v3969
    %v3972 = vsub.f32 %v3960, %v3970
    %v3973 = vmul.f32 %v3971, %v3971
    %v3974 = vmul.f32 %v3972, %v3972
    %v3975 = vsel %vm253, %v3973, 0.0
    %3976 = vadd.xlane.f32.xlu0 %v3975
    %v3977 = vpop.xlane.xlu0 %3976
    %v3978 = vsel %vm253, %v3974, 0.0
    %3979 = vadd.xlane.f32.xlu0 %v3978
    %v3980 = vpop.xlane.xlu0 %3979
    %v3981 = vmul.f32 %v3977, %v260
    %v3982 = vmul.f32 %v3980, %v260
    %v3983 = vadd.f32 %v3981, 1e-12
    %v3984 = vadd.f32 %v3982, 1e-12
    %v3985 = vrsqrt.pop %v3983
    %v3986 = vrsqrt.pop %v3984
    %v3987 = vmul.f32 %v3971, %v3985
    %v3988 = vmul.f32 %v3972, %v3986
    %v3990 = vlaneseq
    %v3991 = vshrl.u32 %v3990, 7
    %v3992 = vsub.s32 0, %v3991
    %v3993 = vrot.slane %v3961, %v3992
    %v3995 = vmul.f32 %v3987, %v3993
    %v3996 = vmul.f32 %v3988, %v3993
    %v3998 = vlaneseq
    %v3999 = vshrl.u32 %v3998, 7
    %v4000 = vsub.s32 0, %v3999
    %v4001 = vrot.slane %v3962, %v4000
    %v4003 = vadd.f32 %v3995, %v4001
    %v4004 = vadd.f32 %v3996, %v4001
    %v4006 = vrot.slane %v4004, 7
    %vm4008 = vcmask 1040384
    %v4009 = vsel %vm4008, %v4003, %v4006
    %v4010 = vld [vmem:[%s61] sm:$0xff]
    %v4011 = vld [vmem:[%s61 + $0x8] sm:$0xff]
    %v4012 = vld [vmem:[%s61 + $0x10] sm:$0xff]
    %v4013 = vld [vmem:[%s61 + $0x18] sm:$0xff]
    %v4014 = vld [vmem:[%s63] sm:$0x1]
    %v4016 = vlaneseq
    %v4017 = vshrl.u32 %v4016, 7
    %v4018 = vsub.s32 0, %v4017
    %v4019 = vrot.slane %v4014, %v4018
    %v4022 = vsel %vm253, %v4009, 0
    %4024 = vmatprep.subr.mxu0 0.0
    %4025 = vmatpush1.msra.mxu0 %v4010
    %4026 = vmatprep.subr.mxu0 0.0
    %4027 = vmatpush1.msra.mxu0 %v4011
    %4028 = vmatprep.subr.mxu0 0.0
    %4029 = vmatpush1.msra.mxu0 %v4012
    %4030 = vmatprep.subr.mxu0 0.0
    %4031 = vmatpush1.msra.mxu0 %v4013
    %4032 = vmatprep.subr.mxu0 0.0
    %4033 = vmatpush1.msra.mxu0 0.0
    %4034 = vmatprep.subr.mxu0 0.0
    %4035 = vmatpush1.msra.mxu0 0.0
    %4036 = vmatprep.subr.mxu0 0.0
    %4037 = vmatpush1.msra.mxu0 0.0
    %4038 = vmatprep.subr.mxu0 0.0
    %4039 = vmatpush1.msra.mxu0 0.0
    %4040 = vmatprep.subr.mxu0 0.0
    %4041 = vmatpush1.msra.mxu0 0.0
    %4042 = vmatprep.subr.mxu0 0.0
    %4043 = vmatpush1.msra.mxu0 0.0
    %4044 = vmatprep.subr.mxu0 0.0
    %4045 = vmatpush1.msra.mxu0 0.0
    %4046 = vmatprep.subr.mxu0 0.0
    %4047 = vmatpush1.msra.mxu0 0.0
    %4048 = vmatprep.subr.mxu0 0.0
    %4049 = vmatpush1.msra.mxu0 0.0
    %4050 = vmatprep.subr.mxu0 0.0
    %4051 = vmatpush1.msra.mxu0 0.0
    %4052 = vmatprep.subr.mxu0 0.0
    %4053 = vmatpush1.msra.mxu0 0.0
    %4054 = vmatprep.subr.mxu0 0.0
    %4055 = vmatpush1.msra.mxu0 0.0
    %4056 = vmatprep.subr.mxu0 0.0
    %4057 = vmatpush1.msra.mxu0 0.0
    %4058 = vmatprep.subr.mxu0 0.0
    %4059 = vmatpush1.msra.mxu0 0.0
    %4060 = vmatprep.subr.mxu0 0.0
    %4061 = vmatpush1.msra.mxu0 0.0
    %4062 = vmatprep.subr.mxu0 0.0
    %4063 = vmatpush1.msra.mxu0 0.0
    %4064 = vmatprep.subr.mxu0 0.0
    %4065 = vmatpush1.msra.mxu0 0.0
    %4066 = vmatprep.subr.mxu0 0.0
    %4067 = vmatpush1.msra.mxu0 0.0
    %4068 = vmatprep.subr.mxu0 0.0
    %4069 = vmatpush1.msra.mxu0 0.0
    %4070 = vmatprep.subr.mxu0 0.0
    %4071 = vmatpush1.msra.mxu0 0.0
    %4072 = vmatprep.subr.mxu0 0.0
    %4073 = vmatpush1.msra.mxu0 0.0
    %4074 = vmatprep.subr.mxu0 0.0
    %4075 = vmatpush1.msra.mxu0 0.0
    %4076 = vmatprep.subr.mxu0 0.0
    %4077 = vmatpush1.msra.mxu0 0.0
    %4078 = vmatprep.subr.mxu0 0.0
    %4079 = vmatpush1.msra.mxu0 0.0
    %4080 = vmatprep.subr.mxu0 0.0
    %4081 = vmatpush1.msra.mxu0 0.0
    %4082 = vmatprep.subr.mxu0 0.0
    %4083 = vmatpush1.msra.mxu0 0.0
    %4084 = vmatprep.subr.mxu0 0.0
    %4085 = vmatpush1.msra.mxu0 0.0
    %4086 = vmatprep.subr.mxu0 0.0
    %4087 = vmatpush1.msra.mxu0 0.0
    %4088 = vmatprep.mubr.f32.mxu0 0.0
    %4089 = vmatmul.mubr.f32.gmra.mrb[0].mxu0 %v4022
    %v4090 = vpop.f32.mrb[0].mxu0
    %v4091 = vadd.f32 %v4019, %v4090
    %v4092 = vpop.f32.mrb[0].mxu0
    %4093 = vdwg.mxu0
    %v4094 = vtanh.pop %v4091
    %v4095 = vld [vmem:[%s65] sm:$0xff]
    %v4096 = vld [vmem:[%s65 + $0x8] sm:$0xff]
    %v4097 = vld [vmem:[%s65 + $0x10] sm:$0xff]
    %v4098 = vld [vmem:[%s65 + $0x18] sm:$0xff]
    %v4099 = vld [vmem:[%s67] sm:$0x1]
    %v4101 = vlaneseq
    %v4102 = vshrl.u32 %v4101, 7
    %v4103 = vsub.s32 0, %v4102
    %v4104 = vrot.slane %v4099, %v4103
    %v4107 = vsel %vm253, %v4094, 0
    %4109 = vmatprep.subr.mxu0 0.0
    %4110 = vmatpush1.msra.mxu0 %v4095
    %4111 = vmatprep.subr.mxu0 0.0
    %4112 = vmatpush1.msra.mxu0 %v4096
    %4113 = vmatprep.subr.mxu0 0.0
    %4114 = vmatpush1.msra.mxu0 %v4097
    %4115 = vmatprep.subr.mxu0 0.0
    %4116 = vmatpush1.msra.mxu0 %v4098
    %4117 = vmatprep.subr.mxu0 0.0
    %4118 = vmatpush1.msra.mxu0 0.0
    %4119 = vmatprep.subr.mxu0 0.0
    %4120 = vmatpush1.msra.mxu0 0.0
    %4121 = vmatprep.subr.mxu0 0.0
    %4122 = vmatpush1.msra.mxu0 0.0
    %4123 = vmatprep.subr.mxu0 0.0
    %4124 = vmatpush1.msra.mxu0 0.0
    %4125 = vmatprep.subr.mxu0 0.0
    %4126 = vmatpush1.msra.mxu0 0.0
    %4127 = vmatprep.subr.mxu0 0.0
    %4128 = vmatpush1.msra.mxu0 0.0
    %4129 = vmatprep.subr.mxu0 0.0
    %4130 = vmatpush1.msra.mxu0 0.0
    %4131 = vmatprep.subr.mxu0 0.0
    %4132 = vmatpush1.msra.mxu0 0.0
    %4133 = vmatprep.subr.mxu0 0.0
    %4134 = vmatpush1.msra.mxu0 0.0
    %4135 = vmatprep.subr.mxu0 0.0
    %4136 = vmatpush1.msra.mxu0 0.0
    %4137 = vmatprep.subr.mxu0 0.0
    %4138 = vmatpush1.msra.mxu0 0.0
    %4139 = vmatprep.subr.mxu0 0.0
    %4140 = vmatpush1.msra.mxu0 0.0
    %4141 = vmatprep.subr.mxu0 0.0
    %4142 = vmatpush1.msra.mxu0 0.0
    %4143 = vmatprep.subr.mxu0 0.0
    %4144 = vmatpush1.msra.mxu0 0.0
    %4145 = vmatprep.subr.mxu0 0.0
    %4146 = vmatpush1.msra.mxu0 0.0
    %4147 = vmatprep.subr.mxu0 0.0
    %4148 = vmatpush1.msra.mxu0 0.0
    %4149 = vmatprep.subr.mxu0 0.0
    %4150 = vmatpush1.msra.mxu0 0.0
    %4151 = vmatprep.subr.mxu0 0.0
    %4152 = vmatpush1.msra.mxu0 0.0
    %4153 = vmatprep.subr.mxu0 0.0
    %4154 = vmatpush1.msra.mxu0 0.0
    %4155 = vmatprep.subr.mxu0 0.0
    %4156 = vmatpush1.msra.mxu0 0.0
    %4157 = vmatprep.subr.mxu0 0.0
    %4158 = vmatpush1.msra.mxu0 0.0
    %4159 = vmatprep.subr.mxu0 0.0
    %4160 = vmatpush1.msra.mxu0 0.0
    %4161 = vmatprep.subr.mxu0 0.0
    %4162 = vmatpush1.msra.mxu0 0.0
    %4163 = vmatprep.subr.mxu0 0.0
    %4164 = vmatpush1.msra.mxu0 0.0
    %4165 = vmatprep.subr.mxu0 0.0
    %4166 = vmatpush1.msra.mxu0 0.0
    %4167 = vmatprep.subr.mxu0 0.0
    %4168 = vmatpush1.msra.mxu0 0.0
    %4169 = vmatprep.subr.mxu0 0.0
    %4170 = vmatpush1.msra.mxu0 0.0
    %4171 = vmatprep.subr.mxu0 0.0
    %4172 = vmatpush1.msra.mxu0 0.0
    %4173 = vmatprep.mubr.f32.mxu0 0.0
    %4174 = vmatmul.mubr.f32.gmra.mrb[0].mxu0 %v4107
    %v4175 = vpop.f32.mrb[0].mxu0
    %v4176 = vadd.f32 %v4104, %v4175
    %v4177 = vpop.f32.mrb[0].mxu0
    %4178 = vdwg.mxu0
    %4179 = vst [vmem:[#allocation2] sm:$0x3] %v4176
    // Predicated region
    $region138: #{sentiment_classifier_forward.1} parent=1 // pred_check
      _
    $region139: #{sentiment_classifier_forward.1} parent=1 // pred_check_branch
      %4181 = sbr.rel (0) target = $region141
    $region140: #{sentiment_classifier_forward.1} parent=1 // pred_region
      %s4183 = ssub.s32 32, 32
      %4184 = vsyncadd [#allocation3], %s4183
      %s4186 = sshll.u32 [#allocation2], 4
      %s4187 = int_to_ptr.vmem [resolvable:$true] %s4186
      %4189 = dma.vmem_to_hbm [thread:$0]  %s4187, 32, %s69, [#allocation3]
    $region141: #{sentiment_classifier_forward.1} parent=1 // pred_fallthru
      _
    // Predicated region
    $region142: #{sentiment_classifier_forward.1} parent=1 // pred_check
      _
    $region143: #{sentiment_classifier_forward.1} parent=1 // pred_check_branch
      %4191 = sbr.rel (0) target = $region145
    $region144: #{sentiment_classifier_forward.1} parent=1 // pred_region
      %4192 = dma.done [#allocation3], 32
    $region145: #{sentiment_classifier_forward.1} parent=1 // pred_fallthru
      _
    %4193 = vsyncpa [#allocation3], 1

</llo_original>
